<compile_context>
chip_gen: v6e
topology: v6e:2x2x1
jax: 0.10.0
libtpu: 0.0.40
codegen_flags: <defaults>
</compile_context>

<pallas_src>
import math
import jax
import jax.numpy as jnp
from jax import lax
from jax.experimental import pallas as pl
from jax.experimental.pallas import tpu as pltpu

# ---------------- small synthetic KoGPT2-like config ----------------
VOCAB = 256
D_MODEL = 64
N_HEAD = 4
HEAD_DIM = D_MODEL // N_HEAD
N_LAYER = 2
D_FF = 4 * D_MODEL
MAX_POS = 64
LN_EPS = 1e-5


def _vmem_spec():
    return pl.BlockSpec(memory_space=pltpu.MemorySpace.VMEM)


def _smem_spec():
    return pl.BlockSpec(memory_space=pltpu.MemorySpace.SMEM)


# ---------------- in-kernel helpers ----------------
def _layer_norm(x, g, b):
    mu = jnp.mean(x, axis=-1, keepdims=True)
    var = jnp.mean(jnp.square(x - mu), axis=-1, keepdims=True)
    return (x - mu) * lax.rsqrt(var + LN_EPS) * g + b


def _gelu_new(x):
    # GPT-2 "gelu_new" (tanh approximation), kept in f32 (v5e VPU/EUP are f32)
    c = math.sqrt(2.0 / math.pi)
    return 0.5 * x * (1.0 + jnp.tanh(c * (x + 0.044715 * x * x * x)))


# ---------------- fused forward core (traced inside the kernel) ----------------
def _forward_core(ids_ref, wte_ref, wpe_ref, wteT_ref,
                  ln1g_ref, ln1b_ref, wq_ref, bq_ref, wk_ref, bk_ref,
                  wv_ref, bv_ref, wo_ref, bo_ref, ln2g_ref, ln2b_ref,
                  wfc_ref, bfc_ref, wpr_ref, bpr_ref, lnfg_ref, lnfb_ref,
                  B, S):
    BS = B * S
    V = wte_ref.shape[0]

    # --- token embedding: exact gather via one-hot matmul (wte stays f32) ---
    ids = ids_ref[...]                                            # [BS, 1] i32
    lane_v = lax.broadcasted_iota(jnp.int32, (BS, V), 1)
    tok_oh = jnp.where(lane_v == ids, 1.0, 0.0)                   # [BS, V] f32
    x = jnp.dot(tok_oh, wte_ref[...],
                preferred_element_type=jnp.float32)               # [BS, D] f32

    # --- position embedding: static aligned slice of wpe, broadcast add ---
    pe = wpe_ref[0:S, :]                                          # [S, D] f32
    x = (x.reshape(B, S, D_MODEL) + pe[None, :, :]).reshape(BS, D_MODEL)

    # causal mask [1, S, S]
    rows = lax.broadcasted_iota(jnp.int32, (S, S), 0)
    cols = lax.broadcasted_iota(jnp.int32, (S, S), 1)
    causal = (cols <= rows)[None, :, :]

    scale = 1.0 / math.sqrt(HEAD_DIM)

    for li in range(N_LAYER):
        # load this layer's params once (static leading-dim index)
        ln1g, ln1b = ln1g_ref[li], ln1b_ref[li]
        wq_l, bq_l = wq_ref[li], bq_ref[li]
        wk_l, bk_l = wk_ref[li], bk_ref[li]
        wv_l, bv_l = wv_ref[li], bv_ref[li]
        wo_l, bo_l = wo_ref[li], bo_ref[li]
        ln2g, ln2b = ln2g_ref[li], ln2b_ref[li]
        wfc_l, bfc_l = wfc_ref[li], bfc_ref[li]
        wpr_l, bpr_l = wpr_ref[li], bpr_ref[li]

        # --- attention sub-block: x = x + attn(ln_1(x)) ---
        h = _layer_norm(x, ln1g, ln1b)
        hb = h.astype(jnp.bfloat16)
        q = jnp.dot(hb, wq_l, preferred_element_type=jnp.float32) + bq_l
        k = jnp.dot(hb, wk_l, preferred_element_type=jnp.float32) + bk_l
        v = jnp.dot(hb, wv_l, preferred_element_type=jnp.float32) + bv_l
        q3 = q.reshape(B, S, D_MODEL)
        k3 = k.reshape(B, S, D_MODEL)
        v3 = v.reshape(B, S, D_MODEL)

        # Static per-head loop over the single batched (over B) contraction.
        # (Mosaic dot_general lowering supports one batch dim; the concat is
        #  eliminated by accumulating the output projection per head.)
        attn = jnp.zeros((BS, D_MODEL), jnp.float32)
        for hidx in range(N_HEAD):
            sl = slice(hidx * HEAD_DIM, (hidx + 1) * HEAD_DIM)
            qh = q3[:, :, sl].astype(jnp.bfloat16)
            kh = k3[:, :, sl].astype(jnp.bfloat16)
            vh = v3[:, :, sl].astype(jnp.bfloat16)
            s = jnp.einsum('bqd,bkd->bqk', qh, kh,
                           preferred_element_type=jnp.float32) * scale
            s = jnp.where(causal, s, -1e30)
            s = s - jnp.max(s, axis=-1, keepdims=True)
            e = jnp.exp(s)
            inv = pl.reciprocal(jnp.sum(e, axis=-1, keepdims=True), approx=True)
            p = (e * inv).astype(jnp.bfloat16)
            ctx = jnp.einsum('bqk,bkd->bqd', p, vh,
                             preferred_element_type=jnp.float32)      # [B,S,Hd]
            ctx2 = ctx.reshape(BS, HEAD_DIM).astype(jnp.bfloat16)
            # fold the output projection in: equivalent to concat(ctx) @ Wo
            attn = attn + jnp.dot(ctx2, wo_l[sl, :],
                                  preferred_element_type=jnp.float32)
        x = x + attn + bo_l

        # --- MLP sub-block: x = x + mlp(ln_2(x)) ---
        h2 = _layer_norm(x, ln2g, ln2b).astype(jnp.bfloat16)
        a = jnp.dot(h2, wfc_l, preferred_element_type=jnp.float32) + bfc_l
        a = _gelu_new(a).astype(jnp.bfloat16)
        x = x + jnp.dot(a, wpr_l, preferred_element_type=jnp.float32) + bpr_l

    # --- final LN + tied LM head (wte pre-transposed to [D, V]) ---
    hf = _layer_norm(x, lnfg_ref[...], lnfb_ref[...]).astype(jnp.bfloat16)
    logits = jnp.dot(hf, wteT_ref[...],
                     preferred_element_type=jnp.float32)              # [BS, V]
    return logits


def _xent_from_logits(logits, next_labels):
    # HF GPT2LMHeadModel loss: mean CE over non-ignored (label != -100) tokens.
    BS, V = logits.shape
    valid = next_labels >= 0                                          # [BS, 1]
    lane = lax.broadcasted_iota(jnp.int32, (BS, V), 1)
    tgt_oh = lane == next_labels                                      # [BS, V]
    tgt = jnp.sum(jnp.where(tgt_oh, logits, 0.0), axis=-1, keepdims=True)
    m = jnp.max(logits, axis=-1, keepdims=True)
    lse = jnp.log(jnp.sum(jnp.exp(logits - m), axis=-1, keepdims=True)) + m
    nll = jnp.where(valid, lse - tgt, 0.0)                            # [BS, 1]
    cnt = jnp.sum(jnp.where(valid, 1.0, 0.0))
    return jnp.sum(nll) / jnp.maximum(cnt, 1.0)


# ---------------- kernels ----------------
def gpt2_fwd_kernel(ids_ref, wte_ref, wpe_ref, wteT_ref,
                    ln1g_ref, ln1b_ref, wq_ref, bq_ref, wk_ref, bk_ref,
                    wv_ref, bv_ref, wo_ref, bo_ref, ln2g_ref, ln2b_ref,
                    wfc_ref, bfc_ref, wpr_ref, bpr_ref, lnfg_ref, lnfb_ref,
                    logits_ref):
    B, S, V = logits_ref.shape
    logits = _forward_core(ids_ref, wte_ref, wpe_ref, wteT_ref,
                           ln1g_ref, ln1b_ref, wq_ref, bq_ref, wk_ref, bk_ref,
                           wv_ref, bv_ref, wo_ref, bo_ref, ln2g_ref, ln2b_ref,
                           wfc_ref, bfc_ref, wpr_ref, bpr_ref,
                           lnfg_ref, lnfb_ref, B, S)
    logits_ref[...] = logits.reshape(B, S, V)


def gpt2_fwd_loss_kernel(ids_ref, nl_ref, wte_ref, wpe_ref, wteT_ref,
                         ln1g_ref, ln1b_ref, wq_ref, bq_ref, wk_ref, bk_ref,
                         wv_ref, bv_ref, wo_ref, bo_ref, ln2g_ref, ln2b_ref,
                         wfc_ref, bfc_ref, wpr_ref, bpr_ref, lnfg_ref, lnfb_ref,
                         logits_ref, loss_ref):
    B, S, V = logits_ref.shape
    logits = _forward_core(ids_ref, wte_ref, wpe_ref, wteT_ref,
                           ln1g_ref, ln1b_ref, wq_ref, bq_ref, wk_ref, bk_ref,
                           wv_ref, bv_ref, wo_ref, bo_ref, ln2g_ref, ln2b_ref,
                           wfc_ref, bfc_ref, wpr_ref, bpr_ref,
                           lnfg_ref, lnfb_ref, B, S)
    logits_ref[...] = logits.reshape(B, S, V)
    loss_ref[0, 0] = _xent_from_logits(logits, nl_ref[...])


# ---------------- pallas_call wrappers ----------------
def _weight_args(p):
    return (p['wte'], p['wpe'], p['wte_T'],
            p['ln1_g'], p['ln1_b'], p['w_q'], p['b_q'], p['w_k'], p['b_k'],
            p['w_v'], p['b_v'], p['w_o'], p['b_o'], p['ln2_g'], p['ln2_b'],
            p['w_fc'], p['b_fc'], p['w_pr'], p['b_pr'],
            p['lnf_g'], p['lnf_b'])


def run_forward(params, ids_flat, B, S):
    args = _weight_args(params)
    return pl.pallas_call(
        gpt2_fwd_kernel,
        out_shape=jax.ShapeDtypeStruct((B, S, VOCAB), jnp.float32),
        in_specs=[_vmem_spec()] * (1 + len(args)),
        out_specs=_vmem_spec(),
    )(ids_flat, *args)


def run_forward_loss(params, ids_flat, next_labels_flat, B, S):
    args = _weight_args(params)
    logits, loss = pl.pallas_call(
        gpt2_fwd_loss_kernel,
        out_shape=(jax.ShapeDtypeStruct((B, S, VOCAB), jnp.float32),
                   jax.ShapeDtypeStruct((1, 1), jnp.float32)),
        in_specs=[_vmem_spec()] * (2 + len(args)),
        out_specs=(_vmem_spec(), _smem_spec()),
    )(ids_flat, next_labels_flat, *args)
    return loss[0, 0], logits


# ---------------- parameter init (deterministic, GPT-2 style) ----------------
def init_params(key):
    std = 0.02
    ks = jax.random.split(key, 6)

    def nrm(k, shape):
        return jax.random.normal(k, shape, jnp.float32) * std

    wte = nrm(ks[0], (VOCAB, D_MODEL))
    wpe = nrm(ks[1], (MAX_POS, D_MODEL))
    # GPT-2 fused c_attn [D, 3D]; split to tile-aligned q/k/v weights.
    w_qkv = nrm(ks[2], (N_LAYER, D_MODEL, 3 * D_MODEL))
    w_q, w_k, w_v = jnp.split(w_qkv, 3, axis=-1)
    w_o = nrm(ks[3], (N_LAYER, D_MODEL, D_MODEL))
    w_fc = nrm(ks[4], (N_LAYER, D_MODEL, D_FF))
    w_pr = nrm(ks[5], (N_LAYER, D_FF, D_MODEL))

    bf = jnp.bfloat16
    return {
        'wte': wte,                                   # f32: exact embedding gather
        'wpe': wpe,
        'wte_T': wte.T.astype(bf),                    # [D, V] tied head, bf16 MXU feed
        'ln1_g': jnp.ones((N_LAYER, 1, D_MODEL), jnp.float32),
        'ln1_b': jnp.zeros((N_LAYER, 1, D_MODEL), jnp.float32),
        'w_q': w_q.astype(bf), 'b_q': jnp.zeros((N_LAYER, 1, D_MODEL), jnp.float32),
        'w_k': w_k.astype(bf), 'b_k': jnp.zeros((N_LAYER, 1, D_MODEL), jnp.float32),
        'w_v': w_v.astype(bf), 'b_v': jnp.zeros((N_LAYER, 1, D_MODEL), jnp.float32),
        'w_o': w_o.astype(bf), 'b_o': jnp.zeros((N_LAYER, 1, D_MODEL), jnp.float32),
        'ln2_g': jnp.ones((N_LAYER, 1, D_MODEL), jnp.float32),
        'ln2_b': jnp.zeros((N_LAYER, 1, D_MODEL), jnp.float32),
        'w_fc': w_fc.astype(bf), 'b_fc': jnp.zeros((N_LAYER, 1, D_FF), jnp.float32),
        'w_pr': w_pr.astype(bf), 'b_pr': jnp.zeros((N_LAYER, 1, D_MODEL), jnp.float32),
        'lnf_g': jnp.ones((1, D_MODEL), jnp.float32),
        'lnf_b': jnp.zeros((1, D_MODEL), jnp.float32),
    }


# ---------------- DialogKoGPT2 wrapper ----------------
class DialogKoGPT2:
    def __init__(self, key):
        self.params = init_params(key)

    # TODO(synk): `generate` (autoregressive sampling with top-k/top-p/beams)
    # is a host-side decoding loop, not a single forward kernel; not implemented.

    def forward(self, input_ids, labels=None):
        B, S = input_ids.shape
        ids_flat = input_ids.reshape(B * S, 1).astype(jnp.int32)
        if labels is None:
            return run_forward(self.params, ids_flat, B, S)
        # HF GPT2LMHeadModel: shift so tokens < n predict token n; mark the
        # last position with ignore_index=-100 (ignored, like nn.CrossEntropyLoss).
        next_labels = jnp.concatenate(
            [labels[:, 1:].astype(jnp.int32),
             jnp.full((B, 1), -100, jnp.int32)], axis=1).reshape(B * S, 1)
        return run_forward_loss(self.params, ids_flat, next_labels, B, S)

    def __call__(self, input_ids, labels=None):
        return self.forward(input_ids, labels)


if __name__ == "__main__":
    key = jax.random.PRNGKey(0)
    k_param, k_ids = jax.random.split(key)

    B, S = 2, 8
    input_ids = jax.random.randint(k_ids, (B, S), 0, VOCAB, dtype=jnp.int32)
    labels = input_ids  # standard LM objective

    model = DialogKoGPT2(k_param)

    logits_only = model(input_ids)
    loss, logits = model(input_ids, labels=labels)

    jax.block_until_ready((logits_only, loss, logits))

    assert logits.shape == (B, S, VOCAB)
    assert logits_only.shape == (B, S, VOCAB)
    assert bool(jnp.isfinite(loss)) and bool(jnp.all(jnp.isfinite(logits)))

    print("KERNEL_OK")
</pallas_src>

<mosaic_0001>
module attributes {stable_mosaic.version = 11 : i64} {
  func.func @gpt2_fwd_kernel(%arg0: memref<16x1xi32, #tpu.memory_space<vmem>>, %arg1: memref<256x64xf32, #tpu.memory_space<vmem>>, %arg2: memref<64x64xf32, #tpu.memory_space<vmem>>, %arg3: memref<64x256xbf16, #tpu.memory_space<vmem>>, %arg4: memref<2x1x64xf32, #tpu.memory_space<vmem>>, %arg5: memref<2x1x64xf32, #tpu.memory_space<vmem>>, %arg6: memref<2x64x64xbf16, #tpu.memory_space<vmem>>, %arg7: memref<2x1x64xf32, #tpu.memory_space<vmem>>, %arg8: memref<2x64x64xbf16, #tpu.memory_space<vmem>>, %arg9: memref<2x1x64xf32, #tpu.memory_space<vmem>>, %arg10: memref<2x64x64xbf16, #tpu.memory_space<vmem>>, %arg11: memref<2x1x64xf32, #tpu.memory_space<vmem>>, %arg12: memref<2x64x64xbf16, #tpu.memory_space<vmem>>, %arg13: memref<2x1x64xf32, #tpu.memory_space<vmem>>, %arg14: memref<2x1x64xf32, #tpu.memory_space<vmem>>, %arg15: memref<2x1x64xf32, #tpu.memory_space<vmem>>, %arg16: memref<2x64x256xbf16, #tpu.memory_space<vmem>>, %arg17: memref<2x1x256xf32, #tpu.memory_space<vmem>>, %arg18: memref<2x256x64xbf16, #tpu.memory_space<vmem>>, %arg19: memref<2x1x64xf32, #tpu.memory_space<vmem>>, %arg20: memref<1x64xf32, #tpu.memory_space<vmem>>, %arg21: memref<1x64xf32, #tpu.memory_space<vmem>>, %arg22: memref<2x8x256xf32, #tpu.memory_space<vmem>>) attributes {dimension_semantics = [], scalar_prefetch = 0 : i64, scratch_operands = 0 : i64, tpu.core_type = #tpu.core_type<tc>} {
    %c0 = arith.constant 0 : index
    %c0_0 = arith.constant 0 : index
    %0 = vector.load %arg0[%c0, %c0_0] : memref<16x1xi32, #tpu.memory_space<vmem>>, vector<16x1xi32>
    %1 = tpu.iota {dimensions = array<i32: 1>} : vector<16x256xi32>
    %2 = vector.broadcast %0 : vector<16x1xi32> to vector<16x256xi32>
    %3 = arith.cmpi eq, %1, %2 : vector<16x256xi32>
    %cst = arith.constant 1.000000e+00 : f32
    %cst_1 = arith.constant 0.000000e+00 : f32
    %4 = vector.broadcast %cst : f32 to vector<16x256xf32>
    %5 = vector.broadcast %cst_1 : f32 to vector<16x256xf32>
    %6 = arith.select %3, %4, %5 : vector<16x256xi1>, vector<16x256xf32>
    %c0_2 = arith.constant 0 : index
    %c0_3 = arith.constant 0 : index
    %7 = vector.load %arg1[%c0_2, %c0_3] : memref<256x64xf32, #tpu.memory_space<vmem>>, vector<256x64xf32>
    %cst_4 = arith.constant dense<0.000000e+00> : vector<16x64xf32>
    %8 = tpu.matmul %6, %7, %cst_4 {dimension_numbers = #tpu.dot_dimension_numbers<[1], [0], [0], [1], [0, 0, 1, 1], [], []>} : vector<16x256xf32>, vector<256x64xf32>, vector<16x64xf32> -> vector<16x64xf32>
    %c0_5 = arith.constant 0 : index
    %c0_6 = arith.constant 0 : index
    %9 = vector.load %arg2[%c0_5, %c0_6] : memref<64x64xf32, #tpu.memory_space<vmem>>, vector<8x64xf32>
    %10 = vector.shape_cast %8 : vector<16x64xf32> to vector<2x8x64xf32>
    %11 = vector.shape_cast %9 : vector<8x64xf32> to vector<1x8x64xf32>
    %12 = vector.broadcast %11 : vector<1x8x64xf32> to vector<2x8x64xf32>
    %13 = arith.addf %10, %12 : vector<2x8x64xf32>
    %14 = vector.shape_cast %13 : vector<2x8x64xf32> to vector<16x64xf32>
    %15 = tpu.iota {dimensions = array<i32: 0>} : vector<8x8xi32>
    %16 = tpu.iota {dimensions = array<i32: 1>} : vector<8x8xi32>
    %17 = arith.cmpi sle, %16, %15 : vector<8x8xi32>
    %18 = vector.shape_cast %17 : vector<8x8xi1> to vector<1x8x8xi1>
    %c0_7 = arith.constant 0 : index
    %c0_8 = arith.constant 0 : index
    %c0_9 = arith.constant 0 : index
    %19 = vector.load %arg4[%c0_7, %c0_8, %c0_9] : memref<2x1x64xf32, #tpu.memory_space<vmem>>, vector<1x1x64xf32>
    %20 = vector.shape_cast %19 : vector<1x1x64xf32> to vector<1x64xf32>
    %c0_10 = arith.constant 0 : index
    %c0_11 = arith.constant 0 : index
    %c0_12 = arith.constant 0 : index
    %21 = vector.load %arg5[%c0_10, %c0_11, %c0_12] : memref<2x1x64xf32, #tpu.memory_space<vmem>>, vector<1x1x64xf32>
    %22 = vector.shape_cast %21 : vector<1x1x64xf32> to vector<1x64xf32>
    %c0_13 = arith.constant 0 : index
    %c0_14 = arith.constant 0 : index
    %c0_15 = arith.constant 0 : index
    %23 = vector.load %arg6[%c0_13, %c0_14, %c0_15] : memref<2x64x64xbf16, #tpu.memory_space<vmem>>, vector<1x64x64xbf16>
    %24 = vector.shape_cast %23 : vector<1x64x64xbf16> to vector<64x64xbf16>
    %c0_16 = arith.constant 0 : index
    %c0_17 = arith.constant 0 : index
    %c0_18 = arith.constant 0 : index
    %25 = vector.load %arg7[%c0_16, %c0_17, %c0_18] : memref<2x1x64xf32, #tpu.memory_space<vmem>>, vector<1x1x64xf32>
    %26 = vector.shape_cast %25 : vector<1x1x64xf32> to vector<1x64xf32>
    %c0_19 = arith.constant 0 : index
    %c0_20 = arith.constant 0 : index
    %c0_21 = arith.constant 0 : index
    %27 = vector.load %arg8[%c0_19, %c0_20, %c0_21] : memref<2x64x64xbf16, #tpu.memory_space<vmem>>, vector<1x64x64xbf16>
    %28 = vector.shape_cast %27 : vector<1x64x64xbf16> to vector<64x64xbf16>
    %c0_22 = arith.constant 0 : index
    %c0_23 = arith.constant 0 : index
    %c0_24 = arith.constant 0 : index
    %29 = vector.load %arg9[%c0_22, %c0_23, %c0_24] : memref<2x1x64xf32, #tpu.memory_space<vmem>>, vector<1x1x64xf32>
    %30 = vector.shape_cast %29 : vector<1x1x64xf32> to vector<1x64xf32>
    %c0_25 = arith.constant 0 : index
    %c0_26 = arith.constant 0 : index
    %c0_27 = arith.constant 0 : index
    %31 = vector.load %arg10[%c0_25, %c0_26, %c0_27] : memref<2x64x64xbf16, #tpu.memory_space<vmem>>, vector<1x64x64xbf16>
    %32 = vector.shape_cast %31 : vector<1x64x64xbf16> to vector<64x64xbf16>
    %c0_28 = arith.constant 0 : index
    %c0_29 = arith.constant 0 : index
    %c0_30 = arith.constant 0 : index
    %33 = vector.load %arg11[%c0_28, %c0_29, %c0_30] : memref<2x1x64xf32, #tpu.memory_space<vmem>>, vector<1x1x64xf32>
    %34 = vector.shape_cast %33 : vector<1x1x64xf32> to vector<1x64xf32>
    %c0_31 = arith.constant 0 : index
    %c0_32 = arith.constant 0 : index
    %c0_33 = arith.constant 0 : index
    %35 = vector.load %arg12[%c0_31, %c0_32, %c0_33] : memref<2x64x64xbf16, #tpu.memory_space<vmem>>, vector<1x64x64xbf16>
    %36 = vector.shape_cast %35 : vector<1x64x64xbf16> to vector<64x64xbf16>
    %c0_34 = arith.constant 0 : index
    %c0_35 = arith.constant 0 : index
    %c0_36 = arith.constant 0 : index
    %37 = vector.load %arg13[%c0_34, %c0_35, %c0_36] : memref<2x1x64xf32, #tpu.memory_space<vmem>>, vector<1x1x64xf32>
    %38 = vector.shape_cast %37 : vector<1x1x64xf32> to vector<1x64xf32>
    %c0_37 = arith.constant 0 : index
    %c0_38 = arith.constant 0 : index
    %c0_39 = arith.constant 0 : index
    %39 = vector.load %arg14[%c0_37, %c0_38, %c0_39] : memref<2x1x64xf32, #tpu.memory_space<vmem>>, vector<1x1x64xf32>
    %40 = vector.shape_cast %39 : vector<1x1x64xf32> to vector<1x64xf32>
    %c0_40 = arith.constant 0 : index
    %c0_41 = arith.constant 0 : index
    %c0_42 = arith.constant 0 : index
    %41 = vector.load %arg15[%c0_40, %c0_41, %c0_42] : memref<2x1x64xf32, #tpu.memory_space<vmem>>, vector<1x1x64xf32>
    %42 = vector.shape_cast %41 : vector<1x1x64xf32> to vector<1x64xf32>
    %c0_43 = arith.constant 0 : index
    %c0_44 = arith.constant 0 : index
    %c0_45 = arith.constant 0 : index
    %43 = vector.load %arg16[%c0_43, %c0_44, %c0_45] : memref<2x64x256xbf16, #tpu.memory_space<vmem>>, vector<1x64x256xbf16>
    %44 = vector.shape_cast %43 : vector<1x64x256xbf16> to vector<64x256xbf16>
    %c0_46 = arith.constant 0 : index
    %c0_47 = arith.constant 0 : index
    %c0_48 = arith.constant 0 : index
    %45 = vector.load %arg17[%c0_46, %c0_47, %c0_48] : memref<2x1x256xf32, #tpu.memory_space<vmem>>, vector<1x1x256xf32>
    %46 = vector.shape_cast %45 : vector<1x1x256xf32> to vector<1x256xf32>
    %c0_49 = arith.constant 0 : index
    %c0_50 = arith.constant 0 : index
    %c0_51 = arith.constant 0 : index
    %47 = vector.load %arg18[%c0_49, %c0_50, %c0_51] : memref<2x256x64xbf16, #tpu.memory_space<vmem>>, vector<1x256x64xbf16>
    %48 = vector.shape_cast %47 : vector<1x256x64xbf16> to vector<256x64xbf16>
    %c0_52 = arith.constant 0 : index
    %c0_53 = arith.constant 0 : index
    %c0_54 = arith.constant 0 : index
    %49 = vector.load %arg19[%c0_52, %c0_53, %c0_54] : memref<2x1x64xf32, #tpu.memory_space<vmem>>, vector<1x1x64xf32>
    %50 = vector.shape_cast %49 : vector<1x1x64xf32> to vector<1x64xf32>
    %cst_55 = arith.constant dense<0.000000e+00> : vector<16xf32>
    %51 = vector.multi_reduction <add>, %14, %cst_55 [1] : vector<16x64xf32> to vector<16xf32>
    %52 = vector.shape_cast %51 : vector<16xf32> to vector<16x1xf32>
    %cst_56 = arith.constant 6.400000e+01 : f32
    %53 = vector.broadcast %cst_56 : f32 to vector<16x1xf32>
    %54 = arith.divf %52, %53 : vector<16x1xf32>
    %55 = vector.broadcast %54 : vector<16x1xf32> to vector<16x64xf32>
    %56 = arith.subf %14, %55 : vector<16x64xf32>
    %57 = arith.mulf %56, %56 : vector<16x64xf32>
    %cst_57 = arith.constant dense<0.000000e+00> : vector<16xf32>
    %58 = vector.multi_reduction <add>, %57, %cst_57 [1] : vector<16x64xf32> to vector<16xf32>
    %59 = vector.shape_cast %58 : vector<16xf32> to vector<16x1xf32>
    %cst_58 = arith.constant 6.400000e+01 : f32
    %60 = vector.broadcast %cst_58 : f32 to vector<16x1xf32>
    %61 = arith.divf %59, %60 : vector<16x1xf32>
    %62 = vector.broadcast %54 : vector<16x1xf32> to vector<16x64xf32>
    %63 = arith.subf %14, %62 : vector<16x64xf32>
    %cst_59 = arith.constant 9.99999974E-6 : f32
    %64 = vector.broadcast %cst_59 : f32 to vector<16x1xf32>
    %65 = arith.addf %61, %64 : vector<16x1xf32>
    %66 = math.rsqrt %65 : vector<16x1xf32>
    %67 = vector.broadcast %66 : vector<16x1xf32> to vector<16x64xf32>
    %68 = arith.mulf %63, %67 : vector<16x64xf32>
    %69 = vector.broadcast %20 : vector<1x64xf32> to vector<16x64xf32>
    %70 = arith.mulf %68, %69 : vector<16x64xf32>
    %71 = vector.broadcast %22 : vector<1x64xf32> to vector<16x64xf32>
    %72 = arith.addf %70, %71 : vector<16x64xf32>
    %73 = arith.truncf %72 : vector<16x64xf32> to vector<16x64xbf16>
    %cst_60 = arith.constant dense<0.000000e+00> : vector<16x64xf32>
    %74 = tpu.matmul %73, %24, %cst_60 {dimension_numbers = #tpu.dot_dimension_numbers<[1], [0], [0], [1], [0, 0, 1, 1], [], []>} : vector<16x64xbf16>, vector<64x64xbf16>, vector<16x64xf32> -> vector<16x64xf32>
    %75 = vector.broadcast %26 : vector<1x64xf32> to vector<16x64xf32>
    %76 = arith.addf %74, %75 : vector<16x64xf32>
    %cst_61 = arith.constant dense<0.000000e+00> : vector<16x64xf32>
    %77 = tpu.matmul %73, %28, %cst_61 {dimension_numbers = #tpu.dot_dimension_numbers<[1], [0], [0], [1], [0, 0, 1, 1], [], []>} : vector<16x64xbf16>, vector<64x64xbf16>, vector<16x64xf32> -> vector<16x64xf32>
    %78 = vector.broadcast %30 : vector<1x64xf32> to vector<16x64xf32>
    %79 = arith.addf %77, %78 : vector<16x64xf32>
    %cst_62 = arith.constant dense<0.000000e+00> : vector<16x64xf32>
    %80 = tpu.matmul %73, %32, %cst_62 {dimension_numbers = #tpu.dot_dimension_numbers<[1], [0], [0], [1], [0, 0, 1, 1], [], []>} : vector<16x64xbf16>, vector<64x64xbf16>, vector<16x64xf32> -> vector<16x64xf32>
    %81 = vector.broadcast %34 : vector<1x64xf32> to vector<16x64xf32>
    %82 = arith.addf %80, %81 : vector<16x64xf32>
    %83 = vector.shape_cast %76 : vector<16x64xf32> to vector<2x8x64xf32>
    %84 = vector.shape_cast %79 : vector<16x64xf32> to vector<2x8x64xf32>
    %85 = vector.shape_cast %82 : vector<16x64xf32> to vector<2x8x64xf32>
    %cst_63 = arith.constant 0.000000e+00 : f32
    %86 = vector.broadcast %cst_63 : f32 to vector<16x64xf32>
    %87 = vector.extract_strided_slice %83 {offsets = [0, 0, 0], sizes = [2, 8, 16], strides = [1, 1, 1]} : vector<2x8x64xf32> to vector<2x8x16xf32>
    %88 = arith.truncf %87 : vector<2x8x16xf32> to vector<2x8x16xbf16>
    %89 = vector.extract_strided_slice %84 {offsets = [0, 0, 0], sizes = [2, 8, 16], strides = [1, 1, 1]} : vector<2x8x64xf32> to vector<2x8x16xf32>
    %90 = arith.truncf %89 : vector<2x8x16xf32> to vector<2x8x16xbf16>
    %91 = vector.extract_strided_slice %85 {offsets = [0, 0, 0], sizes = [2, 8, 16], strides = [1, 1, 1]} : vector<2x8x64xf32> to vector<2x8x16xf32>
    %92 = arith.truncf %91 : vector<2x8x16xf32> to vector<2x8x16xbf16>
    "tpu.trace_start"() <{level = 10 : i32, message = "bqd,bkd->bqk"}> : () -> ()
    %cst_64 = arith.constant dense<0.000000e+00> : vector<2x8x8xf32>
    %93 = tpu.matmul %88, %90, %cst_64 {dimension_numbers = #tpu.dot_dimension_numbers<[2], [2], [1], [1], [0, 0, 0, 1, 1, 1], [0], [0]>} : vector<2x8x16xbf16>, vector<2x8x16xbf16>, vector<2x8x8xf32> -> vector<2x8x8xf32>
    "tpu.trace_stop"() : () -> ()
    %cst_65 = arith.constant 2.500000e-01 : f32
    %94 = vector.broadcast %cst_65 : f32 to vector<2x8x8xf32>
    %95 = arith.mulf %93, %94 : vector<2x8x8xf32>
    %cst_66 = arith.constant -1.000000e+30 : f32
    %96 = vector.shape_cast %18 : vector<1x8x8xi1> to vector<1x8x8xi1>
    %97 = vector.broadcast %96 : vector<1x8x8xi1> to vector<2x8x8xi1>
    %98 = vector.broadcast %cst_66 : f32 to vector<2x8x8xf32>
    %99 = arith.select %97, %95, %98 : vector<2x8x8xi1>, vector<2x8x8xf32>
    %cst_67 = arith.constant dense<0xFF800000> : vector<2x8xf32>
    %100 = vector.multi_reduction <maximumf>, %99, %cst_67 [2] : vector<2x8x8xf32> to vector<2x8xf32>
    %101 = vector.shape_cast %100 : vector<2x8xf32> to vector<2x8x1xf32>
    %102 = vector.broadcast %101 : vector<2x8x1xf32> to vector<2x8x8xf32>
    %103 = arith.subf %99, %102 : vector<2x8x8xf32>
    %104 = math.exp %103 : vector<2x8x8xf32>
    %cst_68 = arith.constant dense<0.000000e+00> : vector<2x8xf32>
    %105 = vector.multi_reduction <add>, %104, %cst_68 [2] : vector<2x8x8xf32> to vector<2x8xf32>
    %106 = vector.shape_cast %105 : vector<2x8xf32> to vector<2x8x1xf32>
    %107 = tpu.reciprocal %106 {approx = true} : vector<2x8x1xf32> -> vector<2x8x1xf32>
    %108 = vector.broadcast %107 : vector<2x8x1xf32> to vector<2x8x8xf32>
    %109 = arith.mulf %104, %108 : vector<2x8x8xf32>
    %110 = arith.truncf %109 : vector<2x8x8xf32> to vector<2x8x8xbf16>
    "tpu.trace_start"() <{level = 10 : i32, message = "bqk,bkd->bqd"}> : () -> ()
    %cst_69 = arith.constant dense<0.000000e+00> : vector<2x8x16xf32>
    %111 = tpu.matmul %110, %92, %cst_69 {dimension_numbers = #tpu.dot_dimension_numbers<[2], [1], [1], [2], [0, 0, 0, 1, 1, 2], [0], [0]>} : vector<2x8x8xbf16>, vector<2x8x16xbf16>, vector<2x8x16xf32> -> vector<2x8x16xf32>
    "tpu.trace_stop"() : () -> ()
    %112 = vector.shape_cast %111 : vector<2x8x16xf32> to vector<16x16xf32>
    %113 = arith.truncf %112 : vector<16x16xf32> to vector<16x16xbf16>
    %114 = vector.extract_strided_slice %36 {offsets = [0, 0], sizes = [16, 64], strides = [1, 1]} : vector<64x64xbf16> to vector<16x64xbf16>
    %cst_70 = arith.constant dense<0.000000e+00> : vector<16x64xf32>
    %115 = tpu.matmul %113, %114, %cst_70 {dimension_numbers = #tpu.dot_dimension_numbers<[1], [0], [0], [1], [0, 0, 1, 1], [], []>} : vector<16x16xbf16>, vector<16x64xbf16>, vector<16x64xf32> -> vector<16x64xf32>
    %116 = arith.addf %86, %115 : vector<16x64xf32>
    %117 = vector.extract_strided_slice %83 {offsets = [0, 0, 16], sizes = [2, 8, 16], strides = [1, 1, 1]} : vector<2x8x64xf32> to vector<2x8x16xf32>
    %118 = arith.truncf %117 : vector<2x8x16xf32> to vector<2x8x16xbf16>
    %119 = vector.extract_strided_slice %84 {offsets = [0, 0, 16], sizes = [2, 8, 16], strides = [1, 1, 1]} : vector<2x8x64xf32> to vector<2x8x16xf32>
    %120 = arith.truncf %119 : vector<2x8x16xf32> to vector<2x8x16xbf16>
    %121 = vector.extract_strided_slice %85 {offsets = [0, 0, 16], sizes = [2, 8, 16], strides = [1, 1, 1]} : vector<2x8x64xf32> to vector<2x8x16xf32>
    %122 = arith.truncf %121 : vector<2x8x16xf32> to vector<2x8x16xbf16>
    "tpu.trace_start"() <{level = 10 : i32, message = "bqd,bkd->bqk"}> : () -> ()
    %cst_71 = arith.constant dense<0.000000e+00> : vector<2x8x8xf32>
    %123 = tpu.matmul %118, %120, %cst_71 {dimension_numbers = #tpu.dot_dimension_numbers<[2], [2], [1], [1], [0, 0, 0, 1, 1, 1], [0], [0]>} : vector<2x8x16xbf16>, vector<2x8x16xbf16>, vector<2x8x8xf32> -> vector<2x8x8xf32>
    "tpu.trace_stop"() : () -> ()
    %cst_72 = arith.constant 2.500000e-01 : f32
    %124 = vector.broadcast %cst_72 : f32 to vector<2x8x8xf32>
    %125 = arith.mulf %123, %124 : vector<2x8x8xf32>
    %cst_73 = arith.constant -1.000000e+30 : f32
    %126 = vector.shape_cast %18 : vector<1x8x8xi1> to vector<1x8x8xi1>
    %127 = vector.broadcast %126 : vector<1x8x8xi1> to vector<2x8x8xi1>
    %128 = vector.broadcast %cst_73 : f32 to vector<2x8x8xf32>
    %129 = arith.select %127, %125, %128 : vector<2x8x8xi1>, vector<2x8x8xf32>
    %cst_74 = arith.constant dense<0xFF800000> : vector<2x8xf32>
    %130 = vector.multi_reduction <maximumf>, %129, %cst_74 [2] : vector<2x8x8xf32> to vector<2x8xf32>
    %131 = vector.shape_cast %130 : vector<2x8xf32> to vector<2x8x1xf32>
    %132 = vector.broadcast %131 : vector<2x8x1xf32> to vector<2x8x8xf32>
    %133 = arith.subf %129, %132 : vector<2x8x8xf32>
    %134 = math.exp %133 : vector<2x8x8xf32>
    %cst_75 = arith.constant dense<0.000000e+00> : vector<2x8xf32>
    %135 = vector.multi_reduction <add>, %134, %cst_75 [2] : vector<2x8x8xf32> to vector<2x8xf32>
    %136 = vector.shape_cast %135 : vector<2x8xf32> to vector<2x8x1xf32>
    %137 = tpu.reciprocal %136 {approx = true} : vector<2x8x1xf32> -> vector<2x8x1xf32>
    %138 = vector.broadcast %137 : vector<2x8x1xf32> to vector<2x8x8xf32>
    %139 = arith.mulf %134, %138 : vector<2x8x8xf32>
    %140 = arith.truncf %139 : vector<2x8x8xf32> to vector<2x8x8xbf16>
    "tpu.trace_start"() <{level = 10 : i32, message = "bqk,bkd->bqd"}> : () -> ()
    %cst_76 = arith.constant dense<0.000000e+00> : vector<2x8x16xf32>
    %141 = tpu.matmul %140, %122, %cst_76 {dimension_numbers = #tpu.dot_dimension_numbers<[2], [1], [1], [2], [0, 0, 0, 1, 1, 2], [0], [0]>} : vector<2x8x8xbf16>, vector<2x8x16xbf16>, vector<2x8x16xf32> -> vector<2x8x16xf32>
    "tpu.trace_stop"() : () -> ()
    %142 = vector.shape_cast %141 : vector<2x8x16xf32> to vector<16x16xf32>
    %143 = arith.truncf %142 : vector<16x16xf32> to vector<16x16xbf16>
    %144 = vector.extract_strided_slice %36 {offsets = [16, 0], sizes = [16, 64], strides = [1, 1]} : vector<64x64xbf16> to vector<16x64xbf16>
    %cst_77 = arith.constant dense<0.000000e+00> : vector<16x64xf32>
    %145 = tpu.matmul %143, %144, %cst_77 {dimension_numbers = #tpu.dot_dimension_numbers<[1], [0], [0], [1], [0, 0, 1, 1], [], []>} : vector<16x16xbf16>, vector<16x64xbf16>, vector<16x64xf32> -> vector<16x64xf32>
    %146 = arith.addf %116, %145 : vector<16x64xf32>
    %147 = vector.extract_strided_slice %83 {offsets = [0, 0, 32], sizes = [2, 8, 16], strides = [1, 1, 1]} : vector<2x8x64xf32> to vector<2x8x16xf32>
    %148 = arith.truncf %147 : vector<2x8x16xf32> to vector<2x8x16xbf16>
    %149 = vector.extract_strided_slice %84 {offsets = [0, 0, 32], sizes = [2, 8, 16], strides = [1, 1, 1]} : vector<2x8x64xf32> to vector<2x8x16xf32>
    %150 = arith.truncf %149 : vector<2x8x16xf32> to vector<2x8x16xbf16>
    %151 = vector.extract_strided_slice %85 {offsets = [0, 0, 32], sizes = [2, 8, 16], strides = [1, 1, 1]} : vector<2x8x64xf32> to vector<2x8x16xf32>
    %152 = arith.truncf %151 : vector<2x8x16xf32> to vector<2x8x16xbf16>
    "tpu.trace_start"() <{level = 10 : i32, message = "bqd,bkd->bqk"}> : () -> ()
    %cst_78 = arith.constant dense<0.000000e+00> : vector<2x8x8xf32>
    %153 = tpu.matmul %148, %150, %cst_78 {dimension_numbers = #tpu.dot_dimension_numbers<[2], [2], [1], [1], [0, 0, 0, 1, 1, 1], [0], [0]>} : vector<2x8x16xbf16>, vector<2x8x16xbf16>, vector<2x8x8xf32> -> vector<2x8x8xf32>
    "tpu.trace_stop"() : () -> ()
    %cst_79 = arith.constant 2.500000e-01 : f32
    %154 = vector.broadcast %cst_79 : f32 to vector<2x8x8xf32>
    %155 = arith.mulf %153, %154 : vector<2x8x8xf32>
    %cst_80 = arith.constant -1.000000e+30 : f32
    %156 = vector.shape_cast %18 : vector<1x8x8xi1> to vector<1x8x8xi1>
    %157 = vector.broadcast %156 : vector<1x8x8xi1> to vector<2x8x8xi1>
    %158 = vector.broadcast %cst_80 : f32 to vector<2x8x8xf32>
    %159 = arith.select %157, %155, %158 : vector<2x8x8xi1>, vector<2x8x8xf32>
    %cst_81 = arith.constant dense<0xFF800000> : vector<2x8xf32>
    %160 = vector.multi_reduction <maximumf>, %159, %cst_81 [2] : vector<2x8x8xf32> to vector<2x8xf32>
    %161 = vector.shape_cast %160 : vector<2x8xf32> to vector<2x8x1xf32>
    %162 = vector.broadcast %161 : vector<2x8x1xf32> to vector<2x8x8xf32>
    %163 = arith.subf %159, %162 : vector<2x8x8xf32>
    %164 = math.exp %163 : vector<2x8x8xf32>
    %cst_82 = arith.constant dense<0.000000e+00> : vector<2x8xf32>
    %165 = vector.multi_reduction <add>, %164, %cst_82 [2] : vector<2x8x8xf32> to vector<2x8xf32>
    %166 = vector.shape_cast %165 : vector<2x8xf32> to vector<2x8x1xf32>
    %167 = tpu.reciprocal %166 {approx = true} : vector<2x8x1xf32> -> vector<2x8x1xf32>
    %168 = vector.broadcast %167 : vector<2x8x1xf32> to vector<2x8x8xf32>
    %169 = arith.mulf %164, %168 : vector<2x8x8xf32>
    %170 = arith.truncf %169 : vector<2x8x8xf32> to vector<2x8x8xbf16>
    "tpu.trace_start"() <{level = 10 : i32, message = "bqk,bkd->bqd"}> : () -> ()
    %cst_83 = arith.constant dense<0.000000e+00> : vector<2x8x16xf32>
    %171 = tpu.matmul %170, %152, %cst_83 {dimension_numbers = #tpu.dot_dimension_numbers<[2], [1], [1], [2], [0, 0, 0, 1, 1, 2], [0], [0]>} : vector<2x8x8xbf16>, vector<2x8x16xbf16>, vector<2x8x16xf32> -> vector<2x8x16xf32>
    "tpu.trace_stop"() : () -> ()
    %172 = vector.shape_cast %171 : vector<2x8x16xf32> to vector<16x16xf32>
    %173 = arith.truncf %172 : vector<16x16xf32> to vector<16x16xbf16>
    %174 = vector.extract_strided_slice %36 {offsets = [32, 0], sizes = [16, 64], strides = [1, 1]} : vector<64x64xbf16> to vector<16x64xbf16>
    %cst_84 = arith.constant dense<0.000000e+00> : vector<16x64xf32>
    %175 = tpu.matmul %173, %174, %cst_84 {dimension_numbers = #tpu.dot_dimension_numbers<[1], [0], [0], [1], [0, 0, 1, 1], [], []>} : vector<16x16xbf16>, vector<16x64xbf16>, vector<16x64xf32> -> vector<16x64xf32>
    %176 = arith.addf %146, %175 : vector<16x64xf32>
    %177 = vector.extract_strided_slice %83 {offsets = [0, 0, 48], sizes = [2, 8, 16], strides = [1, 1, 1]} : vector<2x8x64xf32> to vector<2x8x16xf32>
    %178 = arith.truncf %177 : vector<2x8x16xf32> to vector<2x8x16xbf16>
    %179 = vector.extract_strided_slice %84 {offsets = [0, 0, 48], sizes = [2, 8, 16], strides = [1, 1, 1]} : vector<2x8x64xf32> to vector<2x8x16xf32>
    %180 = arith.truncf %179 : vector<2x8x16xf32> to vector<2x8x16xbf16>
    %181 = vector.extract_strided_slice %85 {offsets = [0, 0, 48], sizes = [2, 8, 16], strides = [1, 1, 1]} : vector<2x8x64xf32> to vector<2x8x16xf32>
    %182 = arith.truncf %181 : vector<2x8x16xf32> to vector<2x8x16xbf16>
    "tpu.trace_start"() <{level = 10 : i32, message = "bqd,bkd->bqk"}> : () -> ()
    %cst_85 = arith.constant dense<0.000000e+00> : vector<2x8x8xf32>
    %183 = tpu.matmul %178, %180, %cst_85 {dimension_numbers = #tpu.dot_dimension_numbers<[2], [2], [1], [1], [0, 0, 0, 1, 1, 1], [0], [0]>} : vector<2x8x16xbf16>, vector<2x8x16xbf16>, vector<2x8x8xf32> -> vector<2x8x8xf32>
    "tpu.trace_stop"() : () -> ()
    %cst_86 = arith.constant 2.500000e-01 : f32
    %184 = vector.broadcast %cst_86 : f32 to vector<2x8x8xf32>
    %185 = arith.mulf %183, %184 : vector<2x8x8xf32>
    %cst_87 = arith.constant -1.000000e+30 : f32
    %186 = vector.shape_cast %18 : vector<1x8x8xi1> to vector<1x8x8xi1>
    %187 = vector.broadcast %186 : vector<1x8x8xi1> to vector<2x8x8xi1>
    %188 = vector.broadcast %cst_87 : f32 to vector<2x8x8xf32>
    %189 = arith.select %187, %185, %188 : vector<2x8x8xi1>, vector<2x8x8xf32>
    %cst_88 = arith.constant dense<0xFF800000> : vector<2x8xf32>
    %190 = vector.multi_reduction <maximumf>, %189, %cst_88 [2] : vector<2x8x8xf32> to vector<2x8xf32>
    %191 = vector.shape_cast %190 : vector<2x8xf32> to vector<2x8x1xf32>
    %192 = vector.broadcast %191 : vector<2x8x1xf32> to vector<2x8x8xf32>
    %193 = arith.subf %189, %192 : vector<2x8x8xf32>
    %194 = math.exp %193 : vector<2x8x8xf32>
    %cst_89 = arith.constant dense<0.000000e+00> : vector<2x8xf32>
    %195 = vector.multi_reduction <add>, %194, %cst_89 [2] : vector<2x8x8xf32> to vector<2x8xf32>
    %196 = vector.shape_cast %195 : vector<2x8xf32> to vector<2x8x1xf32>
    %197 = tpu.reciprocal %196 {approx = true} : vector<2x8x1xf32> -> vector<2x8x1xf32>
    %198 = vector.broadcast %197 : vector<2x8x1xf32> to vector<2x8x8xf32>
    %199 = arith.mulf %194, %198 : vector<2x8x8xf32>
    %200 = arith.truncf %199 : vector<2x8x8xf32> to vector<2x8x8xbf16>
    "tpu.trace_start"() <{level = 10 : i32, message = "bqk,bkd->bqd"}> : () -> ()
    %cst_90 = arith.constant dense<0.000000e+00> : vector<2x8x16xf32>
    %201 = tpu.matmul %200, %182, %cst_90 {dimension_numbers = #tpu.dot_dimension_numbers<[2], [1], [1], [2], [0, 0, 0, 1, 1, 2], [0], [0]>} : vector<2x8x8xbf16>, vector<2x8x16xbf16>, vector<2x8x16xf32> -> vector<2x8x16xf32>
    "tpu.trace_stop"() : () -> ()
    %202 = vector.shape_cast %201 : vector<2x8x16xf32> to vector<16x16xf32>
    %203 = arith.truncf %202 : vector<16x16xf32> to vector<16x16xbf16>
    %204 = vector.extract_strided_slice %36 {offsets = [48, 0], sizes = [16, 64], strides = [1, 1]} : vector<64x64xbf16> to vector<16x64xbf16>
    %cst_91 = arith.constant dense<0.000000e+00> : vector<16x64xf32>
    %205 = tpu.matmul %203, %204, %cst_91 {dimension_numbers = #tpu.dot_dimension_numbers<[1], [0], [0], [1], [0, 0, 1, 1], [], []>} : vector<16x16xbf16>, vector<16x64xbf16>, vector<16x64xf32> -> vector<16x64xf32>
    %206 = arith.addf %176, %205 : vector<16x64xf32>
    %207 = arith.addf %14, %206 : vector<16x64xf32>
    %208 = vector.broadcast %38 : vector<1x64xf32> to vector<16x64xf32>
    %209 = arith.addf %207, %208 : vector<16x64xf32>
    %cst_92 = arith.constant dense<0.000000e+00> : vector<16xf32>
    %210 = vector.multi_reduction <add>, %209, %cst_92 [1] : vector<16x64xf32> to vector<16xf32>
    %211 = vector.shape_cast %210 : vector<16xf32> to vector<16x1xf32>
    %cst_93 = arith.constant 6.400000e+01 : f32
    %212 = vector.broadcast %cst_93 : f32 to vector<16x1xf32>
    %213 = arith.divf %211, %212 : vector<16x1xf32>
    %214 = vector.broadcast %213 : vector<16x1xf32> to vector<16x64xf32>
    %215 = arith.subf %209, %214 : vector<16x64xf32>
    %216 = arith.mulf %215, %215 : vector<16x64xf32>
    %cst_94 = arith.constant dense<0.000000e+00> : vector<16xf32>
    %217 = vector.multi_reduction <add>, %216, %cst_94 [1] : vector<16x64xf32> to vector<16xf32>
    %218 = vector.shape_cast %217 : vector<16xf32> to vector<16x1xf32>
    %cst_95 = arith.constant 6.400000e+01 : f32
    %219 = vector.broadcast %cst_95 : f32 to vector<16x1xf32>
    %220 = arith.divf %218, %219 : vector<16x1xf32>
    %221 = vector.broadcast %213 : vector<16x1xf32> to vector<16x64xf32>
    %222 = arith.subf %209, %221 : vector<16x64xf32>
    %cst_96 = arith.constant 9.99999974E-6 : f32
    %223 = vector.broadcast %cst_96 : f32 to vector<16x1xf32>
    %224 = arith.addf %220, %223 : vector<16x1xf32>
    %225 = math.rsqrt %224 : vector<16x1xf32>
    %226 = vector.broadcast %225 : vector<16x1xf32> to vector<16x64xf32>
    %227 = arith.mulf %222, %226 : vector<16x64xf32>
    %228 = vector.broadcast %40 : vector<1x64xf32> to vector<16x64xf32>
    %229 = arith.mulf %227, %228 : vector<16x64xf32>
    %230 = vector.broadcast %42 : vector<1x64xf32> to vector<16x64xf32>
    %231 = arith.addf %229, %230 : vector<16x64xf32>
    %232 = arith.truncf %231 : vector<16x64xf32> to vector<16x64xbf16>
    %cst_97 = arith.constant dense<0.000000e+00> : vector<16x256xf32>
    %233 = tpu.matmul %232, %44, %cst_97 {dimension_numbers = #tpu.dot_dimension_numbers<[1], [0], [0], [1], [0, 0, 1, 1], [], []>} : vector<16x64xbf16>, vector<64x256xbf16>, vector<16x256xf32> -> vector<16x256xf32>
    %234 = vector.broadcast %46 : vector<1x256xf32> to vector<16x256xf32>
    %235 = arith.addf %233, %234 : vector<16x256xf32>
    %cst_98 = arith.constant 5.000000e-01 : f32
    %236 = vector.broadcast %cst_98 : f32 to vector<16x256xf32>
    %237 = arith.mulf %236, %235 : vector<16x256xf32>
    %cst_99 = arith.constant 4.471500e-02 : f32
    %238 = vector.broadcast %cst_99 : f32 to vector<16x256xf32>
    %239 = arith.mulf %238, %235 : vector<16x256xf32>
    %240 = arith.mulf %239, %235 : vector<16x256xf32>
    %241 = arith.mulf %240, %235 : vector<16x256xf32>
    %242 = arith.addf %235, %241 : vector<16x256xf32>
    %cst_100 = arith.constant 0.797884583 : f32
    %243 = vector.broadcast %cst_100 : f32 to vector<16x256xf32>
    %244 = arith.mulf %243, %242 : vector<16x256xf32>
    %245 = math.tanh %244 : vector<16x256xf32>
    %cst_101 = arith.constant 1.000000e+00 : f32
    %246 = vector.broadcast %cst_101 : f32 to vector<16x256xf32>
    %247 = arith.addf %246, %245 : vector<16x256xf32>
    %248 = arith.mulf %237, %247 : vector<16x256xf32>
    %249 = arith.truncf %248 : vector<16x256xf32> to vector<16x256xbf16>
    %cst_102 = arith.constant dense<0.000000e+00> : vector<16x64xf32>
    %250 = tpu.matmul %249, %48, %cst_102 {dimension_numbers = #tpu.dot_dimension_numbers<[1], [0], [0], [1], [0, 0, 1, 1], [], []>} : vector<16x256xbf16>, vector<256x64xbf16>, vector<16x64xf32> -> vector<16x64xf32>
    %251 = arith.addf %209, %250 : vector<16x64xf32>
    %252 = vector.broadcast %50 : vector<1x64xf32> to vector<16x64xf32>
    %253 = arith.addf %251, %252 : vector<16x64xf32>
    %c1 = arith.constant 1 : index
    %c0_103 = arith.constant 0 : index
    %c0_104 = arith.constant 0 : index
    %254 = vector.load %arg4[%c1, %c0_103, %c0_104] : memref<2x1x64xf32, #tpu.memory_space<vmem>>, vector<1x1x64xf32>
    %255 = vector.shape_cast %254 : vector<1x1x64xf32> to vector<1x64xf32>
    %c1_105 = arith.constant 1 : index
    %c0_106 = arith.constant 0 : index
    %c0_107 = arith.constant 0 : index
    %256 = vector.load %arg5[%c1_105, %c0_106, %c0_107] : memref<2x1x64xf32, #tpu.memory_space<vmem>>, vector<1x1x64xf32>
    %257 = vector.shape_cast %256 : vector<1x1x64xf32> to vector<1x64xf32>
    %c1_108 = arith.constant 1 : index
    %c0_109 = arith.constant 0 : index
    %c0_110 = arith.constant 0 : index
    %258 = vector.load %arg6[%c1_108, %c0_109, %c0_110] : memref<2x64x64xbf16, #tpu.memory_space<vmem>>, vector<1x64x64xbf16>
    %259 = vector.shape_cast %258 : vector<1x64x64xbf16> to vector<64x64xbf16>
    %c1_111 = arith.constant 1 : index
    %c0_112 = arith.constant 0 : index
    %c0_113 = arith.constant 0 : index
    %260 = vector.load %arg7[%c1_111, %c0_112, %c0_113] : memref<2x1x64xf32, #tpu.memory_space<vmem>>, vector<1x1x64xf32>
    %261 = vector.shape_cast %260 : vector<1x1x64xf32> to vector<1x64xf32>
    %c1_114 = arith.constant 1 : index
    %c0_115 = arith.constant 0 : index
    %c0_116 = arith.constant 0 : index
    %262 = vector.load %arg8[%c1_114, %c0_115, %c0_116] : memref<2x64x64xbf16, #tpu.memory_space<vmem>>, vector<1x64x64xbf16>
    %263 = vector.shape_cast %262 : vector<1x64x64xbf16> to vector<64x64xbf16>
    %c1_117 = arith.constant 1 : index
    %c0_118 = arith.constant 0 : index
    %c0_119 = arith.constant 0 : index
    %264 = vector.load %arg9[%c1_117, %c0_118, %c0_119] : memref<2x1x64xf32, #tpu.memory_space<vmem>>, vector<1x1x64xf32>
    %265 = vector.shape_cast %264 : vector<1x1x64xf32> to vector<1x64xf32>
    %c1_120 = arith.constant 1 : index
    %c0_121 = arith.constant 0 : index
    %c0_122 = arith.constant 0 : index
    %266 = vector.load %arg10[%c1_120, %c0_121, %c0_122] : memref<2x64x64xbf16, #tpu.memory_space<vmem>>, vector<1x64x64xbf16>
    %267 = vector.shape_cast %266 : vector<1x64x64xbf16> to vector<64x64xbf16>
    %c1_123 = arith.constant 1 : index
    %c0_124 = arith.constant 0 : index
    %c0_125 = arith.constant 0 : index
    %268 = vector.load %arg11[%c1_123, %c0_124, %c0_125] : memref<2x1x64xf32, #tpu.memory_space<vmem>>, vector<1x1x64xf32>
    %269 = vector.shape_cast %268 : vector<1x1x64xf32> to vector<1x64xf32>
    %c1_126 = arith.constant 1 : index
    %c0_127 = arith.constant 0 : index
    %c0_128 = arith.constant 0 : index
    %270 = vector.load %arg12[%c1_126, %c0_127, %c0_128] : memref<2x64x64xbf16, #tpu.memory_space<vmem>>, vector<1x64x64xbf16>
    %271 = vector.shape_cast %270 : vector<1x64x64xbf16> to vector<64x64xbf16>
    %c1_129 = arith.constant 1 : index
    %c0_130 = arith.constant 0 : index
    %c0_131 = arith.constant 0 : index
    %272 = vector.load %arg13[%c1_129, %c0_130, %c0_131] : memref<2x1x64xf32, #tpu.memory_space<vmem>>, vector<1x1x64xf32>
    %273 = vector.shape_cast %272 : vector<1x1x64xf32> to vector<1x64xf32>
    %c1_132 = arith.constant 1 : index
    %c0_133 = arith.constant 0 : index
    %c0_134 = arith.constant 0 : index
    %274 = vector.load %arg14[%c1_132, %c0_133, %c0_134] : memref<2x1x64xf32, #tpu.memory_space<vmem>>, vector<1x1x64xf32>
    %275 = vector.shape_cast %274 : vector<1x1x64xf32> to vector<1x64xf32>
    %c1_135 = arith.constant 1 : index
    %c0_136 = arith.constant 0 : index
    %c0_137 = arith.constant 0 : index
    %276 = vector.load %arg15[%c1_135, %c0_136, %c0_137] : memref<2x1x64xf32, #tpu.memory_space<vmem>>, vector<1x1x64xf32>
    %277 = vector.shape_cast %276 : vector<1x1x64xf32> to vector<1x64xf32>
    %c1_138 = arith.constant 1 : index
    %c0_139 = arith.constant 0 : index
    %c0_140 = arith.constant 0 : index
    %278 = vector.load %arg16[%c1_138, %c0_139, %c0_140] : memref<2x64x256xbf16, #tpu.memory_space<vmem>>, vector<1x64x256xbf16>
    %279 = vector.shape_cast %278 : vector<1x64x256xbf16> to vector<64x256xbf16>
    %c1_141 = arith.constant 1 : index
    %c0_142 = arith.constant 0 : index
    %c0_143 = arith.constant 0 : index
    %280 = vector.load %arg17[%c1_141, %c0_142, %c0_143] : memref<2x1x256xf32, #tpu.memory_space<vmem>>, vector<1x1x256xf32>
    %281 = vector.shape_cast %280 : vector<1x1x256xf32> to vector<1x256xf32>
    %c1_144 = arith.constant 1 : index
    %c0_145 = arith.constant 0 : index
    %c0_146 = arith.constant 0 : index
    %282 = vector.load %arg18[%c1_144, %c0_145, %c0_146] : memref<2x256x64xbf16, #tpu.memory_space<vmem>>, vector<1x256x64xbf16>
    %283 = vector.shape_cast %282 : vector<1x256x64xbf16> to vector<256x64xbf16>
    %c1_147 = arith.constant 1 : index
    %c0_148 = arith.constant 0 : index
    %c0_149 = arith.constant 0 : index
    %284 = vector.load %arg19[%c1_147, %c0_148, %c0_149] : memref<2x1x64xf32, #tpu.memory_space<vmem>>, vector<1x1x64xf32>
    %285 = vector.shape_cast %284 : vector<1x1x64xf32> to vector<1x64xf32>
    %cst_150 = arith.constant dense<0.000000e+00> : vector<16xf32>
    %286 = vector.multi_reduction <add>, %253, %cst_150 [1] : vector<16x64xf32> to vector<16xf32>
    %287 = vector.shape_cast %286 : vector<16xf32> to vector<16x1xf32>
    %cst_151 = arith.constant 6.400000e+01 : f32
    %288 = vector.broadcast %cst_151 : f32 to vector<16x1xf32>
    %289 = arith.divf %287, %288 : vector<16x1xf32>
    %290 = vector.broadcast %289 : vector<16x1xf32> to vector<16x64xf32>
    %291 = arith.subf %253, %290 : vector<16x64xf32>
    %292 = arith.mulf %291, %291 : vector<16x64xf32>
    %cst_152 = arith.constant dense<0.000000e+00> : vector<16xf32>
    %293 = vector.multi_reduction <add>, %292, %cst_152 [1] : vector<16x64xf32> to vector<16xf32>
    %294 = vector.shape_cast %293 : vector<16xf32> to vector<16x1xf32>
    %cst_153 = arith.constant 6.400000e+01 : f32
    %295 = vector.broadcast %cst_153 : f32 to vector<16x1xf32>
    %296 = arith.divf %294, %295 : vector<16x1xf32>
    %297 = vector.broadcast %289 : vector<16x1xf32> to vector<16x64xf32>
    %298 = arith.subf %253, %297 : vector<16x64xf32>
    %cst_154 = arith.constant 9.99999974E-6 : f32
    %299 = vector.broadcast %cst_154 : f32 to vector<16x1xf32>
    %300 = arith.addf %296, %299 : vector<16x1xf32>
    %301 = math.rsqrt %300 : vector<16x1xf32>
    %302 = vector.broadcast %301 : vector<16x1xf32> to vector<16x64xf32>
    %303 = arith.mulf %298, %302 : vector<16x64xf32>
    %304 = vector.broadcast %255 : vector<1x64xf32> to vector<16x64xf32>
    %305 = arith.mulf %303, %304 : vector<16x64xf32>
    %306 = vector.broadcast %257 : vector<1x64xf32> to vector<16x64xf32>
    %307 = arith.addf %305, %306 : vector<16x64xf32>
    %308 = arith.truncf %307 : vector<16x64xf32> to vector<16x64xbf16>
    %cst_155 = arith.constant dense<0.000000e+00> : vector<16x64xf32>
    %309 = tpu.matmul %308, %259, %cst_155 {dimension_numbers = #tpu.dot_dimension_numbers<[1], [0], [0], [1], [0, 0, 1, 1], [], []>} : vector<16x64xbf16>, vector<64x64xbf16>, vector<16x64xf32> -> vector<16x64xf32>
    %310 = vector.broadcast %261 : vector<1x64xf32> to vector<16x64xf32>
    %311 = arith.addf %309, %310 : vector<16x64xf32>
    %cst_156 = arith.constant dense<0.000000e+00> : vector<16x64xf32>
    %312 = tpu.matmul %308, %263, %cst_156 {dimension_numbers = #tpu.dot_dimension_numbers<[1], [0], [0], [1], [0, 0, 1, 1], [], []>} : vector<16x64xbf16>, vector<64x64xbf16>, vector<16x64xf32> -> vector<16x64xf32>
    %313 = vector.broadcast %265 : vector<1x64xf32> to vector<16x64xf32>
    %314 = arith.addf %312, %313 : vector<16x64xf32>
    %cst_157 = arith.constant dense<0.000000e+00> : vector<16x64xf32>
    %315 = tpu.matmul %308, %267, %cst_157 {dimension_numbers = #tpu.dot_dimension_numbers<[1], [0], [0], [1], [0, 0, 1, 1], [], []>} : vector<16x64xbf16>, vector<64x64xbf16>, vector<16x64xf32> -> vector<16x64xf32>
    %316 = vector.broadcast %269 : vector<1x64xf32> to vector<16x64xf32>
    %317 = arith.addf %315, %316 : vector<16x64xf32>
    %318 = vector.shape_cast %311 : vector<16x64xf32> to vector<2x8x64xf32>
    %319 = vector.shape_cast %314 : vector<16x64xf32> to vector<2x8x64xf32>
    %320 = vector.shape_cast %317 : vector<16x64xf32> to vector<2x8x64xf32>
    %cst_158 = arith.constant 0.000000e+00 : f32
    %321 = vector.broadcast %cst_158 : f32 to vector<16x64xf32>
    %322 = vector.extract_strided_slice %318 {offsets = [0, 0, 0], sizes = [2, 8, 16], strides = [1, 1, 1]} : vector<2x8x64xf32> to vector<2x8x16xf32>
    %323 = arith.truncf %322 : vector<2x8x16xf32> to vector<2x8x16xbf16>
    %324 = vector.extract_strided_slice %319 {offsets = [0, 0, 0], sizes = [2, 8, 16], strides = [1, 1, 1]} : vector<2x8x64xf32> to vector<2x8x16xf32>
    %325 = arith.truncf %324 : vector<2x8x16xf32> to vector<2x8x16xbf16>
    %326 = vector.extract_strided_slice %320 {offsets = [0, 0, 0], sizes = [2, 8, 16], strides = [1, 1, 1]} : vector<2x8x64xf32> to vector<2x8x16xf32>
    %327 = arith.truncf %326 : vector<2x8x16xf32> to vector<2x8x16xbf16>
    "tpu.trace_start"() <{level = 10 : i32, message = "bqd,bkd->bqk"}> : () -> ()
    %cst_159 = arith.constant dense<0.000000e+00> : vector<2x8x8xf32>
    %328 = tpu.matmul %323, %325, %cst_159 {dimension_numbers = #tpu.dot_dimension_numbers<[2], [2], [1], [1], [0, 0, 0, 1, 1, 1], [0], [0]>} : vector<2x8x16xbf16>, vector<2x8x16xbf16>, vector<2x8x8xf32> -> vector<2x8x8xf32>
    "tpu.trace_stop"() : () -> ()
    %cst_160 = arith.constant 2.500000e-01 : f32
    %329 = vector.broadcast %cst_160 : f32 to vector<2x8x8xf32>
    %330 = arith.mulf %328, %329 : vector<2x8x8xf32>
    %cst_161 = arith.constant -1.000000e+30 : f32
    %331 = vector.shape_cast %18 : vector<1x8x8xi1> to vector<1x8x8xi1>
    %332 = vector.broadcast %331 : vector<1x8x8xi1> to vector<2x8x8xi1>
    %333 = vector.broadcast %cst_161 : f32 to vector<2x8x8xf32>
    %334 = arith.select %332, %330, %333 : vector<2x8x8xi1>, vector<2x8x8xf32>
    %cst_162 = arith.constant dense<0xFF800000> : vector<2x8xf32>
    %335 = vector.multi_reduction <maximumf>, %334, %cst_162 [2] : vector<2x8x8xf32> to vector<2x8xf32>
    %336 = vector.shape_cast %335 : vector<2x8xf32> to vector<2x8x1xf32>
    %337 = vector.broadcast %336 : vector<2x8x1xf32> to vector<2x8x8xf32>
    %338 = arith.subf %334, %337 : vector<2x8x8xf32>
    %339 = math.exp %338 : vector<2x8x8xf32>
    %cst_163 = arith.constant dense<0.000000e+00> : vector<2x8xf32>
    %340 = vector.multi_reduction <add>, %339, %cst_163 [2] : vector<2x8x8xf32> to vector<2x8xf32>
    %341 = vector.shape_cast %340 : vector<2x8xf32> to vector<2x8x1xf32>
    %342 = tpu.reciprocal %341 {approx = true} : vector<2x8x1xf32> -> vector<2x8x1xf32>
    %343 = vector.broadcast %342 : vector<2x8x1xf32> to vector<2x8x8xf32>
    %344 = arith.mulf %339, %343 : vector<2x8x8xf32>
    %345 = arith.truncf %344 : vector<2x8x8xf32> to vector<2x8x8xbf16>
    "tpu.trace_start"() <{level = 10 : i32, message = "bqk,bkd->bqd"}> : () -> ()
    %cst_164 = arith.constant dense<0.000000e+00> : vector<2x8x16xf32>
    %346 = tpu.matmul %345, %327, %cst_164 {dimension_numbers = #tpu.dot_dimension_numbers<[2], [1], [1], [2], [0, 0, 0, 1, 1, 2], [0], [0]>} : vector<2x8x8xbf16>, vector<2x8x16xbf16>, vector<2x8x16xf32> -> vector<2x8x16xf32>
    "tpu.trace_stop"() : () -> ()
    %347 = vector.shape_cast %346 : vector<2x8x16xf32> to vector<16x16xf32>
    %348 = arith.truncf %347 : vector<16x16xf32> to vector<16x16xbf16>
    %349 = vector.extract_strided_slice %271 {offsets = [0, 0], sizes = [16, 64], strides = [1, 1]} : vector<64x64xbf16> to vector<16x64xbf16>
    %cst_165 = arith.constant dense<0.000000e+00> : vector<16x64xf32>
    %350 = tpu.matmul %348, %349, %cst_165 {dimension_numbers = #tpu.dot_dimension_numbers<[1], [0], [0], [1], [0, 0, 1, 1], [], []>} : vector<16x16xbf16>, vector<16x64xbf16>, vector<16x64xf32> -> vector<16x64xf32>
    %351 = arith.addf %321, %350 : vector<16x64xf32>
    %352 = vector.extract_strided_slice %318 {offsets = [0, 0, 16], sizes = [2, 8, 16], strides = [1, 1, 1]} : vector<2x8x64xf32> to vector<2x8x16xf32>
    %353 = arith.truncf %352 : vector<2x8x16xf32> to vector<2x8x16xbf16>
    %354 = vector.extract_strided_slice %319 {offsets = [0, 0, 16], sizes = [2, 8, 16], strides = [1, 1, 1]} : vector<2x8x64xf32> to vector<2x8x16xf32>
    %355 = arith.truncf %354 : vector<2x8x16xf32> to vector<2x8x16xbf16>
    %356 = vector.extract_strided_slice %320 {offsets = [0, 0, 16], sizes = [2, 8, 16], strides = [1, 1, 1]} : vector<2x8x64xf32> to vector<2x8x16xf32>
    %357 = arith.truncf %356 : vector<2x8x16xf32> to vector<2x8x16xbf16>
    "tpu.trace_start"() <{level = 10 : i32, message = "bqd,bkd->bqk"}> : () -> ()
    %cst_166 = arith.constant dense<0.000000e+00> : vector<2x8x8xf32>
    %358 = tpu.matmul %353, %355, %cst_166 {dimension_numbers = #tpu.dot_dimension_numbers<[2], [2], [1], [1], [0, 0, 0, 1, 1, 1], [0], [0]>} : vector<2x8x16xbf16>, vector<2x8x16xbf16>, vector<2x8x8xf32> -> vector<2x8x8xf32>
    "tpu.trace_stop"() : () -> ()
    %cst_167 = arith.constant 2.500000e-01 : f32
    %359 = vector.broadcast %cst_167 : f32 to vector<2x8x8xf32>
    %360 = arith.mulf %358, %359 : vector<2x8x8xf32>
    %cst_168 = arith.constant -1.000000e+30 : f32
    %361 = vector.shape_cast %18 : vector<1x8x8xi1> to vector<1x8x8xi1>
    %362 = vector.broadcast %361 : vector<1x8x8xi1> to vector<2x8x8xi1>
    %363 = vector.broadcast %cst_168 : f32 to vector<2x8x8xf32>
    %364 = arith.select %362, %360, %363 : vector<2x8x8xi1>, vector<2x8x8xf32>
    %cst_169 = arith.constant dense<0xFF800000> : vector<2x8xf32>
    %365 = vector.multi_reduction <maximumf>, %364, %cst_169 [2] : vector<2x8x8xf32> to vector<2x8xf32>
    %366 = vector.shape_cast %365 : vector<2x8xf32> to vector<2x8x1xf32>
    %367 = vector.broadcast %366 : vector<2x8x1xf32> to vector<2x8x8xf32>
    %368 = arith.subf %364, %367 : vector<2x8x8xf32>
    %369 = math.exp %368 : vector<2x8x8xf32>
    %cst_170 = arith.constant dense<0.000000e+00> : vector<2x8xf32>
    %370 = vector.multi_reduction <add>, %369, %cst_170 [2] : vector<2x8x8xf32> to vector<2x8xf32>
    %371 = vector.shape_cast %370 : vector<2x8xf32> to vector<2x8x1xf32>
    %372 = tpu.reciprocal %371 {approx = true} : vector<2x8x1xf32> -> vector<2x8x1xf32>
    %373 = vector.broadcast %372 : vector<2x8x1xf32> to vector<2x8x8xf32>
    %374 = arith.mulf %369, %373 : vector<2x8x8xf32>
    %375 = arith.truncf %374 : vector<2x8x8xf32> to vector<2x8x8xbf16>
    "tpu.trace_start"() <{level = 10 : i32, message = "bqk,bkd->bqd"}> : () -> ()
    %cst_171 = arith.constant dense<0.000000e+00> : vector<2x8x16xf32>
    %376 = tpu.matmul %375, %357, %cst_171 {dimension_numbers = #tpu.dot_dimension_numbers<[2], [1], [1], [2], [0, 0, 0, 1, 1, 2], [0], [0]>} : vector<2x8x8xbf16>, vector<2x8x16xbf16>, vector<2x8x16xf32> -> vector<2x8x16xf32>
    "tpu.trace_stop"() : () -> ()
    %377 = vector.shape_cast %376 : vector<2x8x16xf32> to vector<16x16xf32>
    %378 = arith.truncf %377 : vector<16x16xf32> to vector<16x16xbf16>
    %379 = vector.extract_strided_slice %271 {offsets = [16, 0], sizes = [16, 64], strides = [1, 1]} : vector<64x64xbf16> to vector<16x64xbf16>
    %cst_172 = arith.constant dense<0.000000e+00> : vector<16x64xf32>
    %380 = tpu.matmul %378, %379, %cst_172 {dimension_numbers = #tpu.dot_dimension_numbers<[1], [0], [0], [1], [0, 0, 1, 1], [], []>} : vector<16x16xbf16>, vector<16x64xbf16>, vector<16x64xf32> -> vector<16x64xf32>
    %381 = arith.addf %351, %380 : vector<16x64xf32>
    %382 = vector.extract_strided_slice %318 {offsets = [0, 0, 32], sizes = [2, 8, 16], strides = [1, 1, 1]} : vector<2x8x64xf32> to vector<2x8x16xf32>
    %383 = arith.truncf %382 : vector<2x8x16xf32> to vector<2x8x16xbf16>
    %384 = vector.extract_strided_slice %319 {offsets = [0, 0, 32], sizes = [2, 8, 16], strides = [1, 1, 1]} : vector<2x8x64xf32> to vector<2x8x16xf32>
    %385 = arith.truncf %384 : vector<2x8x16xf32> to vector<2x8x16xbf16>
    %386 = vector.extract_strided_slice %320 {offsets = [0, 0, 32], sizes = [2, 8, 16], strides = [1, 1, 1]} : vector<2x8x64xf32> to vector<2x8x16xf32>
    %387 = arith.truncf %386 : vector<2x8x16xf32> to vector<2x8x16xbf16>
    "tpu.trace_start"() <{level = 10 : i32, message = "bqd,bkd->bqk"}> : () -> ()
    %cst_173 = arith.constant dense<0.000000e+00> : vector<2x8x8xf32>
    %388 = tpu.matmul %383, %385, %cst_173 {dimension_numbers = #tpu.dot_dimension_numbers<[2], [2], [1], [1], [0, 0, 0, 1, 1, 1], [0], [0]>} : vector<2x8x16xbf16>, vector<2x8x16xbf16>, vector<2x8x8xf32> -> vector<2x8x8xf32>
    "tpu.trace_stop"() : () -> ()
    %cst_174 = arith.constant 2.500000e-01 : f32
    %389 = vector.broadcast %cst_174 : f32 to vector<2x8x8xf32>
    %390 = arith.mulf %388, %389 : vector<2x8x8xf32>
    %cst_175 = arith.constant -1.000000e+30 : f32
    %391 = vector.shape_cast %18 : vector<1x8x8xi1> to vector<1x8x8xi1>
    %392 = vector.broadcast %391 : vector<1x8x8xi1> to vector<2x8x8xi1>
    %393 = vector.broadcast %cst_175 : f32 to vector<2x8x8xf32>
    %394 = arith.select %392, %390, %393 : vector<2x8x8xi1>, vector<2x8x8xf32>
    %cst_176 = arith.constant dense<0xFF800000> : vector<2x8xf32>
    %395 = vector.multi_reduction <maximumf>, %394, %cst_176 [2] : vector<2x8x8xf32> to vector<2x8xf32>
    %396 = vector.shape_cast %395 : vector<2x8xf32> to vector<2x8x1xf32>
    %397 = vector.broadcast %396 : vector<2x8x1xf32> to vector<2x8x8xf32>
    %398 = arith.subf %394, %397 : vector<2x8x8xf32>
    %399 = math.exp %398 : vector<2x8x8xf32>
    %cst_177 = arith.constant dense<0.000000e+00> : vector<2x8xf32>
    %400 = vector.multi_reduction <add>, %399, %cst_177 [2] : vector<2x8x8xf32> to vector<2x8xf32>
    %401 = vector.shape_cast %400 : vector<2x8xf32> to vector<2x8x1xf32>
    %402 = tpu.reciprocal %401 {approx = true} : vector<2x8x1xf32> -> vector<2x8x1xf32>
    %403 = vector.broadcast %402 : vector<2x8x1xf32> to vector<2x8x8xf32>
    %404 = arith.mulf %399, %403 : vector<2x8x8xf32>
    %405 = arith.truncf %404 : vector<2x8x8xf32> to vector<2x8x8xbf16>
    "tpu.trace_start"() <{level = 10 : i32, message = "bqk,bkd->bqd"}> : () -> ()
    %cst_178 = arith.constant dense<0.000000e+00> : vector<2x8x16xf32>
    %406 = tpu.matmul %405, %387, %cst_178 {dimension_numbers = #tpu.dot_dimension_numbers<[2], [1], [1], [2], [0, 0, 0, 1, 1, 2], [0], [0]>} : vector<2x8x8xbf16>, vector<2x8x16xbf16>, vector<2x8x16xf32> -> vector<2x8x16xf32>
    "tpu.trace_stop"() : () -> ()
    %407 = vector.shape_cast %406 : vector<2x8x16xf32> to vector<16x16xf32>
    %408 = arith.truncf %407 : vector<16x16xf32> to vector<16x16xbf16>
    %409 = vector.extract_strided_slice %271 {offsets = [32, 0], sizes = [16, 64], strides = [1, 1]} : vector<64x64xbf16> to vector<16x64xbf16>
    %cst_179 = arith.constant dense<0.000000e+00> : vector<16x64xf32>
    %410 = tpu.matmul %408, %409, %cst_179 {dimension_numbers = #tpu.dot_dimension_numbers<[1], [0], [0], [1], [0, 0, 1, 1], [], []>} : vector<16x16xbf16>, vector<16x64xbf16>, vector<16x64xf32> -> vector<16x64xf32>
    %411 = arith.addf %381, %410 : vector<16x64xf32>
    %412 = vector.extract_strided_slice %318 {offsets = [0, 0, 48], sizes = [2, 8, 16], strides = [1, 1, 1]} : vector<2x8x64xf32> to vector<2x8x16xf32>
    %413 = arith.truncf %412 : vector<2x8x16xf32> to vector<2x8x16xbf16>
    %414 = vector.extract_strided_slice %319 {offsets = [0, 0, 48], sizes = [2, 8, 16], strides = [1, 1, 1]} : vector<2x8x64xf32> to vector<2x8x16xf32>
    %415 = arith.truncf %414 : vector<2x8x16xf32> to vector<2x8x16xbf16>
    %416 = vector.extract_strided_slice %320 {offsets = [0, 0, 48], sizes = [2, 8, 16], strides = [1, 1, 1]} : vector<2x8x64xf32> to vector<2x8x16xf32>
    %417 = arith.truncf %416 : vector<2x8x16xf32> to vector<2x8x16xbf16>
    "tpu.trace_start"() <{level = 10 : i32, message = "bqd,bkd->bqk"}> : () -> ()
    %cst_180 = arith.constant dense<0.000000e+00> : vector<2x8x8xf32>
    %418 = tpu.matmul %413, %415, %cst_180 {dimension_numbers = #tpu.dot_dimension_numbers<[2], [2], [1], [1], [0, 0, 0, 1, 1, 1], [0], [0]>} : vector<2x8x16xbf16>, vector<2x8x16xbf16>, vector<2x8x8xf32> -> vector<2x8x8xf32>
    "tpu.trace_stop"() : () -> ()
    %cst_181 = arith.constant 2.500000e-01 : f32
    %419 = vector.broadcast %cst_181 : f32 to vector<2x8x8xf32>
    %420 = arith.mulf %418, %419 : vector<2x8x8xf32>
    %cst_182 = arith.constant -1.000000e+30 : f32
    %421 = vector.shape_cast %18 : vector<1x8x8xi1> to vector<1x8x8xi1>
    %422 = vector.broadcast %421 : vector<1x8x8xi1> to vector<2x8x8xi1>
    %423 = vector.broadcast %cst_182 : f32 to vector<2x8x8xf32>
    %424 = arith.select %422, %420, %423 : vector<2x8x8xi1>, vector<2x8x8xf32>
    %cst_183 = arith.constant dense<0xFF800000> : vector<2x8xf32>
    %425 = vector.multi_reduction <maximumf>, %424, %cst_183 [2] : vector<2x8x8xf32> to vector<2x8xf32>
    %426 = vector.shape_cast %425 : vector<2x8xf32> to vector<2x8x1xf32>
    %427 = vector.broadcast %426 : vector<2x8x1xf32> to vector<2x8x8xf32>
    %428 = arith.subf %424, %427 : vector<2x8x8xf32>
    %429 = math.exp %428 : vector<2x8x8xf32>
    %cst_184 = arith.constant dense<0.000000e+00> : vector<2x8xf32>
    %430 = vector.multi_reduction <add>, %429, %cst_184 [2] : vector<2x8x8xf32> to vector<2x8xf32>
    %431 = vector.shape_cast %430 : vector<2x8xf32> to vector<2x8x1xf32>
    %432 = tpu.reciprocal %431 {approx = true} : vector<2x8x1xf32> -> vector<2x8x1xf32>
    %433 = vector.broadcast %432 : vector<2x8x1xf32> to vector<2x8x8xf32>
    %434 = arith.mulf %429, %433 : vector<2x8x8xf32>
    %435 = arith.truncf %434 : vector<2x8x8xf32> to vector<2x8x8xbf16>
    "tpu.trace_start"() <{level = 10 : i32, message = "bqk,bkd->bqd"}> : () -> ()
    %cst_185 = arith.constant dense<0.000000e+00> : vector<2x8x16xf32>
    %436 = tpu.matmul %435, %417, %cst_185 {dimension_numbers = #tpu.dot_dimension_numbers<[2], [1], [1], [2], [0, 0, 0, 1, 1, 2], [0], [0]>} : vector<2x8x8xbf16>, vector<2x8x16xbf16>, vector<2x8x16xf32> -> vector<2x8x16xf32>
    "tpu.trace_stop"() : () -> ()
    %437 = vector.shape_cast %436 : vector<2x8x16xf32> to vector<16x16xf32>
    %438 = arith.truncf %437 : vector<16x16xf32> to vector<16x16xbf16>
    %439 = vector.extract_strided_slice %271 {offsets = [48, 0], sizes = [16, 64], strides = [1, 1]} : vector<64x64xbf16> to vector<16x64xbf16>
    %cst_186 = arith.constant dense<0.000000e+00> : vector<16x64xf32>
    %440 = tpu.matmul %438, %439, %cst_186 {dimension_numbers = #tpu.dot_dimension_numbers<[1], [0], [0], [1], [0, 0, 1, 1], [], []>} : vector<16x16xbf16>, vector<16x64xbf16>, vector<16x64xf32> -> vector<16x64xf32>
    %441 = arith.addf %411, %440 : vector<16x64xf32>
    %442 = arith.addf %253, %441 : vector<16x64xf32>
    %443 = vector.broadcast %273 : vector<1x64xf32> to vector<16x64xf32>
    %444 = arith.addf %442, %443 : vector<16x64xf32>
    %cst_187 = arith.constant dense<0.000000e+00> : vector<16xf32>
    %445 = vector.multi_reduction <add>, %444, %cst_187 [1] : vector<16x64xf32> to vector<16xf32>
    %446 = vector.shape_cast %445 : vector<16xf32> to vector<16x1xf32>
    %cst_188 = arith.constant 6.400000e+01 : f32
    %447 = vector.broadcast %cst_188 : f32 to vector<16x1xf32>
    %448 = arith.divf %446, %447 : vector<16x1xf32>
    %449 = vector.broadcast %448 : vector<16x1xf32> to vector<16x64xf32>
    %450 = arith.subf %444, %449 : vector<16x64xf32>
    %451 = arith.mulf %450, %450 : vector<16x64xf32>
    %cst_189 = arith.constant dense<0.000000e+00> : vector<16xf32>
    %452 = vector.multi_reduction <add>, %451, %cst_189 [1] : vector<16x64xf32> to vector<16xf32>
    %453 = vector.shape_cast %452 : vector<16xf32> to vector<16x1xf32>
    %cst_190 = arith.constant 6.400000e+01 : f32
    %454 = vector.broadcast %cst_190 : f32 to vector<16x1xf32>
    %455 = arith.divf %453, %454 : vector<16x1xf32>
    %456 = vector.broadcast %448 : vector<16x1xf32> to vector<16x64xf32>
    %457 = arith.subf %444, %456 : vector<16x64xf32>
    %cst_191 = arith.constant 9.99999974E-6 : f32
    %458 = vector.broadcast %cst_191 : f32 to vector<16x1xf32>
    %459 = arith.addf %455, %458 : vector<16x1xf32>
    %460 = math.rsqrt %459 : vector<16x1xf32>
    %461 = vector.broadcast %460 : vector<16x1xf32> to vector<16x64xf32>
    %462 = arith.mulf %457, %461 : vector<16x64xf32>
    %463 = vector.broadcast %275 : vector<1x64xf32> to vector<16x64xf32>
    %464 = arith.mulf %462, %463 : vector<16x64xf32>
    %465 = vector.broadcast %277 : vector<1x64xf32> to vector<16x64xf32>
    %466 = arith.addf %464, %465 : vector<16x64xf32>
    %467 = arith.truncf %466 : vector<16x64xf32> to vector<16x64xbf16>
    %cst_192 = arith.constant dense<0.000000e+00> : vector<16x256xf32>
    %468 = tpu.matmul %467, %279, %cst_192 {dimension_numbers = #tpu.dot_dimension_numbers<[1], [0], [0], [1], [0, 0, 1, 1], [], []>} : vector<16x64xbf16>, vector<64x256xbf16>, vector<16x256xf32> -> vector<16x256xf32>
    %469 = vector.broadcast %281 : vector<1x256xf32> to vector<16x256xf32>
    %470 = arith.addf %468, %469 : vector<16x256xf32>
    %cst_193 = arith.constant 5.000000e-01 : f32
    %471 = vector.broadcast %cst_193 : f32 to vector<16x256xf32>
    %472 = arith.mulf %471, %470 : vector<16x256xf32>
    %cst_194 = arith.constant 4.471500e-02 : f32
    %473 = vector.broadcast %cst_194 : f32 to vector<16x256xf32>
    %474 = arith.mulf %473, %470 : vector<16x256xf32>
    %475 = arith.mulf %474, %470 : vector<16x256xf32>
    %476 = arith.mulf %475, %470 : vector<16x256xf32>
    %477 = arith.addf %470, %476 : vector<16x256xf32>
    %cst_195 = arith.constant 0.797884583 : f32
    %478 = vector.broadcast %cst_195 : f32 to vector<16x256xf32>
    %479 = arith.mulf %478, %477 : vector<16x256xf32>
    %480 = math.tanh %479 : vector<16x256xf32>
    %cst_196 = arith.constant 1.000000e+00 : f32
    %481 = vector.broadcast %cst_196 : f32 to vector<16x256xf32>
    %482 = arith.addf %481, %480 : vector<16x256xf32>
    %483 = arith.mulf %472, %482 : vector<16x256xf32>
    %484 = arith.truncf %483 : vector<16x256xf32> to vector<16x256xbf16>
    %cst_197 = arith.constant dense<0.000000e+00> : vector<16x64xf32>
    %485 = tpu.matmul %484, %283, %cst_197 {dimension_numbers = #tpu.dot_dimension_numbers<[1], [0], [0], [1], [0, 0, 1, 1], [], []>} : vector<16x256xbf16>, vector<256x64xbf16>, vector<16x64xf32> -> vector<16x64xf32>
    %486 = arith.addf %444, %485 : vector<16x64xf32>
    %487 = vector.broadcast %285 : vector<1x64xf32> to vector<16x64xf32>
    %488 = arith.addf %486, %487 : vector<16x64xf32>
    %c0_198 = arith.constant 0 : index
    %c0_199 = arith.constant 0 : index
    %489 = vector.load %arg20[%c0_198, %c0_199] : memref<1x64xf32, #tpu.memory_space<vmem>>, vector<1x64xf32>
    %c0_200 = arith.constant 0 : index
    %c0_201 = arith.constant 0 : index
    %490 = vector.load %arg21[%c0_200, %c0_201] : memref<1x64xf32, #tpu.memory_space<vmem>>, vector<1x64xf32>
    %cst_202 = arith.constant dense<0.000000e+00> : vector<16xf32>
    %491 = vector.multi_reduction <add>, %488, %cst_202 [1] : vector<16x64xf32> to vector<16xf32>
    %492 = vector.shape_cast %491 : vector<16xf32> to vector<16x1xf32>
    %cst_203 = arith.constant 6.400000e+01 : f32
    %493 = vector.broadcast %cst_203 : f32 to vector<16x1xf32>
    %494 = arith.divf %492, %493 : vector<16x1xf32>
    %495 = vector.broadcast %494 : vector<16x1xf32> to vector<16x64xf32>
    %496 = arith.subf %488, %495 : vector<16x64xf32>
    %497 = arith.mulf %496, %496 : vector<16x64xf32>
    %cst_204 = arith.constant dense<0.000000e+00> : vector<16xf32>
    %498 = vector.multi_reduction <add>, %497, %cst_204 [1] : vector<16x64xf32> to vector<16xf32>
    %499 = vector.shape_cast %498 : vector<16xf32> to vector<16x1xf32>
    %cst_205 = arith.constant 6.400000e+01 : f32
    %500 = vector.broadcast %cst_205 : f32 to vector<16x1xf32>
    %501 = arith.divf %499, %500 : vector<16x1xf32>
    %502 = vector.broadcast %494 : vector<16x1xf32> to vector<16x64xf32>
    %503 = arith.subf %488, %502 : vector<16x64xf32>
    %cst_206 = arith.constant 9.99999974E-6 : f32
    %504 = vector.broadcast %cst_206 : f32 to vector<16x1xf32>
    %505 = arith.addf %501, %504 : vector<16x1xf32>
    %506 = math.rsqrt %505 : vector<16x1xf32>
    %507 = vector.broadcast %506 : vector<16x1xf32> to vector<16x64xf32>
    %508 = arith.mulf %503, %507 : vector<16x64xf32>
    %509 = vector.broadcast %489 : vector<1x64xf32> to vector<16x64xf32>
    %510 = arith.mulf %508, %509 : vector<16x64xf32>
    %511 = vector.broadcast %490 : vector<1x64xf32> to vector<16x64xf32>
    %512 = arith.addf %510, %511 : vector<16x64xf32>
    %513 = arith.truncf %512 : vector<16x64xf32> to vector<16x64xbf16>
    %c0_207 = arith.constant 0 : index
    %c0_208 = arith.constant 0 : index
    %514 = vector.load %arg3[%c0_207, %c0_208] : memref<64x256xbf16, #tpu.memory_space<vmem>>, vector<64x256xbf16>
    %cst_209 = arith.constant dense<0.000000e+00> : vector<16x256xf32>
    %515 = tpu.matmul %513, %514, %cst_209 {dimension_numbers = #tpu.dot_dimension_numbers<[1], [0], [0], [1], [0, 0, 1, 1], [], []>} : vector<16x64xbf16>, vector<64x256xbf16>, vector<16x256xf32> -> vector<16x256xf32>
    %516 = vector.shape_cast %515 : vector<16x256xf32> to vector<2x8x256xf32>
    %c0_210 = arith.constant 0 : index
    %c0_211 = arith.constant 0 : index
    %c0_212 = arith.constant 0 : index
    %517 = vector.load %arg22[%c0_210, %c0_211, %c0_212] : memref<2x8x256xf32, #tpu.memory_space<vmem>>, vector<2x8x256xf32>
    tpu.vector_store %arg22[%c0_210, %c0_211, %c0_212], %516 {strides = array<i32>} : memref<2x8x256xf32, #tpu.memory_space<vmem>>, vector<2x8x256xf32>,
    return
  }
}

</mosaic_0001>

<llo_original>
// kernel: tpu_custom_call.1
$region0: #{tpu_custom_call.1}
  #allocation0 [shape = 'u32[]', space=smem, size = 0x4, offset = 0x4, fixed_abs, tag = 'smem constant byte address 0x4 - core index']
  #allocation1 [shape = 'u32[144,128]{1,0:T(1,128)}', space=vmem, size = 0x12000, scoped, tag = 'internal scratch']
  %s0 = inlined_call_operand.vmem [shape: s32[16,1], index: 0, kind: input, shape index: {}]
  %s1 = inlined_call_operand.vmem [shape: f32[256,64], index: 1, kind: input, shape index: {}]
  %s2 = inlined_call_operand.vmem [shape: f32[64,64], index: 2, kind: input, shape index: {}]
  %s3 = inlined_call_operand.vmem [shape: bf16[64,256], index: 3, kind: input, shape index: {}]
  %s4 = inlined_call_operand.vmem [shape: f32[2,1,64], index: 4, kind: input, shape index: {}]
  %s5 = inlined_call_operand.vmem [shape: f32[2,1,64], index: 5, kind: input, shape index: {}]
  %s6 = inlined_call_operand.vmem [shape: bf16[2,64,64], index: 6, kind: input, shape index: {}]
  %s7 = inlined_call_operand.vmem [shape: f32[2,1,64], index: 7, kind: input, shape index: {}]
  %s8 = inlined_call_operand.vmem [shape: bf16[2,64,64], index: 8, kind: input, shape index: {}]
  %s9 = inlined_call_operand.vmem [shape: f32[2,1,64], index: 9, kind: input, shape index: {}]
  %s10 = inlined_call_operand.vmem [shape: bf16[2,64,64], index: 10, kind: input, shape index: {}]
  %s11 = inlined_call_operand.vmem [shape: f32[2,1,64], index: 11, kind: input, shape index: {}]
  %s12 = inlined_call_operand.vmem [shape: bf16[2,64,64], index: 12, kind: input, shape index: {}]
  %s13 = inlined_call_operand.vmem [shape: f32[2,1,64], index: 13, kind: input, shape index: {}]
  %s14 = inlined_call_operand.vmem [shape: f32[2,1,64], index: 14, kind: input, shape index: {}]
  %s15 = inlined_call_operand.vmem [shape: f32[2,1,64], index: 15, kind: input, shape index: {}]
  %s16 = inlined_call_operand.vmem [shape: bf16[2,64,256], index: 16, kind: input, shape index: {}]
  %s17 = inlined_call_operand.vmem [shape: f32[2,1,256], index: 17, kind: input, shape index: {}]
  %s18 = inlined_call_operand.vmem [shape: bf16[2,256,64], index: 18, kind: input, shape index: {}]
  %s19 = inlined_call_operand.vmem [shape: f32[2,1,64], index: 19, kind: input, shape index: {}]
  %s20 = inlined_call_operand.vmem [shape: f32[1,64], index: 20, kind: input, shape index: {}]
  %s21 = inlined_call_operand.vmem [shape: f32[1,64], index: 21, kind: input, shape index: {}]
  %s22 = inlined_call_operand.hbm [shape: f32[2,8,256], index: 22, kind: output, shape index: {}]
  %s23 = sld [smem:[#allocation0]]
  $region98: #{tpu_custom_call.1} parent=0
    _
  %s25 = ssub.s32 1, %s23
  %s26 = scalar_select 0, %s25, %s23
  $region1: #{tpu_custom_call.1} parent=0
    #allocation2 [shape = 'u8[16384]{0}', space=vmem, size = 0x4000, scoped, tag = 'output window, operand 0, single buffered']
    #allocation3 [shape = 's32[1]{0}', space=sflag, size = 0x4, scoped, tag = 'scoped memory for tpu_custom_call.1']
    %27 = vsyncpa [#allocation3], 0
    // Predicated region
    $region2: #{tpu_custom_call.1} parent=1 // pred_check
      _
    $region3: #{tpu_custom_call.1} parent=1 // pred_check_branch
      %29 = sbr.rel (0) target = $region5
    $region4: #{tpu_custom_call.1} parent=1 // pred_region
      _
    $region5: #{tpu_custom_call.1} parent=1 // pred_fallthru
      _
    // Predicated region
    $region6: #{tpu_custom_call.1} parent=1 // pred_check
      _
    $region7: #{tpu_custom_call.1} parent=1 // pred_check_branch
      %31 = sbr.rel (0) target = $region9
    $region8: #{tpu_custom_call.1} parent=1 // pred_region
      _
    $region9: #{tpu_custom_call.1} parent=1 // pred_fallthru
      _
    // Predicated region
    $region10: #{tpu_custom_call.1} parent=1 // pred_check
      _
    $region11: #{tpu_custom_call.1} parent=1 // pred_check_branch
      %33 = sbr.rel (0) target = $region13
    $region12: #{tpu_custom_call.1} parent=1 // pred_region
      _
    $region13: #{tpu_custom_call.1} parent=1 // pred_fallthru
      _
    // Predicated region
    $region14: #{tpu_custom_call.1} parent=1 // pred_check
      _
    $region15: #{tpu_custom_call.1} parent=1 // pred_check_branch
      %35 = sbr.rel (0) target = $region17
    $region16: #{tpu_custom_call.1} parent=1 // pred_region
      _
    $region17: #{tpu_custom_call.1} parent=1 // pred_fallthru
      _
    // Predicated region
    $region18: #{tpu_custom_call.1} parent=1 // pred_check
      _
    $region19: #{tpu_custom_call.1} parent=1 // pred_check_branch
      %37 = sbr.rel (0) target = $region21
    $region20: #{tpu_custom_call.1} parent=1 // pred_region
      _
    $region21: #{tpu_custom_call.1} parent=1 // pred_fallthru
      _
    // Predicated region
    $region22: #{tpu_custom_call.1} parent=1 // pred_check
      _
    $region23: #{tpu_custom_call.1} parent=1 // pred_check_branch
      %39 = sbr.rel (0) target = $region25
    $region24: #{tpu_custom_call.1} parent=1 // pred_region
      _
    $region25: #{tpu_custom_call.1} parent=1 // pred_fallthru
      _
    // Predicated region
    $region26: #{tpu_custom_call.1} parent=1 // pred_check
      _
    $region27: #{tpu_custom_call.1} parent=1 // pred_check_branch
      %41 = sbr.rel (0) target = $region29
    $region28: #{tpu_custom_call.1} parent=1 // pred_region
      _
    $region29: #{tpu_custom_call.1} parent=1 // pred_fallthru
      _
    // Predicated region
    $region30: #{tpu_custom_call.1} parent=1 // pred_check
      _
    $region31: #{tpu_custom_call.1} parent=1 // pred_check_branch
      %43 = sbr.rel (0) target = $region33
    $region32: #{tpu_custom_call.1} parent=1 // pred_region
      _
    $region33: #{tpu_custom_call.1} parent=1 // pred_fallthru
      _
    // Predicated region
    $region34: #{tpu_custom_call.1} parent=1 // pred_check
      _
    $region35: #{tpu_custom_call.1} parent=1 // pred_check_branch
      %45 = sbr.rel (0) target = $region37
    $region36: #{tpu_custom_call.1} parent=1 // pred_region
      _
    $region37: #{tpu_custom_call.1} parent=1 // pred_fallthru
      _
    // Predicated region
    $region38: #{tpu_custom_call.1} parent=1 // pred_check
      _
    $region39: #{tpu_custom_call.1} parent=1 // pred_check_branch
      %47 = sbr.rel (0) target = $region41
    $region40: #{tpu_custom_call.1} parent=1 // pred_region
      _
    $region41: #{tpu_custom_call.1} parent=1 // pred_fallthru
      _
    // Predicated region
    $region42: #{tpu_custom_call.1} parent=1 // pred_check
      _
    $region43: #{tpu_custom_call.1} parent=1 // pred_check_branch
      %49 = sbr.rel (0) target = $region45
    $region44: #{tpu_custom_call.1} parent=1 // pred_region
      _
    $region45: #{tpu_custom_call.1} parent=1 // pred_fallthru
      _
    // Predicated region
    $region46: #{tpu_custom_call.1} parent=1 // pred_check
      _
    $region47: #{tpu_custom_call.1} parent=1 // pred_check_branch
      %51 = sbr.rel (0) target = $region49
    $region48: #{tpu_custom_call.1} parent=1 // pred_region
      _
    $region49: #{tpu_custom_call.1} parent=1 // pred_fallthru
      _
    // Predicated region
    $region50: #{tpu_custom_call.1} parent=1 // pred_check
      _
    $region51: #{tpu_custom_call.1} parent=1 // pred_check_branch
      %53 = sbr.rel (0) target = $region53
    $region52: #{tpu_custom_call.1} parent=1 // pred_region
      _
    $region53: #{tpu_custom_call.1} parent=1 // pred_fallthru
      _
    // Predicated region
    $region54: #{tpu_custom_call.1} parent=1 // pred_check
      _
    $region55: #{tpu_custom_call.1} parent=1 // pred_check_branch
      %55 = sbr.rel (0) target = $region57
    $region56: #{tpu_custom_call.1} parent=1 // pred_region
      _
    $region57: #{tpu_custom_call.1} parent=1 // pred_fallthru
      _
    // Predicated region
    $region58: #{tpu_custom_call.1} parent=1 // pred_check
      _
    $region59: #{tpu_custom_call.1} parent=1 // pred_check_branch
      %57 = sbr.rel (0) target = $region61
    $region60: #{tpu_custom_call.1} parent=1 // pred_region
      _
    $region61: #{tpu_custom_call.1} parent=1 // pred_fallthru
      _
    // Predicated region
    $region62: #{tpu_custom_call.1} parent=1 // pred_check
      _
    $region63: #{tpu_custom_call.1} parent=1 // pred_check_branch
      %59 = sbr.rel (0) target = $region65
    $region64: #{tpu_custom_call.1} parent=1 // pred_region
      _
    $region65: #{tpu_custom_call.1} parent=1 // pred_fallthru
      _
    // Predicated region
    $region66: #{tpu_custom_call.1} parent=1 // pred_check
      _
    $region67: #{tpu_custom_call.1} parent=1 // pred_check_branch
      %61 = sbr.rel (0) target = $region69
    $region68: #{tpu_custom_call.1} parent=1 // pred_region
      _
    $region69: #{tpu_custom_call.1} parent=1 // pred_fallthru
      _
    // Predicated region
    $region70: #{tpu_custom_call.1} parent=1 // pred_check
      _
    $region71: #{tpu_custom_call.1} parent=1 // pred_check_branch
      %63 = sbr.rel (0) target = $region73
    $region72: #{tpu_custom_call.1} parent=1 // pred_region
      _
    $region73: #{tpu_custom_call.1} parent=1 // pred_fallthru
      _
    // Predicated region
    $region74: #{tpu_custom_call.1} parent=1 // pred_check
      _
    $region75: #{tpu_custom_call.1} parent=1 // pred_check_branch
      %65 = sbr.rel (0) target = $region77
    $region76: #{tpu_custom_call.1} parent=1 // pred_region
      _
    $region77: #{tpu_custom_call.1} parent=1 // pred_fallthru
      _
    // Predicated region
    $region78: #{tpu_custom_call.1} parent=1 // pred_check
      _
    $region79: #{tpu_custom_call.1} parent=1 // pred_check_branch
      %67 = sbr.rel (0) target = $region81
    $region80: #{tpu_custom_call.1} parent=1 // pred_region
      _
    $region81: #{tpu_custom_call.1} parent=1 // pred_fallthru
      _
    // Predicated region
    $region82: #{tpu_custom_call.1} parent=1 // pred_check
      _
    $region83: #{tpu_custom_call.1} parent=1 // pred_check_branch
      %69 = sbr.rel (0) target = $region85
    $region84: #{tpu_custom_call.1} parent=1 // pred_region
      _
    $region85: #{tpu_custom_call.1} parent=1 // pred_fallthru
      _
    // Predicated region
    $region86: #{tpu_custom_call.1} parent=1 // pred_check
      _
    $region87: #{tpu_custom_call.1} parent=1 // pred_check_branch
      %71 = sbr.rel (0) target = $region89
    $region88: #{tpu_custom_call.1} parent=1 // pred_region
      _
    $region89: #{tpu_custom_call.1} parent=1 // pred_fallthru
      _
    %v73 = vld [vmem:[%s0] sm:$0xff]
    %v74 = vld [vmem:[%s0 + $0x8] sm:$0xff]
    %v75 = vlaneseq
    %v76 = vand.u32 %v75, 127
    %v77 = vadd.s32 %v76, 128
    %78 = vset.pattern.permute.xlu0 0
    %79 = vperm.xlu0 %78, %v73
    %v80 = vpop.permute.xlu0 %79
    %81 = vset.pattern.permute.xlu0 0
    %82 = vperm.xlu0 %81, %v74
    %v83 = vpop.permute.xlu0 %82
    %vm84 = vcmp.eq.s32.totalorder %v76, %v80
    %vm85 = vcmp.eq.s32.totalorder %v77, %v80
    %vm86 = vcmp.eq.s32.totalorder %v76, %v83
    %vm87 = vcmp.eq.s32.totalorder %v77, %v83
    %v88 = vsel %vm84, 1.0, 0.0
    %v89 = vsel %vm85, 1.0, 0.0
    %v90 = vsel %vm86, 1.0, 0.0
    %v91 = vsel %vm87, 1.0, 0.0
    %v92 = vld [vmem:[%s1] sm:$0xff]
    %v93 = vld [vmem:[%s1 + $0x8] sm:$0xff]
    %v94 = vld [vmem:[%s1 + $0x10] sm:$0xff]
    %v95 = vld [vmem:[%s1 + $0x18] sm:$0xff]
    %v96 = vld [vmem:[%s1 + $0x20] sm:$0xff]
    %v97 = vld [vmem:[%s1 + $0x28] sm:$0xff]
    %v98 = vld [vmem:[%s1 + $0x30] sm:$0xff]
    %v99 = vld [vmem:[%s1 + $0x38] sm:$0xff]
    %v100 = vld [vmem:[%s1 + $0x40] sm:$0xff]
    %v101 = vld [vmem:[%s1 + $0x48] sm:$0xff]
    %v102 = vld [vmem:[%s1 + $0x50] sm:$0xff]
    %v103 = vld [vmem:[%s1 + $0x58] sm:$0xff]
    %v104 = vld [vmem:[%s1 + $0x60] sm:$0xff]
    %v105 = vld [vmem:[%s1 + $0x68] sm:$0xff]
    %v106 = vld [vmem:[%s1 + $0x70] sm:$0xff]
    %v107 = vld [vmem:[%s1 + $0x78] sm:$0xff]
    %v108 = vld [vmem:[%s1 + $0x80] sm:$0xff]
    %v109 = vld [vmem:[%s1 + $0x88] sm:$0xff]
    %v110 = vld [vmem:[%s1 + $0x90] sm:$0xff]
    %v111 = vld [vmem:[%s1 + $0x98] sm:$0xff]
    %v112 = vld [vmem:[%s1 + $0xa0] sm:$0xff]
    %v113 = vld [vmem:[%s1 + $0xa8] sm:$0xff]
    %v114 = vld [vmem:[%s1 + $0xb0] sm:$0xff]
    %v115 = vld [vmem:[%s1 + $0xb8] sm:$0xff]
    %v116 = vld [vmem:[%s1 + $0xc0] sm:$0xff]
    %v117 = vld [vmem:[%s1 + $0xc8] sm:$0xff]
    %v118 = vld [vmem:[%s1 + $0xd0] sm:$0xff]
    %v119 = vld [vmem:[%s1 + $0xd8] sm:$0xff]
    %v120 = vld [vmem:[%s1 + $0xe0] sm:$0xff]
    %v121 = vld [vmem:[%s1 + $0xe8] sm:$0xff]
    %v122 = vld [vmem:[%s1 + $0xf0] sm:$0xff]
    %v123 = vld [vmem:[%s1 + $0xf8] sm:$0xff]
    %124 = vmatprep.subr.mxu0 0.0
    %125 = vmatpush1.msra.mxu0 %v107
    %126 = vmatprep.subr.mxu0 0.0
    %127 = vmatpush1.msra.mxu0 %v106
    %128 = vmatprep.subr.mxu0 0.0
    %129 = vmatpush1.msra.mxu0 %v105
    %130 = vmatprep.subr.mxu0 0.0
    %131 = vmatpush1.msra.mxu0 %v104
    %132 = vmatprep.subr.mxu0 0.0
    %133 = vmatpush1.msra.mxu0 %v103
    %134 = vmatprep.subr.mxu0 0.0
    %135 = vmatpush1.msra.mxu0 %v102
    %136 = vmatprep.subr.mxu0 0.0
    %137 = vmatpush1.msra.mxu0 %v101
    %138 = vmatprep.subr.mxu0 0.0
    %139 = vmatpush1.msra.mxu0 %v100
    %140 = vmatprep.subr.mxu0 0.0
    %141 = vmatpush1.msra.mxu0 %v99
    %142 = vmatprep.subr.mxu0 0.0
    %143 = vmatpush1.msra.mxu0 %v98
    %144 = vmatprep.subr.mxu0 0.0
    %145 = vmatpush1.msra.mxu0 %v97
    %146 = vmatprep.subr.mxu0 0.0
    %147 = vmatpush1.msra.mxu0 %v96
    %148 = vmatprep.subr.mxu0 0.0
    %149 = vmatpush1.msra.mxu0 %v95
    %150 = vmatprep.subr.mxu0 0.0
    %151 = vmatpush1.msra.mxu0 %v94
    %152 = vmatprep.subr.mxu0 0.0
    %153 = vmatpush1.msra.mxu0 %v93
    %154 = vmatprep.subr.mxu0 0.0
    %155 = vmatpush1.msra.mxu0 %v92
    %156 = vmatprep.subr.mxu0 0.0
    %157 = vmatpush2.msra.mxu0 %v123
    %158 = vmatprep.subr.mxu0 0.0
    %159 = vmatpush2.msra.mxu0 %v122
    %160 = vmatprep.subr.mxu0 0.0
    %161 = vmatpush2.msra.mxu0 %v121
    %162 = vmatprep.subr.mxu0 0.0
    %163 = vmatpush2.msra.mxu0 %v120
    %164 = vmatprep.subr.mxu0 0.0
    %165 = vmatpush2.msra.mxu0 %v119
    %166 = vmatprep.subr.mxu0 0.0
    %167 = vmatpush2.msra.mxu0 %v118
    %168 = vmatprep.subr.mxu0 0.0
    %169 = vmatpush2.msra.mxu0 %v117
    %170 = vmatprep.subr.mxu0 0.0
    %171 = vmatpush2.msra.mxu0 %v116
    %172 = vmatprep.subr.mxu0 0.0
    %173 = vmatpush2.msra.mxu0 %v115
    %174 = vmatprep.subr.mxu0 0.0
    %175 = vmatpush2.msra.mxu0 %v114
    %176 = vmatprep.subr.mxu0 0.0
    %177 = vmatpush2.msra.mxu0 %v113
    %178 = vmatprep.subr.mxu0 0.0
    %179 = vmatpush2.msra.mxu0 %v112
    %180 = vmatprep.subr.mxu0 0.0
    %181 = vmatpush2.msra.mxu0 %v111
    %182 = vmatprep.subr.mxu0 0.0
    %183 = vmatpush2.msra.mxu0 %v110
    %184 = vmatprep.subr.mxu0 0.0
    %185 = vmatpush2.msra.mxu0 %v109
    %186 = vmatprep.subr.mxu0 0.0
    %187 = vmatpush2.msra.mxu0 %v108
    %188 = vmatprep.mubr.f32.mxu0 %v89
    %189 = vmatmul.mubr.f32.gmra.mxu0 %v88
    %v190 = vpop.f32.mrf.mxu0
    %v191 = vadd.f32 0.0, %v190
    %v192 = vpop.f32.mrf.mxu0
    %193 = vmatprep.mubr.f32.mxu0 %v91
    %194 = vmatmul.mubr.f32.gmra.mxu0 %v90
    %v195 = vpop.f32.mrf.mxu0
    %v196 = vadd.f32 0.0, %v195
    %v197 = vpop.f32.mrf.mxu0
    %198 = vdwg.mxu0
    %v199 = vld [vmem:[%s2] sm:$0xff]
    %v200 = vadd.f32 %v191, %v199
    %v201 = vadd.f32 %v196, %v199
    %v202 = vlaneseq
    %v203 = vshrl.u32 %v202, 7
    %vm204 = vcmp.le.s32.totalorder %v76, %v203
    %v205 = vld [vmem:[%s4] sm:$0x1]
    %v206 = vld [vmem:[%s5] sm:$0x1]
    %v207 = vld [vmem:[%s6] sm:$0xf]
    %v208 = vld [vmem:[%s6 + $0x4] sm:$0xf]
    %v209 = vld [vmem:[%s6 + $0x8] sm:$0xf]
    %v210 = vld [vmem:[%s6 + $0xc] sm:$0xf]
    %v211 = vld [vmem:[%s6 + $0x10] sm:$0xf]
    %v212 = vld [vmem:[%s6 + $0x14] sm:$0xf]
    %v213 = vld [vmem:[%s6 + $0x18] sm:$0xf]
    %v214 = vld [vmem:[%s6 + $0x1c] sm:$0xf]
    %v215 = vld [vmem:[%s7] sm:$0x1]
    %v216 = vld [vmem:[%s8] sm:$0xf]
    %v217 = vld [vmem:[%s8 + $0x4] sm:$0xf]
    %v218 = vld [vmem:[%s8 + $0x8] sm:$0xf]
    %v219 = vld [vmem:[%s8 + $0xc] sm:$0xf]
    %v220 = vld [vmem:[%s8 + $0x10] sm:$0xf]
    %v221 = vld [vmem:[%s8 + $0x14] sm:$0xf]
    %v222 = vld [vmem:[%s8 + $0x18] sm:$0xf]
    %v223 = vld [vmem:[%s8 + $0x1c] sm:$0xf]
    %v224 = vld [vmem:[%s9] sm:$0x1]
    %v225 = vld [vmem:[%s10] sm:$0xf]
    %v226 = vld [vmem:[%s10 + $0x4] sm:$0xf]
    %v227 = vld [vmem:[%s10 + $0x8] sm:$0xf]
    %v228 = vld [vmem:[%s10 + $0xc] sm:$0xf]
    %v229 = vld [vmem:[%s10 + $0x10] sm:$0xf]
    %v230 = vld [vmem:[%s10 + $0x14] sm:$0xf]
    %v231 = vld [vmem:[%s10 + $0x18] sm:$0xf]
    %v232 = vld [vmem:[%s10 + $0x1c] sm:$0xf]
    %v233 = vld [vmem:[%s11] sm:$0x1]
    %v234 = vld [vmem:[%s12] sm:$0xf]
    %v235 = vld [vmem:[%s12 + $0x4] sm:$0xf]
    %v236 = vld [vmem:[%s12 + $0x8] sm:$0xf]
    %v237 = vld [vmem:[%s12 + $0xc] sm:$0xf]
    %v238 = vld [vmem:[%s12 + $0x10] sm:$0xf]
    %v239 = vld [vmem:[%s12 + $0x14] sm:$0xf]
    %v240 = vld [vmem:[%s12 + $0x18] sm:$0xf]
    %v241 = vld [vmem:[%s12 + $0x1c] sm:$0xf]
    %v242 = vld [vmem:[%s13] sm:$0x1]
    %v243 = vld [vmem:[%s14] sm:$0x1]
    %v244 = vld [vmem:[%s15] sm:$0x1]
    %v245 = vld [vmem:[%s16] sm:$0xff]
    %v246 = vld [vmem:[%s16 + $0x8] sm:$0xff]
    %v247 = vld [vmem:[%s16 + $0x10] sm:$0xff]
    %v248 = vld [vmem:[%s16 + $0x18] sm:$0xff]
    %v249 = vld [vmem:[%s16 + $0x20] sm:$0xff]
    %v250 = vld [vmem:[%s16 + $0x28] sm:$0xff]
    %v251 = vld [vmem:[%s16 + $0x30] sm:$0xff]
    %v252 = vld [vmem:[%s16 + $0x38] sm:$0xff]
    %v253 = vld [vmem:[%s17] sm:$0x3]
    %v254 = vld [vmem:[%s18] sm:$0xf]
    %v255 = vld [vmem:[%s18 + $0x4] sm:$0xf]
    %v256 = vld [vmem:[%s18 + $0x8] sm:$0xf]
    %v257 = vld [vmem:[%s18 + $0xc] sm:$0xf]
    %v258 = vld [vmem:[%s18 + $0x10] sm:$0xf]
    %v259 = vld [vmem:[%s18 + $0x14] sm:$0xf]
    %v260 = vld [vmem:[%s18 + $0x18] sm:$0xf]
    %v261 = vld [vmem:[%s18 + $0x1c] sm:$0xf]
    %v262 = vld [vmem:[%s18 + $0x20] sm:$0xf]
    %v263 = vld [vmem:[%s18 + $0x24] sm:$0xf]
    %v264 = vld [vmem:[%s18 + $0x28] sm:$0xf]
    %v265 = vld [vmem:[%s18 + $0x2c] sm:$0xf]
    %v266 = vld [vmem:[%s18 + $0x30] sm:$0xf]
    %v267 = vld [vmem:[%s18 + $0x34] sm:$0xf]
    %v268 = vld [vmem:[%s18 + $0x38] sm:$0xf]
    %v269 = vld [vmem:[%s18 + $0x3c] sm:$0xf]
    %v270 = vld [vmem:[%s18 + $0x40] sm:$0xf]
    %v271 = vld [vmem:[%s18 + $0x44] sm:$0xf]
    %v272 = vld [vmem:[%s18 + $0x48] sm:$0xf]
    %v273 = vld [vmem:[%s18 + $0x4c] sm:$0xf]
    %v274 = vld [vmem:[%s18 + $0x50] sm:$0xf]
    %v275 = vld [vmem:[%s18 + $0x54] sm:$0xf]
    %v276 = vld [vmem:[%s18 + $0x58] sm:$0xf]
    %v277 = vld [vmem:[%s18 + $0x5c] sm:$0xf]
    %v278 = vld [vmem:[%s18 + $0x60] sm:$0xf]
    %v279 = vld [vmem:[%s18 + $0x64] sm:$0xf]
    %v280 = vld [vmem:[%s18 + $0x68] sm:$0xf]
    %v281 = vld [vmem:[%s18 + $0x6c] sm:$0xf]
    %v282 = vld [vmem:[%s18 + $0x70] sm:$0xf]
    %v283 = vld [vmem:[%s18 + $0x74] sm:$0xf]
    %v284 = vld [vmem:[%s18 + $0x78] sm:$0xf]
    %v285 = vld [vmem:[%s18 + $0x7c] sm:$0xf]
    %v286 = vld [vmem:[%s19] sm:$0x1]
    %vm287 = vcmask 523264
    %v288 = vsel %vm287, %v200, 0.0
    %289 = vadd.xlane.f32.xlu0 %v288
    %v290 = vpop.xlane.xlu0 %289
    %v291 = vsel %vm287, %v201, 0.0
    %292 = vadd.xlane.f32.xlu0 %v291
    %v293 = vpop.xlane.xlu0 %292
    %v294 = vrcp.pop 64.0
    %v295 = vmul.f32 %v290, %v294
    %v296 = vmul.f32 %v293, %v294
    %v297 = vsub.f32 %v200, %v295
    %v298 = vsub.f32 %v201, %v296
    %v299 = vmul.f32 %v297, %v297
    %v300 = vmul.f32 %v298, %v298
    %v301 = vsel %vm287, %v299, 0.0
    %302 = vadd.xlane.f32.xlu0 %v301
    %v303 = vpop.xlane.xlu0 %302
    %v304 = vsel %vm287, %v300, 0.0
    %305 = vadd.xlane.f32.xlu0 %v304
    %v306 = vpop.xlane.xlu0 %305
    %v307 = vmul.f32 %v303, %v294
    %v308 = vmul.f32 %v306, %v294
    %v309 = vadd.f32 %v307, 1e-05
    %v310 = vadd.f32 %v308, 1e-05
    %v311 = vrsqrt.pop %v309
    %v312 = vrsqrt.pop %v310
    %v313 = vmul.f32 %v297, %v311
    %v314 = vmul.f32 %v298, %v312
    %v316 = vlaneseq
    %v317 = vshrl.u32 %v316, 7
    %v318 = vsub.s32 0, %v317
    %v319 = vrot.slane %v205, %v318
    %v321 = vmul.f32 %v313, %v319
    %v322 = vmul.f32 %v314, %v319
    %v324 = vlaneseq
    %v325 = vshrl.u32 %v324, 7
    %v326 = vsub.s32 0, %v325
    %v327 = vrot.slane %v206, %v326
    %v329 = vadd.f32 %v321, %v327
    %v330 = vadd.f32 %v322, %v327
    %v331 = vpack.c.bf16 %v330, %v329
    %v333 = vlaneseq
    %v334 = vshrl.u32 %v333, 7
    %v335 = vsub.s32 0, %v334
    %v336 = vrot.slane %v215, %v335
    %v346 = vunpack.c.l.b16 %v207
    %v347 = vunpack.c.l.b16 %v208
    %v348 = vunpack.c.l.b16 %v209
    %v349 = vunpack.c.l.b16 %v210
    %v350 = vunpack.c.l.b16 %v211
    %v351 = vunpack.c.l.b16 %v212
    %v352 = vunpack.c.l.b16 %v213
    %v353 = vunpack.c.l.b16 %v214
    %v354 = vpack.c.b16 %v347, %v346
    %v355 = vpack.c.b16 %v349, %v348
    %v356 = vpack.c.b16 %v351, %v350
    %v357 = vpack.c.b16 %v353, %v352
    %v363 = vsel %vm287, %v331, 0
    %365 = vmatprep.subr.bf16.mxu0 0
    %366 = vmatpush1.bf16.msra.mxu0 0
    %367 = vmatprep.subr.bf16.mxu0 0
    %368 = vmatpush1.bf16.msra.mxu0 0
    %369 = vmatprep.subr.bf16.mxu0 0
    %370 = vmatpush1.bf16.msra.mxu0 0
    %371 = vmatprep.subr.bf16.mxu0 0
    %372 = vmatpush1.bf16.msra.mxu0 0
    %373 = vmatprep.subr.bf16.mxu0 0
    %374 = vmatpush1.bf16.msra.mxu0 %v357
    %375 = vmatprep.subr.bf16.mxu0 0
    %376 = vmatpush1.bf16.msra.mxu0 %v356
    %377 = vmatprep.subr.bf16.mxu0 0
    %378 = vmatpush1.bf16.msra.mxu0 %v355
    %379 = vmatprep.subr.bf16.mxu0 0
    %380 = vmatpush1.bf16.msra.mxu0 %v354
    %381 = vmatprep.subr.bf16.mxu0 0
    %382 = vmatpush2.bf16.msra.mxu0 0
    %383 = vmatprep.subr.bf16.mxu0 0
    %384 = vmatpush2.bf16.msra.mxu0 0
    %385 = vmatprep.subr.bf16.mxu0 0
    %386 = vmatpush2.bf16.msra.mxu0 0
    %387 = vmatprep.subr.bf16.mxu0 0
    %388 = vmatpush2.bf16.msra.mxu0 0
    %389 = vmatprep.subr.bf16.mxu0 0
    %390 = vmatpush2.bf16.msra.mxu0 0
    %391 = vmatprep.subr.bf16.mxu0 0
    %392 = vmatpush2.bf16.msra.mxu0 0
    %393 = vmatprep.subr.bf16.mxu0 0
    %394 = vmatpush2.bf16.msra.mxu0 0
    %395 = vmatprep.subr.bf16.mxu0 0
    %396 = vmatpush2.bf16.msra.mxu0 0
    %397 = vmatprep.mubr.bf16.mxu0 0
    %398 = vmatmul.mubr.bf16.gmra.mxu0 %v363
    %v399 = vpop.f32.mrf.mxu0
    %v400 = vadd.f32 %v336, %v399
    %v401 = vpop.f32.mrf.mxu0
    %v402 = vpop.f32.mrf.mxu0
    %v403 = vadd.f32 %v336, %v402
    %v404 = vpop.f32.mrf.mxu0
    %405 = vdwg.mxu0
    %v407 = vlaneseq
    %v408 = vshrl.u32 %v407, 7
    %v409 = vsub.s32 0, %v408
    %v410 = vrot.slane %v224, %v409
    %v420 = vunpack.c.l.b16 %v216
    %v421 = vunpack.c.l.b16 %v217
    %v422 = vunpack.c.l.b16 %v218
    %v423 = vunpack.c.l.b16 %v219
    %v424 = vunpack.c.l.b16 %v220
    %v425 = vunpack.c.l.b16 %v221
    %v426 = vunpack.c.l.b16 %v222
    %v427 = vunpack.c.l.b16 %v223
    %v428 = vpack.c.b16 %v421, %v420
    %v429 = vpack.c.b16 %v423, %v422
    %v430 = vpack.c.b16 %v425, %v424
    %v431 = vpack.c.b16 %v427, %v426
    %436 = vmatprep.subr.bf16.mxu0 0
    %437 = vmatpush1.bf16.msra.mxu0 0
    %438 = vmatprep.subr.bf16.mxu0 0
    %439 = vmatpush1.bf16.msra.mxu0 0
    %440 = vmatprep.subr.bf16.mxu0 0
    %441 = vmatpush1.bf16.msra.mxu0 0
    %442 = vmatprep.subr.bf16.mxu0 0
    %443 = vmatpush1.bf16.msra.mxu0 0
    %444 = vmatprep.subr.bf16.mxu0 0
    %445 = vmatpush1.bf16.msra.mxu0 %v431
    %446 = vmatprep.subr.bf16.mxu0 0
    %447 = vmatpush1.bf16.msra.mxu0 %v430
    %448 = vmatprep.subr.bf16.mxu0 0
    %449 = vmatpush1.bf16.msra.mxu0 %v429
    %450 = vmatprep.subr.bf16.mxu0 0
    %451 = vmatpush1.bf16.msra.mxu0 %v428
    %452 = vmatprep.subr.bf16.mxu0 0
    %453 = vmatpush2.bf16.msra.mxu0 0
    %454 = vmatprep.subr.bf16.mxu0 0
    %455 = vmatpush2.bf16.msra.mxu0 0
    %456 = vmatprep.subr.bf16.mxu0 0
    %457 = vmatpush2.bf16.msra.mxu0 0
    %458 = vmatprep.subr.bf16.mxu0 0
    %459 = vmatpush2.bf16.msra.mxu0 0
    %460 = vmatprep.subr.bf16.mxu0 0
    %461 = vmatpush2.bf16.msra.mxu0 0
    %462 = vmatprep.subr.bf16.mxu0 0
    %463 = vmatpush2.bf16.msra.mxu0 0
    %464 = vmatprep.subr.bf16.mxu0 0
    %465 = vmatpush2.bf16.msra.mxu0 0
    %466 = vmatprep.subr.bf16.mxu0 0
    %467 = vmatpush2.bf16.msra.mxu0 0
    %468 = vmatprep.mubr.bf16.mxu0 0
    %469 = vmatmul.mubr.bf16.gmra.mxu0 %v363
    %v470 = vpop.f32.mrf.mxu0
    %v471 = vadd.f32 %v410, %v470
    %v472 = vpop.f32.mrf.mxu0
    %v473 = vpop.f32.mrf.mxu0
    %v474 = vadd.f32 %v410, %v473
    %v475 = vpop.f32.mrf.mxu0
    %476 = vdwg.mxu0
    %v478 = vlaneseq
    %v479 = vshrl.u32 %v478, 7
    %v480 = vsub.s32 0, %v479
    %v481 = vrot.slane %v233, %v480
    %v491 = vunpack.c.l.b16 %v225
    %v492 = vunpack.c.l.b16 %v226
    %v493 = vunpack.c.l.b16 %v227
    %v494 = vunpack.c.l.b16 %v228
    %v495 = vunpack.c.l.b16 %v229
    %v496 = vunpack.c.l.b16 %v230
    %v497 = vunpack.c.l.b16 %v231
    %v498 = vunpack.c.l.b16 %v232
    %v499 = vpack.c.b16 %v492, %v491
    %v500 = vpack.c.b16 %v494, %v493
    %v501 = vpack.c.b16 %v496, %v495
    %v502 = vpack.c.b16 %v498, %v497
    %507 = vmatprep.subr.bf16.mxu0 0
    %508 = vmatpush1.bf16.msra.mxu0 0
    %509 = vmatprep.subr.bf16.mxu0 0
    %510 = vmatpush1.bf16.msra.mxu0 0
    %511 = vmatprep.subr.bf16.mxu0 0
    %512 = vmatpush1.bf16.msra.mxu0 0
    %513 = vmatprep.subr.bf16.mxu0 0
    %514 = vmatpush1.bf16.msra.mxu0 0
    %515 = vmatprep.subr.bf16.mxu0 0
    %516 = vmatpush1.bf16.msra.mxu0 %v502
    %517 = vmatprep.subr.bf16.mxu0 0
    %518 = vmatpush1.bf16.msra.mxu0 %v501
    %519 = vmatprep.subr.bf16.mxu0 0
    %520 = vmatpush1.bf16.msra.mxu0 %v500
    %521 = vmatprep.subr.bf16.mxu0 0
    %522 = vmatpush1.bf16.msra.mxu0 %v499
    %523 = vmatprep.subr.bf16.mxu0 0
    %524 = vmatpush2.bf16.msra.mxu0 0
    %525 = vmatprep.subr.bf16.mxu0 0
    %526 = vmatpush2.bf16.msra.mxu0 0
    %527 = vmatprep.subr.bf16.mxu0 0
    %528 = vmatpush2.bf16.msra.mxu0 0
    %529 = vmatprep.subr.bf16.mxu0 0
    %530 = vmatpush2.bf16.msra.mxu0 0
    %531 = vmatprep.subr.bf16.mxu0 0
    %532 = vmatpush2.bf16.msra.mxu0 0
    %533 = vmatprep.subr.bf16.mxu0 0
    %534 = vmatpush2.bf16.msra.mxu0 0
    %535 = vmatprep.subr.bf16.mxu0 0
    %536 = vmatpush2.bf16.msra.mxu0 0
    %537 = vmatprep.subr.bf16.mxu0 0
    %538 = vmatpush2.bf16.msra.mxu0 0
    %539 = vmatprep.mubr.bf16.mxu0 0
    %540 = vmatmul.mubr.bf16.gmra.mxu0 %v363
    %v541 = vpop.f32.mrf.mxu0
    %v542 = vadd.f32 %v481, %v541
    %v543 = vpop.f32.mrf.mxu0
    %v544 = vpop.f32.mrf.mxu0
    %v545 = vadd.f32 %v481, %v544
    %v546 = vpop.f32.mrf.mxu0
    %547 = vdwg.mxu0
    %v548 = vpack.c.bf16 %v400, %v400
    %v549 = vpack.c.bf16 %v403, %v403
    %v550 = vpack.c.bf16 %v471, %v471
    %v551 = vpack.c.bf16 %v474, %v474
    %v552 = vpack.c.bf16 %v542, %v542
    %v553 = vpack.c.bf16 %v545, %v545
    %vm554 = vcmask 130048
    %v556 = vsel %vm554, %v548, 0
    %v559 = vsel %vm554, %v550, 0
    %561 = vmatprep.subr.bf16.mxu0 0
    %562 = vmatpush1.bf16.xpose.msra.mxu0 0
    %563 = vmatprep.subr.bf16.mxu0 0
    %564 = vmatpush1.bf16.xpose.msra.mxu0 0
    %565 = vmatprep.subr.bf16.mxu0 0
    %566 = vmatpush1.bf16.xpose.msra.mxu0 0
    %567 = vmatprep.subr.bf16.mxu0 0
    %568 = vmatpush1.bf16.xpose.msra.mxu0 0
    %569 = vmatprep.subr.bf16.mxu0 0
    %570 = vmatpush1.bf16.xpose.msra.mxu0 0
    %571 = vmatprep.subr.bf16.mxu0 0
    %572 = vmatpush1.bf16.xpose.msra.mxu0 0
    %573 = vmatprep.subr.bf16.mxu0 0
    %574 = vmatpush1.bf16.xpose.msra.mxu0 0
    %575 = vmatprep.subr.bf16.mxu0 0
    %576 = vmatpush1.bf16.xpose.msra.mxu0 %v559
    %577 = vmatprep.subr.bf16.mxu0 0
    %578 = vmatpush2.bf16.xpose.msra.mxu0 0
    %579 = vmatprep.subr.bf16.mxu0 0
    %580 = vmatpush2.bf16.xpose.msra.mxu0 0
    %581 = vmatprep.subr.bf16.mxu0 0
    %582 = vmatpush2.bf16.xpose.msra.mxu0 0
    %583 = vmatprep.subr.bf16.mxu0 0
    %584 = vmatpush2.bf16.xpose.msra.mxu0 0
    %585 = vmatprep.subr.bf16.mxu0 0
    %586 = vmatpush2.bf16.xpose.msra.mxu0 0
    %587 = vmatprep.subr.bf16.mxu0 0
    %588 = vmatpush2.bf16.xpose.msra.mxu0 0
    %589 = vmatprep.subr.bf16.mxu0 0
    %590 = vmatpush2.bf16.xpose.msra.mxu0 0
    %591 = vmatprep.subr.bf16.mxu0 0
    %592 = vmatpush2.bf16.xpose.msra.mxu0 0
    %593 = vmatprep.mubr.bf16.mxu0 0
    %594 = vmatmul.mubr.bf16.gmra.mxu0 %v556
    %v595 = vpop.f32.mrf.mxu0
    %v596 = vadd.f32 0.0, %v595
    %v597 = vpop.f32.mrf.mxu0
    %v598 = vpop.f32.mrf.mxu0
    %v599 = vpop.f32.mrf.mxu0
    %600 = vdwg.mxu0
    %v602 = vsel %vm554, %v549, 0
    %v605 = vsel %vm554, %v551, 0
    %607 = vmatprep.subr.bf16.mxu0 0
    %608 = vmatpush1.bf16.xpose.msra.mxu0 0
    %609 = vmatprep.subr.bf16.mxu0 0
    %610 = vmatpush1.bf16.xpose.msra.mxu0 0
    %611 = vmatprep.subr.bf16.mxu0 0
    %612 = vmatpush1.bf16.xpose.msra.mxu0 0
    %613 = vmatprep.subr.bf16.mxu0 0
    %614 = vmatpush1.bf16.xpose.msra.mxu0 0
    %615 = vmatprep.subr.bf16.mxu0 0
    %616 = vmatpush1.bf16.xpose.msra.mxu0 0
    %617 = vmatprep.subr.bf16.mxu0 0
    %618 = vmatpush1.bf16.xpose.msra.mxu0 0
    %619 = vmatprep.subr.bf16.mxu0 0
    %620 = vmatpush1.bf16.xpose.msra.mxu0 0
    %621 = vmatprep.subr.bf16.mxu0 0
    %622 = vmatpush1.bf16.xpose.msra.mxu0 %v605
    %623 = vmatprep.subr.bf16.mxu0 0
    %624 = vmatpush2.bf16.xpose.msra.mxu0 0
    %625 = vmatprep.subr.bf16.mxu0 0
    %626 = vmatpush2.bf16.xpose.msra.mxu0 0
    %627 = vmatprep.subr.bf16.mxu0 0
    %628 = vmatpush2.bf16.xpose.msra.mxu0 0
    %629 = vmatprep.subr.bf16.mxu0 0
    %630 = vmatpush2.bf16.xpose.msra.mxu0 0
    %631 = vmatprep.subr.bf16.mxu0 0
    %632 = vmatpush2.bf16.xpose.msra.mxu0 0
    %633 = vmatprep.subr.bf16.mxu0 0
    %634 = vmatpush2.bf16.xpose.msra.mxu0 0
    %635 = vmatprep.subr.bf16.mxu0 0
    %636 = vmatpush2.bf16.xpose.msra.mxu0 0
    %637 = vmatprep.subr.bf16.mxu0 0
    %638 = vmatpush2.bf16.xpose.msra.mxu0 0
    %639 = vmatprep.mubr.bf16.mxu0 0
    %640 = vmatmul.mubr.bf16.gmra.mxu0 %v602
    %v641 = vpop.f32.mrf.mxu0
    %v642 = vadd.f32 0.0, %v641
    %v643 = vpop.f32.mrf.mxu0
    %v644 = vpop.f32.mrf.mxu0
    %v645 = vpop.f32.mrf.mxu0
    %646 = vdwg.mxu0
    %v647 = vmul.f32 %v596, 0.25
    %v648 = vmul.f32 %v642, 0.25
    %v649 = vsel %vm204, 1, 0
    %vm650 = vcmp.eq.s32.totalorder %v649, 1
    %v651 = vsel %vm650, %v647, -1e+30
    %v652 = vsel %vm650, %v648, -1e+30
    %vm653 = vcmask 64512
    %v654 = vsel %vm653, %v651, -inf
    %655 = vmax.xlane.f32.xlu0 %v654
    %v656 = vpop.xlane.xlu0 %655
    %v657 = vsel %vm653, %v652, -inf
    %658 = vmax.xlane.f32.xlu0 %v657
    %v659 = vpop.xlane.xlu0 %658
    %v660 = vsub.f32 %v651, %v656
    %v661 = vsub.f32 %v652, %v659
    %v662 = vmul.f32 %v660, 1.442695
    %v663 = vpow.pop %v662
    %v664 = vmul.f32 %v661, 1.442695
    %v665 = vpow.pop %v664
    %v666 = vsel %vm653, %v663, 0.0
    %667 = vadd.xlane.f32.xlu0 %v666
    %v668 = vpop.xlane.xlu0 %667
    %v669 = vsel %vm653, %v665, 0.0
    %670 = vadd.xlane.f32.xlu0 %v669
    %v671 = vpop.xlane.xlu0 %670
    %v672 = vrcp.pop %v668
    %v673 = vrcp.pop %v671
    %v674 = vmul.f32 %v663, %v672
    %v675 = vmul.f32 %v665, %v673
    %v676 = vpack.c.bf16 %v674, %v674
    %v677 = vpack.c.bf16 %v675, %v675
    %v679 = vsel %vm653, %v676, 0
    %vm681 = vcmask 1043456
    %v683 = vsel %vm681, %v552, 0
    %685 = vmatprep.subr.bf16.mxu0 0
    %686 = vmatpush1.bf16.msra.mxu0 0
    %687 = vmatprep.subr.bf16.mxu0 0
    %688 = vmatpush1.bf16.msra.mxu0 0
    %689 = vmatprep.subr.bf16.mxu0 0
    %690 = vmatpush1.bf16.msra.mxu0 0
    %691 = vmatprep.subr.bf16.mxu0 0
    %692 = vmatpush1.bf16.msra.mxu0 0
    %693 = vmatprep.subr.bf16.mxu0 0
    %694 = vmatpush1.bf16.msra.mxu0 0
    %695 = vmatprep.subr.bf16.mxu0 0
    %696 = vmatpush1.bf16.msra.mxu0 0
    %697 = vmatprep.subr.bf16.mxu0 0
    %698 = vmatpush1.bf16.msra.mxu0 0
    %699 = vmatprep.subr.bf16.mxu0 0
    %700 = vmatpush1.bf16.msra.mxu0 %v683
    %701 = vmatprep.subr.bf16.mxu0 0
    %702 = vmatpush2.bf16.msra.mxu0 0
    %703 = vmatprep.subr.bf16.mxu0 0
    %704 = vmatpush2.bf16.msra.mxu0 0
    %705 = vmatprep.subr.bf16.mxu0 0
    %706 = vmatpush2.bf16.msra.mxu0 0
    %707 = vmatprep.subr.bf16.mxu0 0
    %708 = vmatpush2.bf16.msra.mxu0 0
    %709 = vmatprep.subr.bf16.mxu0 0
    %710 = vmatpush2.bf16.msra.mxu0 0
    %711 = vmatprep.subr.bf16.mxu0 0
    %712 = vmatpush2.bf16.msra.mxu0 0
    %713 = vmatprep.subr.bf16.mxu0 0
    %714 = vmatpush2.bf16.msra.mxu0 0
    %715 = vmatprep.subr.bf16.mxu0 0
    %716 = vmatpush2.bf16.msra.mxu0 0
    %717 = vmatprep.mubr.bf16.mxu0 0
    %718 = vmatmul.mubr.bf16.gmra.mxu0 %v679
    %v719 = vpop.f32.mrf.mxu0
    %v720 = vadd.f32 0.0, %v719
    %v721 = vpop.f32.mrf.mxu0
    %v722 = vpop.f32.mrf.mxu0
    %v723 = vpop.f32.mrf.mxu0
    %724 = vdwg.mxu0
    %v726 = vsel %vm653, %v677, 0
    %v729 = vsel %vm681, %v553, 0
    %731 = vmatprep.subr.bf16.mxu0 0
    %732 = vmatpush1.bf16.msra.mxu0 0
    %733 = vmatprep.subr.bf16.mxu0 0
    %734 = vmatpush1.bf16.msra.mxu0 0
    %735 = vmatprep.subr.bf16.mxu0 0
    %736 = vmatpush1.bf16.msra.mxu0 0
    %737 = vmatprep.subr.bf16.mxu0 0
    %738 = vmatpush1.bf16.msra.mxu0 0
    %739 = vmatprep.subr.bf16.mxu0 0
    %740 = vmatpush1.bf16.msra.mxu0 0
    %741 = vmatprep.subr.bf16.mxu0 0
    %742 = vmatpush1.bf16.msra.mxu0 0
    %743 = vmatprep.subr.bf16.mxu0 0
    %744 = vmatpush1.bf16.msra.mxu0 0
    %745 = vmatprep.subr.bf16.mxu0 0
    %746 = vmatpush1.bf16.msra.mxu0 %v729
    %747 = vmatprep.subr.bf16.mxu0 0
    %748 = vmatpush2.bf16.msra.mxu0 0
    %749 = vmatprep.subr.bf16.mxu0 0
    %750 = vmatpush2.bf16.msra.mxu0 0
    %751 = vmatprep.subr.bf16.mxu0 0
    %752 = vmatpush2.bf16.msra.mxu0 0
    %753 = vmatprep.subr.bf16.mxu0 0
    %754 = vmatpush2.bf16.msra.mxu0 0
    %755 = vmatprep.subr.bf16.mxu0 0
    %756 = vmatpush2.bf16.msra.mxu0 0
    %757 = vmatprep.subr.bf16.mxu0 0
    %758 = vmatpush2.bf16.msra.mxu0 0
    %759 = vmatprep.subr.bf16.mxu0 0
    %760 = vmatpush2.bf16.msra.mxu0 0
    %761 = vmatprep.subr.bf16.mxu0 0
    %762 = vmatpush2.bf16.msra.mxu0 0
    %763 = vmatprep.mubr.bf16.mxu0 0
    %764 = vmatmul.mubr.bf16.gmra.mxu0 %v726
    %v765 = vpop.f32.mrf.mxu0
    %v766 = vadd.f32 0.0, %v765
    %v767 = vpop.f32.mrf.mxu0
    %v768 = vpop.f32.mrf.mxu0
    %v769 = vpop.f32.mrf.mxu0
    %770 = vdwg.mxu0
    %v771 = vpack.c.bf16 %v766, %v720
    %773 = vrot.lane.b32.xlu0 %v548, 112
    %v774 = vpop.permute.xlu0 %773
    %776 = vrot.lane.b32.xlu0 %v550, 112
    %v777 = vpop.permute.xlu0 %776
    %v779 = vsel %vm554, %v774, 0
    %v782 = vsel %vm554, %v777, 0
    %784 = vmatprep.subr.bf16.mxu0 0
    %785 = vmatpush1.bf16.xpose.msra.mxu0 0
    %786 = vmatprep.subr.bf16.mxu0 0
    %787 = vmatpush1.bf16.xpose.msra.mxu0 0
    %788 = vmatprep.subr.bf16.mxu0 0
    %789 = vmatpush1.bf16.xpose.msra.mxu0 0
    %790 = vmatprep.subr.bf16.mxu0 0
    %791 = vmatpush1.bf16.xpose.msra.mxu0 0
    %792 = vmatprep.subr.bf16.mxu0 0
    %793 = vmatpush1.bf16.xpose.msra.mxu0 0
    %794 = vmatprep.subr.bf16.mxu0 0
    %795 = vmatpush1.bf16.xpose.msra.mxu0 0
    %796 = vmatprep.subr.bf16.mxu0 0
    %797 = vmatpush1.bf16.xpose.msra.mxu0 0
    %798 = vmatprep.subr.bf16.mxu0 0
    %799 = vmatpush1.bf16.xpose.msra.mxu0 %v782
    %800 = vmatprep.subr.bf16.mxu0 0
    %801 = vmatpush2.bf16.xpose.msra.mxu0 0
    %802 = vmatprep.subr.bf16.mxu0 0
    %803 = vmatpush2.bf16.xpose.msra.mxu0 0
    %804 = vmatprep.subr.bf16.mxu0 0
    %805 = vmatpush2.bf16.xpose.msra.mxu0 0
    %806 = vmatprep.subr.bf16.mxu0 0
    %807 = vmatpush2.bf16.xpose.msra.mxu0 0
    %808 = vmatprep.subr.bf16.mxu0 0
    %809 = vmatpush2.bf16.xpose.msra.mxu0 0
    %810 = vmatprep.subr.bf16.mxu0 0
    %811 = vmatpush2.bf16.xpose.msra.mxu0 0
    %812 = vmatprep.subr.bf16.mxu0 0
    %813 = vmatpush2.bf16.xpose.msra.mxu0 0
    %814 = vmatprep.subr.bf16.mxu0 0
    %815 = vmatpush2.bf16.xpose.msra.mxu0 0
    %816 = vmatprep.mubr.bf16.mxu0 0
    %817 = vmatmul.mubr.bf16.gmra.mxu0 %v779
    %v818 = vpop.f32.mrf.mxu0
    %v819 = vadd.f32 0.0, %v818
    %v820 = vpop.f32.mrf.mxu0
    %v821 = vpop.f32.mrf.mxu0
    %v822 = vpop.f32.mrf.mxu0
    %823 = vdwg.mxu0
    %825 = vrot.lane.b32.xlu0 %v549, 112
    %v826 = vpop.permute.xlu0 %825
    %828 = vrot.lane.b32.xlu0 %v551, 112
    %v829 = vpop.permute.xlu0 %828
    %v831 = vsel %vm554, %v826, 0
    %v834 = vsel %vm554, %v829, 0
    %836 = vmatprep.subr.bf16.mxu0 0
    %837 = vmatpush1.bf16.xpose.msra.mxu0 0
    %838 = vmatprep.subr.bf16.mxu0 0
    %839 = vmatpush1.bf16.xpose.msra.mxu0 0
    %840 = vmatprep.subr.bf16.mxu0 0
    %841 = vmatpush1.bf16.xpose.msra.mxu0 0
    %842 = vmatprep.subr.bf16.mxu0 0
    %843 = vmatpush1.bf16.xpose.msra.mxu0 0
    %844 = vmatprep.subr.bf16.mxu0 0
    %845 = vmatpush1.bf16.xpose.msra.mxu0 0
    %846 = vmatprep.subr.bf16.mxu0 0
    %847 = vmatpush1.bf16.xpose.msra.mxu0 0
    %848 = vmatprep.subr.bf16.mxu0 0
    %849 = vmatpush1.bf16.xpose.msra.mxu0 0
    %850 = vmatprep.subr.bf16.mxu0 0
    %851 = vmatpush1.bf16.xpose.msra.mxu0 %v834
    %852 = vmatprep.subr.bf16.mxu0 0
    %853 = vmatpush2.bf16.xpose.msra.mxu0 0
    %854 = vmatprep.subr.bf16.mxu0 0
    %855 = vmatpush2.bf16.xpose.msra.mxu0 0
    %856 = vmatprep.subr.bf16.mxu0 0
    %857 = vmatpush2.bf16.xpose.msra.mxu0 0
    %858 = vmatprep.subr.bf16.mxu0 0
    %859 = vmatpush2.bf16.xpose.msra.mxu0 0
    %860 = vmatprep.subr.bf16.mxu0 0
    %861 = vmatpush2.bf16.xpose.msra.mxu0 0
    %862 = vmatprep.subr.bf16.mxu0 0
    %863 = vmatpush2.bf16.xpose.msra.mxu0 0
    %864 = vmatprep.subr.bf16.mxu0 0
    %865 = vmatpush2.bf16.xpose.msra.mxu0 0
    %866 = vmatprep.subr.bf16.mxu0 0
    %867 = vmatpush2.bf16.xpose.msra.mxu0 0
    %868 = vmatprep.mubr.bf16.mxu0 0
    %869 = vmatmul.mubr.bf16.gmra.mxu0 %v831
    %v870 = vpop.f32.mrf.mxu0
    %v871 = vadd.f32 0.0, %v870
    %v872 = vpop.f32.mrf.mxu0
    %v873 = vpop.f32.mrf.mxu0
    %v874 = vpop.f32.mrf.mxu0
    %875 = vdwg.mxu0
    %v876 = vmul.f32 %v819, 0.25
    %v877 = vmul.f32 %v871, 0.25
    %v878 = vsel %vm650, %v876, -1e+30
    %v879 = vsel %vm650, %v877, -1e+30
    %v880 = vsel %vm653, %v878, -inf
    %881 = vmax.xlane.f32.xlu0 %v880
    %v882 = vpop.xlane.xlu0 %881
    %v883 = vsel %vm653, %v879, -inf
    %884 = vmax.xlane.f32.xlu0 %v883
    %v885 = vpop.xlane.xlu0 %884
    %v886 = vsub.f32 %v878, %v882
    %v887 = vsub.f32 %v879, %v885
    %v888 = vmul.f32 %v886, 1.442695
    %v889 = vpow.pop %v888
    %v890 = vmul.f32 %v887, 1.442695
    %v891 = vpow.pop %v890
    %v892 = vsel %vm653, %v889, 0.0
    %893 = vadd.xlane.f32.xlu0 %v892
    %v894 = vpop.xlane.xlu0 %893
    %v895 = vsel %vm653, %v891, 0.0
    %896 = vadd.xlane.f32.xlu0 %v895
    %v897 = vpop.xlane.xlu0 %896
    %v898 = vrcp.pop %v894
    %v899 = vrcp.pop %v897
    %v900 = vmul.f32 %v889, %v898
    %v901 = vmul.f32 %v891, %v899
    %v902 = vpack.c.bf16 %v900, %v900
    %v903 = vpack.c.bf16 %v901, %v901
    %905 = vrot.lane.b32.xlu0 %v552, 112
    %v906 = vpop.permute.xlu0 %905
    %v908 = vsel %vm653, %v902, 0
    %v911 = vsel %vm681, %v906, 0
    %913 = vmatprep.subr.bf16.mxu0 0
    %914 = vmatpush1.bf16.msra.mxu0 0
    %915 = vmatprep.subr.bf16.mxu0 0
    %916 = vmatpush1.bf16.msra.mxu0 0
    %917 = vmatprep.subr.bf16.mxu0 0
    %918 = vmatpush1.bf16.msra.mxu0 0
    %919 = vmatprep.subr.bf16.mxu0 0
    %920 = vmatpush1.bf16.msra.mxu0 0
    %921 = vmatprep.subr.bf16.mxu0 0
    %922 = vmatpush1.bf16.msra.mxu0 0
    %923 = vmatprep.subr.bf16.mxu0 0
    %924 = vmatpush1.bf16.msra.mxu0 0
    %925 = vmatprep.subr.bf16.mxu0 0
    %926 = vmatpush1.bf16.msra.mxu0 0
    %927 = vmatprep.subr.bf16.mxu0 0
    %928 = vmatpush1.bf16.msra.mxu0 %v911
    %929 = vmatprep.subr.bf16.mxu0 0
    %930 = vmatpush2.bf16.msra.mxu0 0
    %931 = vmatprep.subr.bf16.mxu0 0
    %932 = vmatpush2.bf16.msra.mxu0 0
    %933 = vmatprep.subr.bf16.mxu0 0
    %934 = vmatpush2.bf16.msra.mxu0 0
    %935 = vmatprep.subr.bf16.mxu0 0
    %936 = vmatpush2.bf16.msra.mxu0 0
    %937 = vmatprep.subr.bf16.mxu0 0
    %938 = vmatpush2.bf16.msra.mxu0 0
    %939 = vmatprep.subr.bf16.mxu0 0
    %940 = vmatpush2.bf16.msra.mxu0 0
    %941 = vmatprep.subr.bf16.mxu0 0
    %942 = vmatpush2.bf16.msra.mxu0 0
    %943 = vmatprep.subr.bf16.mxu0 0
    %944 = vmatpush2.bf16.msra.mxu0 0
    %945 = vmatprep.mubr.bf16.mxu0 0
    %946 = vmatmul.mubr.bf16.gmra.mxu0 %v908
    %v947 = vpop.f32.mrf.mxu0
    %v948 = vadd.f32 0.0, %v947
    %v949 = vpop.f32.mrf.mxu0
    %v950 = vpop.f32.mrf.mxu0
    %v951 = vpop.f32.mrf.mxu0
    %952 = vdwg.mxu0
    %954 = vrot.lane.b32.xlu0 %v553, 112
    %v955 = vpop.permute.xlu0 %954
    %v957 = vsel %vm653, %v903, 0
    %v960 = vsel %vm681, %v955, 0
    %962 = vmatprep.subr.bf16.mxu0 0
    %963 = vmatpush1.bf16.msra.mxu0 0
    %964 = vmatprep.subr.bf16.mxu0 0
    %965 = vmatpush1.bf16.msra.mxu0 0
    %966 = vmatprep.subr.bf16.mxu0 0
    %967 = vmatpush1.bf16.msra.mxu0 0
    %968 = vmatprep.subr.bf16.mxu0 0
    %969 = vmatpush1.bf16.msra.mxu0 0
    %970 = vmatprep.subr.bf16.mxu0 0
    %971 = vmatpush1.bf16.msra.mxu0 0
    %972 = vmatprep.subr.bf16.mxu0 0
    %973 = vmatpush1.bf16.msra.mxu0 0
    %974 = vmatprep.subr.bf16.mxu0 0
    %975 = vmatpush1.bf16.msra.mxu0 0
    %976 = vmatprep.subr.bf16.mxu0 0
    %977 = vmatpush1.bf16.msra.mxu0 %v960
    %978 = vmatprep.subr.bf16.mxu0 0
    %979 = vmatpush2.bf16.msra.mxu0 0
    %980 = vmatprep.subr.bf16.mxu0 0
    %981 = vmatpush2.bf16.msra.mxu0 0
    %982 = vmatprep.subr.bf16.mxu0 0
    %983 = vmatpush2.bf16.msra.mxu0 0
    %984 = vmatprep.subr.bf16.mxu0 0
    %985 = vmatpush2.bf16.msra.mxu0 0
    %986 = vmatprep.subr.bf16.mxu0 0
    %987 = vmatpush2.bf16.msra.mxu0 0
    %988 = vmatprep.subr.bf16.mxu0 0
    %989 = vmatpush2.bf16.msra.mxu0 0
    %990 = vmatprep.subr.bf16.mxu0 0
    %991 = vmatpush2.bf16.msra.mxu0 0
    %992 = vmatprep.subr.bf16.mxu0 0
    %993 = vmatpush2.bf16.msra.mxu0 0
    %994 = vmatprep.mubr.bf16.mxu0 0
    %995 = vmatmul.mubr.bf16.gmra.mxu0 %v957
    %v996 = vpop.f32.mrf.mxu0
    %v997 = vadd.f32 0.0, %v996
    %v998 = vpop.f32.mrf.mxu0
    %v999 = vpop.f32.mrf.mxu0
    %v1000 = vpop.f32.mrf.mxu0
    %1001 = vdwg.mxu0
    %v1002 = vpack.c.bf16 %v997, %v948
    %v1005 = vunpack.c.l.b16 %v236
    %v1006 = vunpack.c.l.b16 %v237
    %v1007 = vpack.c.b16 %v1006, %v1005
    %v1010 = vsel %vm554, %v1002, 0
    %1012 = vmatprep.subr.bf16.mxu0 0
    %1013 = vmatpush1.bf16.msra.mxu0 0
    %1014 = vmatprep.subr.bf16.mxu0 0
    %1015 = vmatpush1.bf16.msra.mxu0 0
    %1016 = vmatprep.subr.bf16.mxu0 0
    %1017 = vmatpush1.bf16.msra.mxu0 0
    %1018 = vmatprep.subr.bf16.mxu0 0
    %1019 = vmatpush1.bf16.msra.mxu0 0
    %1020 = vmatprep.subr.bf16.mxu0 0
    %1021 = vmatpush1.bf16.msra.mxu0 0
    %1022 = vmatprep.subr.bf16.mxu0 0
    %1023 = vmatpush1.bf16.msra.mxu0 0
    %1024 = vmatprep.subr.bf16.mxu0 0
    %1025 = vmatpush1.bf16.msra.mxu0 0
    %1026 = vmatprep.subr.bf16.mxu0 0
    %1027 = vmatpush1.bf16.msra.mxu0 %v1007
    %1028 = vmatprep.subr.bf16.mxu0 0
    %1029 = vmatpush2.bf16.msra.mxu0 0
    %1030 = vmatprep.subr.bf16.mxu0 0
    %1031 = vmatpush2.bf16.msra.mxu0 0
    %1032 = vmatprep.subr.bf16.mxu0 0
    %1033 = vmatpush2.bf16.msra.mxu0 0
    %1034 = vmatprep.subr.bf16.mxu0 0
    %1035 = vmatpush2.bf16.msra.mxu0 0
    %1036 = vmatprep.subr.bf16.mxu0 0
    %1037 = vmatpush2.bf16.msra.mxu0 0
    %1038 = vmatprep.subr.bf16.mxu0 0
    %1039 = vmatpush2.bf16.msra.mxu0 0
    %1040 = vmatprep.subr.bf16.mxu0 0
    %1041 = vmatpush2.bf16.msra.mxu0 0
    %1042 = vmatprep.subr.bf16.mxu0 0
    %1043 = vmatpush2.bf16.msra.mxu0 0
    %1044 = vmatprep.mubr.bf16.mxu0 0
    %1045 = vmatmul.mubr.bf16.gmra.mxu0 %v1010
    %v1046 = vpop.f32.mrf.mxu0
    %v1047 = vadd.f32 0.0, %v1046
    %v1048 = vpop.f32.mrf.mxu0
    %v1049 = vpop.f32.mrf.mxu0
    %v1050 = vadd.f32 0.0, %v1049
    %v1051 = vpop.f32.mrf.mxu0
    %1052 = vdwg.mxu0
    %v1055 = vunpack.c.l.b16 %v234
    %v1056 = vunpack.c.l.b16 %v235
    %v1057 = vpack.c.b16 %v1056, %v1055
    %v1060 = vsel %vm554, %v771, 0
    %1062 = vmatprep.subr.bf16.mxu0 0
    %1063 = vmatpush1.bf16.msra.mxu0 0
    %1064 = vmatprep.subr.bf16.mxu0 0
    %1065 = vmatpush1.bf16.msra.mxu0 0
    %1066 = vmatprep.subr.bf16.mxu0 0
    %1067 = vmatpush1.bf16.msra.mxu0 0
    %1068 = vmatprep.subr.bf16.mxu0 0
    %1069 = vmatpush1.bf16.msra.mxu0 0
    %1070 = vmatprep.subr.bf16.mxu0 0
    %1071 = vmatpush1.bf16.msra.mxu0 0
    %1072 = vmatprep.subr.bf16.mxu0 0
    %1073 = vmatpush1.bf16.msra.mxu0 0
    %1074 = vmatprep.subr.bf16.mxu0 0
    %1075 = vmatpush1.bf16.msra.mxu0 0
    %1076 = vmatprep.subr.bf16.mxu0 0
    %1077 = vmatpush1.bf16.msra.mxu0 %v1057
    %1078 = vmatprep.subr.bf16.mxu0 0
    %1079 = vmatpush2.bf16.msra.mxu0 0
    %1080 = vmatprep.subr.bf16.mxu0 0
    %1081 = vmatpush2.bf16.msra.mxu0 0
    %1082 = vmatprep.subr.bf16.mxu0 0
    %1083 = vmatpush2.bf16.msra.mxu0 0
    %1084 = vmatprep.subr.bf16.mxu0 0
    %1085 = vmatpush2.bf16.msra.mxu0 0
    %1086 = vmatprep.subr.bf16.mxu0 0
    %1087 = vmatpush2.bf16.msra.mxu0 0
    %1088 = vmatprep.subr.bf16.mxu0 0
    %1089 = vmatpush2.bf16.msra.mxu0 0
    %1090 = vmatprep.subr.bf16.mxu0 0
    %1091 = vmatpush2.bf16.msra.mxu0 0
    %1092 = vmatprep.subr.bf16.mxu0 0
    %1093 = vmatpush2.bf16.msra.mxu0 0
    %1094 = vmatprep.mubr.bf16.mxu0 0
    %1095 = vmatmul.mubr.bf16.gmra.mxu0 %v1060
    %v1096 = vpop.f32.mrf.mxu0
    %v1097 = vadd.f32 %v1047, %v1096
    %v1098 = vpop.f32.mrf.mxu0
    %v1099 = vpop.f32.mrf.mxu0
    %v1100 = vadd.f32 %v1050, %v1099
    %v1101 = vpop.f32.mrf.mxu0
    %1102 = vdwg.mxu0
    %1103 = vrot.lane.b32.xlu0 %v548, 96
    %v1104 = vpop.permute.xlu0 %1103
    %1105 = vrot.lane.b32.xlu0 %v550, 96
    %v1106 = vpop.permute.xlu0 %1105
    %v1108 = vsel %vm554, %v1104, 0
    %v1111 = vsel %vm554, %v1106, 0
    %1113 = vmatprep.subr.bf16.mxu0 0
    %1114 = vmatpush1.bf16.xpose.msra.mxu0 0
    %1115 = vmatprep.subr.bf16.mxu0 0
    %1116 = vmatpush1.bf16.xpose.msra.mxu0 0
    %1117 = vmatprep.subr.bf16.mxu0 0
    %1118 = vmatpush1.bf16.xpose.msra.mxu0 0
    %1119 = vmatprep.subr.bf16.mxu0 0
    %1120 = vmatpush1.bf16.xpose.msra.mxu0 0
    %1121 = vmatprep.subr.bf16.mxu0 0
    %1122 = vmatpush1.bf16.xpose.msra.mxu0 0
    %1123 = vmatprep.subr.bf16.mxu0 0
    %1124 = vmatpush1.bf16.xpose.msra.mxu0 0
    %1125 = vmatprep.subr.bf16.mxu0 0
    %1126 = vmatpush1.bf16.xpose.msra.mxu0 0
    %1127 = vmatprep.subr.bf16.mxu0 0
    %1128 = vmatpush1.bf16.xpose.msra.mxu0 %v1111
    %1129 = vmatprep.subr.bf16.mxu0 0
    %1130 = vmatpush2.bf16.xpose.msra.mxu0 0
    %1131 = vmatprep.subr.bf16.mxu0 0
    %1132 = vmatpush2.bf16.xpose.msra.mxu0 0
    %1133 = vmatprep.subr.bf16.mxu0 0
    %1134 = vmatpush2.bf16.xpose.msra.mxu0 0
    %1135 = vmatprep.subr.bf16.mxu0 0
    %1136 = vmatpush2.bf16.xpose.msra.mxu0 0
    %1137 = vmatprep.subr.bf16.mxu0 0
    %1138 = vmatpush2.bf16.xpose.msra.mxu0 0
    %1139 = vmatprep.subr.bf16.mxu0 0
    %1140 = vmatpush2.bf16.xpose.msra.mxu0 0
    %1141 = vmatprep.subr.bf16.mxu0 0
    %1142 = vmatpush2.bf16.xpose.msra.mxu0 0
    %1143 = vmatprep.subr.bf16.mxu0 0
    %1144 = vmatpush2.bf16.xpose.msra.mxu0 0
    %1145 = vmatprep.mubr.bf16.mxu0 0
    %1146 = vmatmul.mubr.bf16.gmra.mxu0 %v1108
    %v1147 = vpop.f32.mrf.mxu0
    %v1148 = vadd.f32 0.0, %v1147
    %v1149 = vpop.f32.mrf.mxu0
    %v1150 = vpop.f32.mrf.mxu0
    %v1151 = vpop.f32.mrf.mxu0
    %1152 = vdwg.mxu0
    %1153 = vrot.lane.b32.xlu0 %v549, 96
    %v1154 = vpop.permute.xlu0 %1153
    %1155 = vrot.lane.b32.xlu0 %v551, 96
    %v1156 = vpop.permute.xlu0 %1155
    %v1158 = vsel %vm554, %v1154, 0
    %v1161 = vsel %vm554, %v1156, 0
    %1163 = vmatprep.subr.bf16.mxu0 0
    %1164 = vmatpush1.bf16.xpose.msra.mxu0 0
    %1165 = vmatprep.subr.bf16.mxu0 0
    %1166 = vmatpush1.bf16.xpose.msra.mxu0 0
    %1167 = vmatprep.subr.bf16.mxu0 0
    %1168 = vmatpush1.bf16.xpose.msra.mxu0 0
    %1169 = vmatprep.subr.bf16.mxu0 0
    %1170 = vmatpush1.bf16.xpose.msra.mxu0 0
    %1171 = vmatprep.subr.bf16.mxu0 0
    %1172 = vmatpush1.bf16.xpose.msra.mxu0 0
    %1173 = vmatprep.subr.bf16.mxu0 0
    %1174 = vmatpush1.bf16.xpose.msra.mxu0 0
    %1175 = vmatprep.subr.bf16.mxu0 0
    %1176 = vmatpush1.bf16.xpose.msra.mxu0 0
    %1177 = vmatprep.subr.bf16.mxu0 0
    %1178 = vmatpush1.bf16.xpose.msra.mxu0 %v1161
    %1179 = vmatprep.subr.bf16.mxu0 0
    %1180 = vmatpush2.bf16.xpose.msra.mxu0 0
    %1181 = vmatprep.subr.bf16.mxu0 0
    %1182 = vmatpush2.bf16.xpose.msra.mxu0 0
    %1183 = vmatprep.subr.bf16.mxu0 0
    %1184 = vmatpush2.bf16.xpose.msra.mxu0 0
    %1185 = vmatprep.subr.bf16.mxu0 0
    %1186 = vmatpush2.bf16.xpose.msra.mxu0 0
    %1187 = vmatprep.subr.bf16.mxu0 0
    %1188 = vmatpush2.bf16.xpose.msra.mxu0 0
    %1189 = vmatprep.subr.bf16.mxu0 0
    %1190 = vmatpush2.bf16.xpose.msra.mxu0 0
    %1191 = vmatprep.subr.bf16.mxu0 0
    %1192 = vmatpush2.bf16.xpose.msra.mxu0 0
    %1193 = vmatprep.subr.bf16.mxu0 0
    %1194 = vmatpush2.bf16.xpose.msra.mxu0 0
    %1195 = vmatprep.mubr.bf16.mxu0 0
    %1196 = vmatmul.mubr.bf16.gmra.mxu0 %v1158
    %v1197 = vpop.f32.mrf.mxu0
    %v1198 = vadd.f32 0.0, %v1197
    %v1199 = vpop.f32.mrf.mxu0
    %v1200 = vpop.f32.mrf.mxu0
    %v1201 = vpop.f32.mrf.mxu0
    %1202 = vdwg.mxu0
    %v1203 = vmul.f32 %v1148, 0.25
    %v1204 = vmul.f32 %v1198, 0.25
    %v1205 = vsel %vm650, %v1203, -1e+30
    %v1206 = vsel %vm650, %v1204, -1e+30
    %v1207 = vsel %vm653, %v1205, -inf
    %1208 = vmax.xlane.f32.xlu0 %v1207
    %v1209 = vpop.xlane.xlu0 %1208
    %v1210 = vsel %vm653, %v1206, -inf
    %1211 = vmax.xlane.f32.xlu0 %v1210
    %v1212 = vpop.xlane.xlu0 %1211
    %v1213 = vsub.f32 %v1205, %v1209
    %v1214 = vsub.f32 %v1206, %v1212
    %v1215 = vmul.f32 %v1213, 1.442695
    %v1216 = vpow.pop %v1215
    %v1217 = vmul.f32 %v1214, 1.442695
    %v1218 = vpow.pop %v1217
    %v1219 = vsel %vm653, %v1216, 0.0
    %1220 = vadd.xlane.f32.xlu0 %v1219
    %v1221 = vpop.xlane.xlu0 %1220
    %v1222 = vsel %vm653, %v1218, 0.0
    %1223 = vadd.xlane.f32.xlu0 %v1222
    %v1224 = vpop.xlane.xlu0 %1223
    %v1225 = vrcp.pop %v1221
    %v1226 = vrcp.pop %v1224
    %v1227 = vmul.f32 %v1216, %v1225
    %v1228 = vmul.f32 %v1218, %v1226
    %v1229 = vpack.c.bf16 %v1227, %v1227
    %v1230 = vpack.c.bf16 %v1228, %v1228
    %1231 = vrot.lane.b32.xlu0 %v552, 96
    %v1232 = vpop.permute.xlu0 %1231
    %v1234 = vsel %vm653, %v1229, 0
    %v1237 = vsel %vm681, %v1232, 0
    %1239 = vmatprep.subr.bf16.mxu0 0
    %1240 = vmatpush1.bf16.msra.mxu0 0
    %1241 = vmatprep.subr.bf16.mxu0 0
    %1242 = vmatpush1.bf16.msra.mxu0 0
    %1243 = vmatprep.subr.bf16.mxu0 0
    %1244 = vmatpush1.bf16.msra.mxu0 0
    %1245 = vmatprep.subr.bf16.mxu0 0
    %1246 = vmatpush1.bf16.msra.mxu0 0
    %1247 = vmatprep.subr.bf16.mxu0 0
    %1248 = vmatpush1.bf16.msra.mxu0 0
    %1249 = vmatprep.subr.bf16.mxu0 0
    %1250 = vmatpush1.bf16.msra.mxu0 0
    %1251 = vmatprep.subr.bf16.mxu0 0
    %1252 = vmatpush1.bf16.msra.mxu0 0
    %1253 = vmatprep.subr.bf16.mxu0 0
    %1254 = vmatpush1.bf16.msra.mxu0 %v1237
    %1255 = vmatprep.subr.bf16.mxu0 0
    %1256 = vmatpush2.bf16.msra.mxu0 0
    %1257 = vmatprep.subr.bf16.mxu0 0
    %1258 = vmatpush2.bf16.msra.mxu0 0
    %1259 = vmatprep.subr.bf16.mxu0 0
    %1260 = vmatpush2.bf16.msra.mxu0 0
    %1261 = vmatprep.subr.bf16.mxu0 0
    %1262 = vmatpush2.bf16.msra.mxu0 0
    %1263 = vmatprep.subr.bf16.mxu0 0
    %1264 = vmatpush2.bf16.msra.mxu0 0
    %1265 = vmatprep.subr.bf16.mxu0 0
    %1266 = vmatpush2.bf16.msra.mxu0 0
    %1267 = vmatprep.subr.bf16.mxu0 0
    %1268 = vmatpush2.bf16.msra.mxu0 0
    %1269 = vmatprep.subr.bf16.mxu0 0
    %1270 = vmatpush2.bf16.msra.mxu0 0
    %1271 = vmatprep.mubr.bf16.mxu0 0
    %1272 = vmatmul.mubr.bf16.gmra.mxu0 %v1234
    %v1273 = vpop.f32.mrf.mxu0
    %v1274 = vadd.f32 0.0, %v1273
    %v1275 = vpop.f32.mrf.mxu0
    %v1276 = vpop.f32.mrf.mxu0
    %v1277 = vpop.f32.mrf.mxu0
    %1278 = vdwg.mxu0
    %1279 = vrot.lane.b32.xlu0 %v553, 96
    %v1280 = vpop.permute.xlu0 %1279
    %v1282 = vsel %vm653, %v1230, 0
    %v1285 = vsel %vm681, %v1280, 0
    %1287 = vmatprep.subr.bf16.mxu0 0
    %1288 = vmatpush1.bf16.msra.mxu0 0
    %1289 = vmatprep.subr.bf16.mxu0 0
    %1290 = vmatpush1.bf16.msra.mxu0 0
    %1291 = vmatprep.subr.bf16.mxu0 0
    %1292 = vmatpush1.bf16.msra.mxu0 0
    %1293 = vmatprep.subr.bf16.mxu0 0
    %1294 = vmatpush1.bf16.msra.mxu0 0
    %1295 = vmatprep.subr.bf16.mxu0 0
    %1296 = vmatpush1.bf16.msra.mxu0 0
    %1297 = vmatprep.subr.bf16.mxu0 0
    %1298 = vmatpush1.bf16.msra.mxu0 0
    %1299 = vmatprep.subr.bf16.mxu0 0
    %1300 = vmatpush1.bf16.msra.mxu0 0
    %1301 = vmatprep.subr.bf16.mxu0 0
    %1302 = vmatpush1.bf16.msra.mxu0 %v1285
    %1303 = vmatprep.subr.bf16.mxu0 0
    %1304 = vmatpush2.bf16.msra.mxu0 0
    %1305 = vmatprep.subr.bf16.mxu0 0
    %1306 = vmatpush2.bf16.msra.mxu0 0
    %1307 = vmatprep.subr.bf16.mxu0 0
    %1308 = vmatpush2.bf16.msra.mxu0 0
    %1309 = vmatprep.subr.bf16.mxu0 0
    %1310 = vmatpush2.bf16.msra.mxu0 0
    %1311 = vmatprep.subr.bf16.mxu0 0
    %1312 = vmatpush2.bf16.msra.mxu0 0
    %1313 = vmatprep.subr.bf16.mxu0 0
    %1314 = vmatpush2.bf16.msra.mxu0 0
    %1315 = vmatprep.subr.bf16.mxu0 0
    %1316 = vmatpush2.bf16.msra.mxu0 0
    %1317 = vmatprep.subr.bf16.mxu0 0
    %1318 = vmatpush2.bf16.msra.mxu0 0
    %1319 = vmatprep.mubr.bf16.mxu0 0
    %1320 = vmatmul.mubr.bf16.gmra.mxu0 %v1282
    %v1321 = vpop.f32.mrf.mxu0
    %v1322 = vadd.f32 0.0, %v1321
    %v1323 = vpop.f32.mrf.mxu0
    %v1324 = vpop.f32.mrf.mxu0
    %v1325 = vpop.f32.mrf.mxu0
    %1326 = vdwg.mxu0
    %v1327 = vpack.c.bf16 %v1322, %v1274
    %v1330 = vunpack.c.l.b16 %v238
    %v1331 = vunpack.c.l.b16 %v239
    %v1332 = vpack.c.b16 %v1331, %v1330
    %v1335 = vsel %vm554, %v1327, 0
    %1337 = vmatprep.subr.bf16.mxu0 0
    %1338 = vmatpush1.bf16.msra.mxu0 0
    %1339 = vmatprep.subr.bf16.mxu0 0
    %1340 = vmatpush1.bf16.msra.mxu0 0
    %1341 = vmatprep.subr.bf16.mxu0 0
    %1342 = vmatpush1.bf16.msra.mxu0 0
    %1343 = vmatprep.subr.bf16.mxu0 0
    %1344 = vmatpush1.bf16.msra.mxu0 0
    %1345 = vmatprep.subr.bf16.mxu0 0
    %1346 = vmatpush1.bf16.msra.mxu0 0
    %1347 = vmatprep.subr.bf16.mxu0 0
    %1348 = vmatpush1.bf16.msra.mxu0 0
    %1349 = vmatprep.subr.bf16.mxu0 0
    %1350 = vmatpush1.bf16.msra.mxu0 0
    %1351 = vmatprep.subr.bf16.mxu0 0
    %1352 = vmatpush1.bf16.msra.mxu0 %v1332
    %1353 = vmatprep.subr.bf16.mxu0 0
    %1354 = vmatpush2.bf16.msra.mxu0 0
    %1355 = vmatprep.subr.bf16.mxu0 0
    %1356 = vmatpush2.bf16.msra.mxu0 0
    %1357 = vmatprep.subr.bf16.mxu0 0
    %1358 = vmatpush2.bf16.msra.mxu0 0
    %1359 = vmatprep.subr.bf16.mxu0 0
    %1360 = vmatpush2.bf16.msra.mxu0 0
    %1361 = vmatprep.subr.bf16.mxu0 0
    %1362 = vmatpush2.bf16.msra.mxu0 0
    %1363 = vmatprep.subr.bf16.mxu0 0
    %1364 = vmatpush2.bf16.msra.mxu0 0
    %1365 = vmatprep.subr.bf16.mxu0 0
    %1366 = vmatpush2.bf16.msra.mxu0 0
    %1367 = vmatprep.subr.bf16.mxu0 0
    %1368 = vmatpush2.bf16.msra.mxu0 0
    %1369 = vmatprep.mubr.bf16.mxu0 0
    %1370 = vmatmul.mubr.bf16.gmra.mxu0 %v1335
    %v1371 = vpop.f32.mrf.mxu0
    %v1372 = vadd.f32 0.0, %v1371
    %v1373 = vpop.f32.mrf.mxu0
    %v1374 = vpop.f32.mrf.mxu0
    %v1375 = vadd.f32 0.0, %v1374
    %v1376 = vpop.f32.mrf.mxu0
    %1377 = vdwg.mxu0
    %v1378 = vadd.f32 %v1097, %v1372
    %v1379 = vadd.f32 %v1100, %v1375
    %1380 = vrot.lane.b32.xlu0 %v548, 80
    %v1381 = vpop.permute.xlu0 %1380
    %1382 = vrot.lane.b32.xlu0 %v550, 80
    %v1383 = vpop.permute.xlu0 %1382
    %v1385 = vsel %vm554, %v1381, 0
    %v1388 = vsel %vm554, %v1383, 0
    %1390 = vmatprep.subr.bf16.mxu0 0
    %1391 = vmatpush1.bf16.xpose.msra.mxu0 0
    %1392 = vmatprep.subr.bf16.mxu0 0
    %1393 = vmatpush1.bf16.xpose.msra.mxu0 0
    %1394 = vmatprep.subr.bf16.mxu0 0
    %1395 = vmatpush1.bf16.xpose.msra.mxu0 0
    %1396 = vmatprep.subr.bf16.mxu0 0
    %1397 = vmatpush1.bf16.xpose.msra.mxu0 0
    %1398 = vmatprep.subr.bf16.mxu0 0
    %1399 = vmatpush1.bf16.xpose.msra.mxu0 0
    %1400 = vmatprep.subr.bf16.mxu0 0
    %1401 = vmatpush1.bf16.xpose.msra.mxu0 0
    %1402 = vmatprep.subr.bf16.mxu0 0
    %1403 = vmatpush1.bf16.xpose.msra.mxu0 0
    %1404 = vmatprep.subr.bf16.mxu0 0
    %1405 = vmatpush1.bf16.xpose.msra.mxu0 %v1388
    %1406 = vmatprep.subr.bf16.mxu0 0
    %1407 = vmatpush2.bf16.xpose.msra.mxu0 0
    %1408 = vmatprep.subr.bf16.mxu0 0
    %1409 = vmatpush2.bf16.xpose.msra.mxu0 0
    %1410 = vmatprep.subr.bf16.mxu0 0
    %1411 = vmatpush2.bf16.xpose.msra.mxu0 0
    %1412 = vmatprep.subr.bf16.mxu0 0
    %1413 = vmatpush2.bf16.xpose.msra.mxu0 0
    %1414 = vmatprep.subr.bf16.mxu0 0
    %1415 = vmatpush2.bf16.xpose.msra.mxu0 0
    %1416 = vmatprep.subr.bf16.mxu0 0
    %1417 = vmatpush2.bf16.xpose.msra.mxu0 0
    %1418 = vmatprep.subr.bf16.mxu0 0
    %1419 = vmatpush2.bf16.xpose.msra.mxu0 0
    %1420 = vmatprep.subr.bf16.mxu0 0
    %1421 = vmatpush2.bf16.xpose.msra.mxu0 0
    %1422 = vmatprep.mubr.bf16.mxu0 0
    %1423 = vmatmul.mubr.bf16.gmra.mxu0 %v1385
    %v1424 = vpop.f32.mrf.mxu0
    %v1425 = vadd.f32 0.0, %v1424
    %v1426 = vpop.f32.mrf.mxu0
    %v1427 = vpop.f32.mrf.mxu0
    %v1428 = vpop.f32.mrf.mxu0
    %1429 = vdwg.mxu0
    %1430 = vrot.lane.b32.xlu0 %v549, 80
    %v1431 = vpop.permute.xlu0 %1430
    %1432 = vrot.lane.b32.xlu0 %v551, 80
    %v1433 = vpop.permute.xlu0 %1432
    %v1435 = vsel %vm554, %v1431, 0
    %v1438 = vsel %vm554, %v1433, 0
    %1440 = vmatprep.subr.bf16.mxu0 0
    %1441 = vmatpush1.bf16.xpose.msra.mxu0 0
    %1442 = vmatprep.subr.bf16.mxu0 0
    %1443 = vmatpush1.bf16.xpose.msra.mxu0 0
    %1444 = vmatprep.subr.bf16.mxu0 0
    %1445 = vmatpush1.bf16.xpose.msra.mxu0 0
    %1446 = vmatprep.subr.bf16.mxu0 0
    %1447 = vmatpush1.bf16.xpose.msra.mxu0 0
    %1448 = vmatprep.subr.bf16.mxu0 0
    %1449 = vmatpush1.bf16.xpose.msra.mxu0 0
    %1450 = vmatprep.subr.bf16.mxu0 0
    %1451 = vmatpush1.bf16.xpose.msra.mxu0 0
    %1452 = vmatprep.subr.bf16.mxu0 0
    %1453 = vmatpush1.bf16.xpose.msra.mxu0 0
    %1454 = vmatprep.subr.bf16.mxu0 0
    %1455 = vmatpush1.bf16.xpose.msra.mxu0 %v1438
    %1456 = vmatprep.subr.bf16.mxu0 0
    %1457 = vmatpush2.bf16.xpose.msra.mxu0 0
    %1458 = vmatprep.subr.bf16.mxu0 0
    %1459 = vmatpush2.bf16.xpose.msra.mxu0 0
    %1460 = vmatprep.subr.bf16.mxu0 0
    %1461 = vmatpush2.bf16.xpose.msra.mxu0 0
    %1462 = vmatprep.subr.bf16.mxu0 0
    %1463 = vmatpush2.bf16.xpose.msra.mxu0 0
    %1464 = vmatprep.subr.bf16.mxu0 0
    %1465 = vmatpush2.bf16.xpose.msra.mxu0 0
    %1466 = vmatprep.subr.bf16.mxu0 0
    %1467 = vmatpush2.bf16.xpose.msra.mxu0 0
    %1468 = vmatprep.subr.bf16.mxu0 0
    %1469 = vmatpush2.bf16.xpose.msra.mxu0 0
    %1470 = vmatprep.subr.bf16.mxu0 0
    %1471 = vmatpush2.bf16.xpose.msra.mxu0 0
    %1472 = vmatprep.mubr.bf16.mxu0 0
    %1473 = vmatmul.mubr.bf16.gmra.mxu0 %v1435
    %v1474 = vpop.f32.mrf.mxu0
    %v1475 = vadd.f32 0.0, %v1474
    %v1476 = vpop.f32.mrf.mxu0
    %v1477 = vpop.f32.mrf.mxu0
    %v1478 = vpop.f32.mrf.mxu0
    %1479 = vdwg.mxu0
    %v1480 = vmul.f32 %v1425, 0.25
    %v1481 = vmul.f32 %v1475, 0.25
    %v1482 = vsel %vm650, %v1480, -1e+30
    %v1483 = vsel %vm650, %v1481, -1e+30
    %v1484 = vsel %vm653, %v1482, -inf
    %1485 = vmax.xlane.f32.xlu0 %v1484
    %v1486 = vpop.xlane.xlu0 %1485
    %v1487 = vsel %vm653, %v1483, -inf
    %1488 = vmax.xlane.f32.xlu0 %v1487
    %v1489 = vpop.xlane.xlu0 %1488
    %v1490 = vsub.f32 %v1482, %v1486
    %v1491 = vsub.f32 %v1483, %v1489
    %v1492 = vmul.f32 %v1490, 1.442695
    %v1493 = vpow.pop %v1492
    %v1494 = vmul.f32 %v1491, 1.442695
    %v1495 = vpow.pop %v1494
    %v1496 = vsel %vm653, %v1493, 0.0
    %1497 = vadd.xlane.f32.xlu0 %v1496
    %v1498 = vpop.xlane.xlu0 %1497
    %v1499 = vsel %vm653, %v1495, 0.0
    %1500 = vadd.xlane.f32.xlu0 %v1499
    %v1501 = vpop.xlane.xlu0 %1500
    %v1502 = vrcp.pop %v1498
    %v1503 = vrcp.pop %v1501
    %v1504 = vmul.f32 %v1493, %v1502
    %v1505 = vmul.f32 %v1495, %v1503
    %v1506 = vpack.c.bf16 %v1504, %v1504
    %v1507 = vpack.c.bf16 %v1505, %v1505
    %1508 = vrot.lane.b32.xlu0 %v552, 80
    %v1509 = vpop.permute.xlu0 %1508
    %v1511 = vsel %vm653, %v1506, 0
    %v1514 = vsel %vm681, %v1509, 0
    %1516 = vmatprep.subr.bf16.mxu0 0
    %1517 = vmatpush1.bf16.msra.mxu0 0
    %1518 = vmatprep.subr.bf16.mxu0 0
    %1519 = vmatpush1.bf16.msra.mxu0 0
    %1520 = vmatprep.subr.bf16.mxu0 0
    %1521 = vmatpush1.bf16.msra.mxu0 0
    %1522 = vmatprep.subr.bf16.mxu0 0
    %1523 = vmatpush1.bf16.msra.mxu0 0
    %1524 = vmatprep.subr.bf16.mxu0 0
    %1525 = vmatpush1.bf16.msra.mxu0 0
    %1526 = vmatprep.subr.bf16.mxu0 0
    %1527 = vmatpush1.bf16.msra.mxu0 0
    %1528 = vmatprep.subr.bf16.mxu0 0
    %1529 = vmatpush1.bf16.msra.mxu0 0
    %1530 = vmatprep.subr.bf16.mxu0 0
    %1531 = vmatpush1.bf16.msra.mxu0 %v1514
    %1532 = vmatprep.subr.bf16.mxu0 0
    %1533 = vmatpush2.bf16.msra.mxu0 0
    %1534 = vmatprep.subr.bf16.mxu0 0
    %1535 = vmatpush2.bf16.msra.mxu0 0
    %1536 = vmatprep.subr.bf16.mxu0 0
    %1537 = vmatpush2.bf16.msra.mxu0 0
    %1538 = vmatprep.subr.bf16.mxu0 0
    %1539 = vmatpush2.bf16.msra.mxu0 0
    %1540 = vmatprep.subr.bf16.mxu0 0
    %1541 = vmatpush2.bf16.msra.mxu0 0
    %1542 = vmatprep.subr.bf16.mxu0 0
    %1543 = vmatpush2.bf16.msra.mxu0 0
    %1544 = vmatprep.subr.bf16.mxu0 0
    %1545 = vmatpush2.bf16.msra.mxu0 0
    %1546 = vmatprep.subr.bf16.mxu0 0
    %1547 = vmatpush2.bf16.msra.mxu0 0
    %1548 = vmatprep.mubr.bf16.mxu0 0
    %1549 = vmatmul.mubr.bf16.gmra.mxu0 %v1511
    %v1550 = vpop.f32.mrf.mxu0
    %v1551 = vadd.f32 0.0, %v1550
    %v1552 = vpop.f32.mrf.mxu0
    %v1553 = vpop.f32.mrf.mxu0
    %v1554 = vpop.f32.mrf.mxu0
    %1555 = vdwg.mxu0
    %1556 = vrot.lane.b32.xlu0 %v553, 80
    %v1557 = vpop.permute.xlu0 %1556
    %v1559 = vsel %vm653, %v1507, 0
    %v1562 = vsel %vm681, %v1557, 0
    %1564 = vmatprep.subr.bf16.mxu0 0
    %1565 = vmatpush1.bf16.msra.mxu0 0
    %1566 = vmatprep.subr.bf16.mxu0 0
    %1567 = vmatpush1.bf16.msra.mxu0 0
    %1568 = vmatprep.subr.bf16.mxu0 0
    %1569 = vmatpush1.bf16.msra.mxu0 0
    %1570 = vmatprep.subr.bf16.mxu0 0
    %1571 = vmatpush1.bf16.msra.mxu0 0
    %1572 = vmatprep.subr.bf16.mxu0 0
    %1573 = vmatpush1.bf16.msra.mxu0 0
    %1574 = vmatprep.subr.bf16.mxu0 0
    %1575 = vmatpush1.bf16.msra.mxu0 0
    %1576 = vmatprep.subr.bf16.mxu0 0
    %1577 = vmatpush1.bf16.msra.mxu0 0
    %1578 = vmatprep.subr.bf16.mxu0 0
    %1579 = vmatpush1.bf16.msra.mxu0 %v1562
    %1580 = vmatprep.subr.bf16.mxu0 0
    %1581 = vmatpush2.bf16.msra.mxu0 0
    %1582 = vmatprep.subr.bf16.mxu0 0
    %1583 = vmatpush2.bf16.msra.mxu0 0
    %1584 = vmatprep.subr.bf16.mxu0 0
    %1585 = vmatpush2.bf16.msra.mxu0 0
    %1586 = vmatprep.subr.bf16.mxu0 0
    %1587 = vmatpush2.bf16.msra.mxu0 0
    %1588 = vmatprep.subr.bf16.mxu0 0
    %1589 = vmatpush2.bf16.msra.mxu0 0
    %1590 = vmatprep.subr.bf16.mxu0 0
    %1591 = vmatpush2.bf16.msra.mxu0 0
    %1592 = vmatprep.subr.bf16.mxu0 0
    %1593 = vmatpush2.bf16.msra.mxu0 0
    %1594 = vmatprep.subr.bf16.mxu0 0
    %1595 = vmatpush2.bf16.msra.mxu0 0
    %1596 = vmatprep.mubr.bf16.mxu0 0
    %1597 = vmatmul.mubr.bf16.gmra.mxu0 %v1559
    %v1598 = vpop.f32.mrf.mxu0
    %v1599 = vadd.f32 0.0, %v1598
    %v1600 = vpop.f32.mrf.mxu0
    %v1601 = vpop.f32.mrf.mxu0
    %v1602 = vpop.f32.mrf.mxu0
    %1603 = vdwg.mxu0
    %v1604 = vpack.c.bf16 %v1599, %v1551
    %v1607 = vunpack.c.l.b16 %v240
    %v1608 = vunpack.c.l.b16 %v241
    %v1609 = vpack.c.b16 %v1608, %v1607
    %v1612 = vsel %vm554, %v1604, 0
    %1614 = vmatprep.subr.bf16.mxu0 0
    %1615 = vmatpush1.bf16.msra.mxu0 0
    %1616 = vmatprep.subr.bf16.mxu0 0
    %1617 = vmatpush1.bf16.msra.mxu0 0
    %1618 = vmatprep.subr.bf16.mxu0 0
    %1619 = vmatpush1.bf16.msra.mxu0 0
    %1620 = vmatprep.subr.bf16.mxu0 0
    %1621 = vmatpush1.bf16.msra.mxu0 0
    %1622 = vmatprep.subr.bf16.mxu0 0
    %1623 = vmatpush1.bf16.msra.mxu0 0
    %1624 = vmatprep.subr.bf16.mxu0 0
    %1625 = vmatpush1.bf16.msra.mxu0 0
    %1626 = vmatprep.subr.bf16.mxu0 0
    %1627 = vmatpush1.bf16.msra.mxu0 0
    %1628 = vmatprep.subr.bf16.mxu0 0
    %1629 = vmatpush1.bf16.msra.mxu0 %v1609
    %1630 = vmatprep.subr.bf16.mxu0 0
    %1631 = vmatpush2.bf16.msra.mxu0 0
    %1632 = vmatprep.subr.bf16.mxu0 0
    %1633 = vmatpush2.bf16.msra.mxu0 0
    %1634 = vmatprep.subr.bf16.mxu0 0
    %1635 = vmatpush2.bf16.msra.mxu0 0
    %1636 = vmatprep.subr.bf16.mxu0 0
    %1637 = vmatpush2.bf16.msra.mxu0 0
    %1638 = vmatprep.subr.bf16.mxu0 0
    %1639 = vmatpush2.bf16.msra.mxu0 0
    %1640 = vmatprep.subr.bf16.mxu0 0
    %1641 = vmatpush2.bf16.msra.mxu0 0
    %1642 = vmatprep.subr.bf16.mxu0 0
    %1643 = vmatpush2.bf16.msra.mxu0 0
    %1644 = vmatprep.subr.bf16.mxu0 0
    %1645 = vmatpush2.bf16.msra.mxu0 0
    %1646 = vmatprep.mubr.bf16.mxu0 0
    %1647 = vmatmul.mubr.bf16.gmra.mxu0 %v1612
    %v1648 = vpop.f32.mrf.mxu0
    %v1649 = vadd.f32 0.0, %v1648
    %v1650 = vpop.f32.mrf.mxu0
    %v1651 = vpop.f32.mrf.mxu0
    %v1652 = vadd.f32 0.0, %v1651
    %v1653 = vpop.f32.mrf.mxu0
    %1654 = vdwg.mxu0
    %v1655 = vadd.f32 %v1378, %v1649
    %v1656 = vadd.f32 %v1379, %v1652
    %v1657 = vadd.f32 %v200, %v1655
    %v1658 = vadd.f32 %v201, %v1656
    %v1660 = vlaneseq
    %v1661 = vshrl.u32 %v1660, 7
    %v1662 = vsub.s32 0, %v1661
    %v1663 = vrot.slane %v242, %v1662
    %v1665 = vadd.f32 %v1657, %v1663
    %v1666 = vadd.f32 %v1658, %v1663
    %v1667 = vsel %vm287, %v1665, 0.0
    %1668 = vadd.xlane.f32.xlu0 %v1667
    %v1669 = vpop.xlane.xlu0 %1668
    %v1670 = vsel %vm287, %v1666, 0.0
    %1671 = vadd.xlane.f32.xlu0 %v1670
    %v1672 = vpop.xlane.xlu0 %1671
    %v1673 = vmul.f32 %v1669, %v294
    %v1674 = vmul.f32 %v1672, %v294
    %v1675 = vsub.f32 %v1665, %v1673
    %v1676 = vsub.f32 %v1666, %v1674
    %v1677 = vmul.f32 %v1675, %v1675
    %v1678 = vmul.f32 %v1676, %v1676
    %v1679 = vsel %vm287, %v1677, 0.0
    %1680 = vadd.xlane.f32.xlu0 %v1679
    %v1681 = vpop.xlane.xlu0 %1680
    %v1682 = vsel %vm287, %v1678, 0.0
    %1683 = vadd.xlane.f32.xlu0 %v1682
    %v1684 = vpop.xlane.xlu0 %1683
    %v1685 = vmul.f32 %v1681, %v294
    %v1686 = vmul.f32 %v1684, %v294
    %v1687 = vadd.f32 %v1685, 1e-05
    %v1688 = vadd.f32 %v1686, 1e-05
    %v1689 = vrsqrt.pop %v1687
    %v1690 = vrsqrt.pop %v1688
    %v1691 = vmul.f32 %v1675, %v1689
    %v1692 = vmul.f32 %v1676, %v1690
    %v1694 = vlaneseq
    %v1695 = vshrl.u32 %v1694, 7
    %v1696 = vsub.s32 0, %v1695
    %v1697 = vrot.slane %v243, %v1696
    %v1699 = vmul.f32 %v1691, %v1697
    %v1700 = vmul.f32 %v1692, %v1697
    %v1702 = vlaneseq
    %v1703 = vshrl.u32 %v1702, 7
    %v1704 = vsub.s32 0, %v1703
    %v1705 = vrot.slane %v244, %v1704
    %v1707 = vadd.f32 %v1699, %v1705
    %v1708 = vadd.f32 %v1700, %v1705
    %v1709 = vpack.c.bf16 %v1708, %v1707
    %v1711 = vlaneseq
    %v1712 = vshrl.u32 %v1711, 7
    %v1713 = vsub.s32 0, %v1712
    %v1714 = vrot.slane %v253, %v1713
    %v1715 = vlaneseq
    %v1716 = vshrl.u32 %v1715, 7
    %v1717 = vsub.s32 1, %v1716
    %v1718 = vrot.slane %v253, %v1717
    %v1729 = vunpack.c.l.b16 %v245
    %v1730 = vunpack.c.h.b16 %v245
    %v1731 = vunpack.c.l.b16 %v246
    %v1732 = vunpack.c.h.b16 %v246
    %v1733 = vunpack.c.l.b16 %v247
    %v1734 = vunpack.c.h.b16 %v247
    %v1735 = vunpack.c.l.b16 %v248
    %v1736 = vunpack.c.h.b16 %v248
    %v1737 = vunpack.c.l.b16 %v249
    %v1738 = vunpack.c.h.b16 %v249
    %v1739 = vunpack.c.l.b16 %v250
    %v1740 = vunpack.c.h.b16 %v250
    %v1741 = vunpack.c.l.b16 %v251
    %v1742 = vunpack.c.h.b16 %v251
    %v1743 = vunpack.c.l.b16 %v252
    %v1744 = vunpack.c.h.b16 %v252
    %v1745 = vpack.c.b16 %v1731, %v1729
    %v1746 = vpack.c.b16 %v1732, %v1730
    %v1747 = vpack.c.b16 %v1735, %v1733
    %v1748 = vpack.c.b16 %v1736, %v1734
    %v1749 = vpack.c.b16 %v1739, %v1737
    %v1750 = vpack.c.b16 %v1740, %v1738
    %v1751 = vpack.c.b16 %v1743, %v1741
    %v1752 = vpack.c.b16 %v1744, %v1742
    %v1762 = vsel %vm287, %v1709, 0
    %1764 = vmatprep.subr.bf16.mxu0 0
    %1765 = vmatpush1.bf16.msra.mxu0 0
    %1766 = vmatprep.subr.bf16.mxu0 0
    %1767 = vmatpush1.bf16.msra.mxu0 0
    %1768 = vmatprep.subr.bf16.mxu0 0
    %1769 = vmatpush1.bf16.msra.mxu0 0
    %1770 = vmatprep.subr.bf16.mxu0 0
    %1771 = vmatpush1.bf16.msra.mxu0 0
    %1772 = vmatprep.subr.bf16.mxu0 %v1752
    %1773 = vmatpush1.bf16.msra.mxu0 %v1751
    %1774 = vmatprep.subr.bf16.mxu0 %v1750
    %1775 = vmatpush1.bf16.msra.mxu0 %v1749
    %1776 = vmatprep.subr.bf16.mxu0 %v1748
    %1777 = vmatpush1.bf16.msra.mxu0 %v1747
    %1778 = vmatprep.subr.bf16.mxu0 %v1746
    %1779 = vmatpush1.bf16.msra.mxu0 %v1745
    %1780 = vmatprep.subr.bf16.mxu0 0
    %1781 = vmatpush2.bf16.msra.mxu0 0
    %1782 = vmatprep.subr.bf16.mxu0 0
    %1783 = vmatpush2.bf16.msra.mxu0 0
    %1784 = vmatprep.subr.bf16.mxu0 0
    %1785 = vmatpush2.bf16.msra.mxu0 0
    %1786 = vmatprep.subr.bf16.mxu0 0
    %1787 = vmatpush2.bf16.msra.mxu0 0
    %1788 = vmatprep.subr.bf16.mxu0 0
    %1789 = vmatpush2.bf16.msra.mxu0 0
    %1790 = vmatprep.subr.bf16.mxu0 0
    %1791 = vmatpush2.bf16.msra.mxu0 0
    %1792 = vmatprep.subr.bf16.mxu0 0
    %1793 = vmatpush2.bf16.msra.mxu0 0
    %1794 = vmatprep.subr.bf16.mxu0 0
    %1795 = vmatpush2.bf16.msra.mxu0 0
    %1796 = vmatprep.mubr.bf16.mxu0 0
    %1797 = vmatmul.mubr.bf16.gmra.mxu0 %v1762
    %v1798 = vpop.f32.mrf.mxu0
    %v1799 = vadd.f32 %v1714, %v1798
    %v1800 = vpop.f32.mrf.mxu0
    %v1801 = vadd.f32 %v1718, %v1800
    %v1802 = vpop.f32.mrf.mxu0
    %v1803 = vadd.f32 %v1714, %v1802
    %v1804 = vpop.f32.mrf.mxu0
    %v1805 = vadd.f32 %v1718, %v1804
    %1806 = vdwg.mxu0
    %v1807 = vmul.f32 %v1799, 0.5
    %v1808 = vmul.f32 %v1801, 0.5
    %v1809 = vmul.f32 %v1803, 0.5
    %v1810 = vmul.f32 %v1805, 0.5
    %v1811 = vmul.f32 %v1799, 0.044715
    %v1812 = vmul.f32 %v1801, 0.044715
    %v1813 = vmul.f32 %v1803, 0.044715
    %v1814 = vmul.f32 %v1805, 0.044715
    %v1815 = vmul.f32 %v1811, %v1799
    %v1816 = vmul.f32 %v1812, %v1801
    %v1817 = vmul.f32 %v1813, %v1803
    %v1818 = vmul.f32 %v1814, %v1805
    %v1819 = vmul.f32 %v1815, %v1799
    %v1820 = vmul.f32 %v1816, %v1801
    %v1821 = vmul.f32 %v1817, %v1803
    %v1822 = vmul.f32 %v1818, %v1805
    %v1823 = vadd.f32 %v1799, %v1819
    %v1824 = vadd.f32 %v1801, %v1820
    %v1825 = vadd.f32 %v1803, %v1821
    %v1826 = vadd.f32 %v1805, %v1822
    %v1827 = vmul.f32 %v1823, 0.7978846
    %v1828 = vmul.f32 %v1824, 0.7978846
    %v1829 = vmul.f32 %v1825, 0.7978846
    %v1830 = vmul.f32 %v1826, 0.7978846
    %v1831 = vtanh.pop %v1827
    %v1832 = vtanh.pop %v1828
    %v1833 = vtanh.pop %v1829
    %v1834 = vtanh.pop %v1830
    %v1835 = vadd.f32 %v1831, 1.0
    %v1836 = vadd.f32 %v1832, 1.0
    %v1837 = vadd.f32 %v1833, 1.0
    %v1838 = vadd.f32 %v1834, 1.0
    %v1839 = vmul.f32 %v1807, %v1835
    %v1840 = vmul.f32 %v1808, %v1836
    %v1841 = vmul.f32 %v1809, %v1837
    %v1842 = vmul.f32 %v1810, %v1838
    %v1843 = vpack.c.bf16 %v1841, %v1839
    %v1844 = vpack.c.bf16 %v1842, %v1840
    %v1877 = vunpack.c.l.b16 %v254
    %v1878 = vunpack.c.l.b16 %v255
    %v1879 = vunpack.c.l.b16 %v256
    %v1880 = vunpack.c.l.b16 %v257
    %v1881 = vunpack.c.l.b16 %v258
    %v1882 = vunpack.c.l.b16 %v259
    %v1883 = vunpack.c.l.b16 %v260
    %v1884 = vunpack.c.l.b16 %v261
    %v1885 = vunpack.c.l.b16 %v262
    %v1886 = vunpack.c.l.b16 %v263
    %v1887 = vunpack.c.l.b16 %v264
    %v1888 = vunpack.c.l.b16 %v265
    %v1889 = vunpack.c.l.b16 %v266
    %v1890 = vunpack.c.l.b16 %v267
    %v1891 = vunpack.c.l.b16 %v268
    %v1892 = vunpack.c.l.b16 %v269
    %v1893 = vunpack.c.l.b16 %v270
    %v1894 = vunpack.c.l.b16 %v271
    %v1895 = vunpack.c.l.b16 %v272
    %v1896 = vunpack.c.l.b16 %v273
    %v1897 = vunpack.c.l.b16 %v274
    %v1898 = vunpack.c.l.b16 %v275
    %v1899 = vunpack.c.l.b16 %v276
    %v1900 = vunpack.c.l.b16 %v277
    %v1901 = vunpack.c.l.b16 %v278
    %v1902 = vunpack.c.l.b16 %v279
    %v1903 = vunpack.c.l.b16 %v280
    %v1904 = vunpack.c.l.b16 %v281
    %v1905 = vunpack.c.l.b16 %v282
    %v1906 = vunpack.c.l.b16 %v283
    %v1907 = vunpack.c.l.b16 %v284
    %v1908 = vunpack.c.l.b16 %v285
    %v1909 = vpack.c.b16 %v1878, %v1877
    %v1910 = vpack.c.b16 %v1880, %v1879
    %v1911 = vpack.c.b16 %v1882, %v1881
    %v1912 = vpack.c.b16 %v1884, %v1883
    %v1913 = vpack.c.b16 %v1886, %v1885
    %v1914 = vpack.c.b16 %v1888, %v1887
    %v1915 = vpack.c.b16 %v1890, %v1889
    %v1916 = vpack.c.b16 %v1892, %v1891
    %v1917 = vpack.c.b16 %v1894, %v1893
    %v1918 = vpack.c.b16 %v1896, %v1895
    %v1919 = vpack.c.b16 %v1898, %v1897
    %v1920 = vpack.c.b16 %v1900, %v1899
    %v1921 = vpack.c.b16 %v1902, %v1901
    %v1922 = vpack.c.b16 %v1904, %v1903
    %v1923 = vpack.c.b16 %v1906, %v1905
    %v1924 = vpack.c.b16 %v1908, %v1907
    %1941 = vmatprep.subr.bf16.mxu0 0
    %1942 = vmatpush1.bf16.msra.mxu0 %v1916
    %1943 = vmatprep.subr.bf16.mxu0 0
    %1944 = vmatpush1.bf16.msra.mxu0 %v1915
    %1945 = vmatprep.subr.bf16.mxu0 0
    %1946 = vmatpush1.bf16.msra.mxu0 %v1914
    %1947 = vmatprep.subr.bf16.mxu0 0
    %1948 = vmatpush1.bf16.msra.mxu0 %v1913
    %1949 = vmatprep.subr.bf16.mxu0 0
    %1950 = vmatpush1.bf16.msra.mxu0 %v1912
    %1951 = vmatprep.subr.bf16.mxu0 0
    %1952 = vmatpush1.bf16.msra.mxu0 %v1911
    %1953 = vmatprep.subr.bf16.mxu0 0
    %1954 = vmatpush1.bf16.msra.mxu0 %v1910
    %1955 = vmatprep.subr.bf16.mxu0 0
    %1956 = vmatpush1.bf16.msra.mxu0 %v1909
    %1957 = vmatprep.subr.bf16.mxu0 0
    %1958 = vmatpush2.bf16.msra.mxu0 %v1924
    %1959 = vmatprep.subr.bf16.mxu0 0
    %1960 = vmatpush2.bf16.msra.mxu0 %v1923
    %1961 = vmatprep.subr.bf16.mxu0 0
    %1962 = vmatpush2.bf16.msra.mxu0 %v1922
    %1963 = vmatprep.subr.bf16.mxu0 0
    %1964 = vmatpush2.bf16.msra.mxu0 %v1921
    %1965 = vmatprep.subr.bf16.mxu0 0
    %1966 = vmatpush2.bf16.msra.mxu0 %v1920
    %1967 = vmatprep.subr.bf16.mxu0 0
    %1968 = vmatpush2.bf16.msra.mxu0 %v1919
    %1969 = vmatprep.subr.bf16.mxu0 0
    %1970 = vmatpush2.bf16.msra.mxu0 %v1918
    %1971 = vmatprep.subr.bf16.mxu0 0
    %1972 = vmatpush2.bf16.msra.mxu0 %v1917
    %1973 = vmatprep.mubr.bf16.mxu0 %v1844
    %1974 = vmatmul.mubr.bf16.gmra.mxu0 %v1843
    %v1975 = vpop.f32.mrf.mxu0
    %v1976 = vadd.f32 0.0, %v1975
    %v1977 = vpop.f32.mrf.mxu0
    %v1978 = vpop.f32.mrf.mxu0
    %v1979 = vadd.f32 0.0, %v1978
    %v1980 = vpop.f32.mrf.mxu0
    %1981 = vdwg.mxu0
    %v1982 = vadd.f32 %v1665, %v1976
    %v1983 = vadd.f32 %v1666, %v1979
    %v1985 = vlaneseq
    %v1986 = vshrl.u32 %v1985, 7
    %v1987 = vsub.s32 0, %v1986
    %v1988 = vrot.slane %v286, %v1987
    %v1990 = vadd.f32 %v1982, %v1988
    %v1991 = vadd.f32 %v1983, %v1988
    %s1992 = scalar_lea.vmem %s4, 1
    %v1993 = vld [vmem:[%s1992] sm:$0x1]
    %s1994 = scalar_lea.vmem %s5, 1
    %v1995 = vld [vmem:[%s1994] sm:$0x1]
    %s1996 = scalar_lea.vmem %s6, 32
    %v1997 = vld [vmem:[%s1996] sm:$0xf]
    %v1998 = vld [vmem:[%s1996 + $0x4] sm:$0xf]
    %v1999 = vld [vmem:[%s1996 + $0x8] sm:$0xf]
    %v2000 = vld [vmem:[%s1996 + $0xc] sm:$0xf]
    %v2001 = vld [vmem:[%s1996 + $0x10] sm:$0xf]
    %v2002 = vld [vmem:[%s1996 + $0x14] sm:$0xf]
    %v2003 = vld [vmem:[%s1996 + $0x18] sm:$0xf]
    %v2004 = vld [vmem:[%s1996 + $0x1c] sm:$0xf]
    %s2005 = scalar_lea.vmem %s7, 1
    %v2006 = vld [vmem:[%s2005] sm:$0x1]
    %s2007 = scalar_lea.vmem %s8, 32
    %v2008 = vld [vmem:[%s2007] sm:$0xf]
    %v2009 = vld [vmem:[%s2007 + $0x4] sm:$0xf]
    %v2010 = vld [vmem:[%s2007 + $0x8] sm:$0xf]
    %v2011 = vld [vmem:[%s2007 + $0xc] sm:$0xf]
    %v2012 = vld [vmem:[%s2007 + $0x10] sm:$0xf]
    %v2013 = vld [vmem:[%s2007 + $0x14] sm:$0xf]
    %v2014 = vld [vmem:[%s2007 + $0x18] sm:$0xf]
    %v2015 = vld [vmem:[%s2007 + $0x1c] sm:$0xf]
    %s2016 = scalar_lea.vmem %s9, 1
    %v2017 = vld [vmem:[%s2016] sm:$0x1]
    %s2018 = scalar_lea.vmem %s10, 32
    %v2019 = vld [vmem:[%s2018] sm:$0xf]
    %v2020 = vld [vmem:[%s2018 + $0x4] sm:$0xf]
    %v2021 = vld [vmem:[%s2018 + $0x8] sm:$0xf]
    %v2022 = vld [vmem:[%s2018 + $0xc] sm:$0xf]
    %v2023 = vld [vmem:[%s2018 + $0x10] sm:$0xf]
    %v2024 = vld [vmem:[%s2018 + $0x14] sm:$0xf]
    %v2025 = vld [vmem:[%s2018 + $0x18] sm:$0xf]
    %v2026 = vld [vmem:[%s2018 + $0x1c] sm:$0xf]
    %s2027 = scalar_lea.vmem %s11, 1
    %v2028 = vld [vmem:[%s2027] sm:$0x1]
    %s2029 = scalar_lea.vmem %s12, 32
    %v2030 = vld [vmem:[%s2029] sm:$0xf]
    %v2031 = vld [vmem:[%s2029 + $0x4] sm:$0xf]
    %v2032 = vld [vmem:[%s2029 + $0x8] sm:$0xf]
    %v2033 = vld [vmem:[%s2029 + $0xc] sm:$0xf]
    %v2034 = vld [vmem:[%s2029 + $0x10] sm:$0xf]
    %v2035 = vld [vmem:[%s2029 + $0x14] sm:$0xf]
    %v2036 = vld [vmem:[%s2029 + $0x18] sm:$0xf]
    %v2037 = vld [vmem:[%s2029 + $0x1c] sm:$0xf]
    %s2038 = scalar_lea.vmem %s13, 1
    %v2039 = vld [vmem:[%s2038] sm:$0x1]
    %s2040 = scalar_lea.vmem %s14, 1
    %v2041 = vld [vmem:[%s2040] sm:$0x1]
    %s2042 = scalar_lea.vmem %s15, 1
    %v2043 = vld [vmem:[%s2042] sm:$0x1]
    %s2044 = scalar_lea.vmem %s16, 64
    %v2045 = vld [vmem:[%s2044] sm:$0xff]
    %v2046 = vld [vmem:[%s2044 + $0x8] sm:$0xff]
    %v2047 = vld [vmem:[%s2044 + $0x10] sm:$0xff]
    %v2048 = vld [vmem:[%s2044 + $0x18] sm:$0xff]
    %v2049 = vld [vmem:[%s2044 + $0x20] sm:$0xff]
    %v2050 = vld [vmem:[%s2044 + $0x28] sm:$0xff]
    %v2051 = vld [vmem:[%s2044 + $0x30] sm:$0xff]
    %v2052 = vld [vmem:[%s2044 + $0x38] sm:$0xff]
    %s2053 = scalar_lea.vmem %s17, 2
    %v2054 = vld [vmem:[%s2053] sm:$0x3]
    %s2055 = scalar_lea.vmem %s18, 128
    %v2056 = vld [vmem:[%s2055] sm:$0xf]
    %v2057 = vld [vmem:[%s2055 + $0x4] sm:$0xf]
    %v2058 = vld [vmem:[%s2055 + $0x8] sm:$0xf]
    %v2059 = vld [vmem:[%s2055 + $0xc] sm:$0xf]
    %v2060 = vld [vmem:[%s2055 + $0x10] sm:$0xf]
    %v2061 = vld [vmem:[%s2055 + $0x14] sm:$0xf]
    %v2062 = vld [vmem:[%s2055 + $0x18] sm:$0xf]
    %v2063 = vld [vmem:[%s2055 + $0x1c] sm:$0xf]
    %v2064 = vld [vmem:[%s2055 + $0x20] sm:$0xf]
    %v2065 = vld [vmem:[%s2055 + $0x24] sm:$0xf]
    %v2066 = vld [vmem:[%s2055 + $0x28] sm:$0xf]
    %v2067 = vld [vmem:[%s2055 + $0x2c] sm:$0xf]
    %v2068 = vld [vmem:[%s2055 + $0x30] sm:$0xf]
    %v2069 = vld [vmem:[%s2055 + $0x34] sm:$0xf]
    %v2070 = vld [vmem:[%s2055 + $0x38] sm:$0xf]
    %v2071 = vld [vmem:[%s2055 + $0x3c] sm:$0xf]
    %v2072 = vld [vmem:[%s2055 + $0x40] sm:$0xf]
    %v2073 = vld [vmem:[%s2055 + $0x44] sm:$0xf]
    %v2074 = vld [vmem:[%s2055 + $0x48] sm:$0xf]
    %v2075 = vld [vmem:[%s2055 + $0x4c] sm:$0xf]
    %v2076 = vld [vmem:[%s2055 + $0x50] sm:$0xf]
    %v2077 = vld [vmem:[%s2055 + $0x54] sm:$0xf]
    %v2078 = vld [vmem:[%s2055 + $0x58] sm:$0xf]
    %v2079 = vld [vmem:[%s2055 + $0x5c] sm:$0xf]
    %v2080 = vld [vmem:[%s2055 + $0x60] sm:$0xf]
    %v2081 = vld [vmem:[%s2055 + $0x64] sm:$0xf]
    %v2082 = vld [vmem:[%s2055 + $0x68] sm:$0xf]
    %v2083 = vld [vmem:[%s2055 + $0x6c] sm:$0xf]
    %v2084 = vld [vmem:[%s2055 + $0x70] sm:$0xf]
    %v2085 = vld [vmem:[%s2055 + $0x74] sm:$0xf]
    %v2086 = vld [vmem:[%s2055 + $0x78] sm:$0xf]
    %v2087 = vld [vmem:[%s2055 + $0x7c] sm:$0xf]
    %s2088 = scalar_lea.vmem %s19, 1
    %v2089 = vld [vmem:[%s2088] sm:$0x1]
    %v2090 = vsel %vm287, %v1990, 0.0
    %2091 = vadd.xlane.f32.xlu0 %v2090
    %v2092 = vpop.xlane.xlu0 %2091
    %v2093 = vsel %vm287, %v1991, 0.0
    %2094 = vadd.xlane.f32.xlu0 %v2093
    %v2095 = vpop.xlane.xlu0 %2094
    %v2096 = vmul.f32 %v2092, %v294
    %v2097 = vmul.f32 %v2095, %v294
    %v2098 = vsub.f32 %v1990, %v2096
    %v2099 = vsub.f32 %v1991, %v2097
    %v2100 = vmul.f32 %v2098, %v2098
    %v2101 = vmul.f32 %v2099, %v2099
    %v2102 = vsel %vm287, %v2100, 0.0
    %2103 = vadd.xlane.f32.xlu0 %v2102
    %v2104 = vpop.xlane.xlu0 %2103
    %v2105 = vsel %vm287, %v2101, 0.0
    %2106 = vadd.xlane.f32.xlu0 %v2105
    %v2107 = vpop.xlane.xlu0 %2106
    %v2108 = vmul.f32 %v2104, %v294
    %v2109 = vmul.f32 %v2107, %v294
    %v2110 = vadd.f32 %v2108, 1e-05
    %v2111 = vadd.f32 %v2109, 1e-05
    %v2112 = vrsqrt.pop %v2110
    %v2113 = vrsqrt.pop %v2111
    %v2114 = vmul.f32 %v2098, %v2112
    %v2115 = vmul.f32 %v2099, %v2113
    %v2117 = vlaneseq
    %v2118 = vshrl.u32 %v2117, 7
    %v2119 = vsub.s32 0, %v2118
    %v2120 = vrot.slane %v1993, %v2119
    %v2122 = vmul.f32 %v2114, %v2120
    %v2123 = vmul.f32 %v2115, %v2120
    %v2125 = vlaneseq
    %v2126 = vshrl.u32 %v2125, 7
    %v2127 = vsub.s32 0, %v2126
    %v2128 = vrot.slane %v1995, %v2127
    %v2130 = vadd.f32 %v2122, %v2128
    %v2131 = vadd.f32 %v2123, %v2128
    %v2132 = vpack.c.bf16 %v2131, %v2130
    %v2134 = vlaneseq
    %v2135 = vshrl.u32 %v2134, 7
    %v2136 = vsub.s32 0, %v2135
    %v2137 = vrot.slane %v2006, %v2136
    %v2147 = vunpack.c.l.b16 %v1997
    %v2148 = vunpack.c.l.b16 %v1998
    %v2149 = vunpack.c.l.b16 %v1999
    %v2150 = vunpack.c.l.b16 %v2000
    %v2151 = vunpack.c.l.b16 %v2001
    %v2152 = vunpack.c.l.b16 %v2002
    %v2153 = vunpack.c.l.b16 %v2003
    %v2154 = vunpack.c.l.b16 %v2004
    %v2155 = vpack.c.b16 %v2148, %v2147
    %v2156 = vpack.c.b16 %v2150, %v2149
    %v2157 = vpack.c.b16 %v2152, %v2151
    %v2158 = vpack.c.b16 %v2154, %v2153
    %v2164 = vsel %vm287, %v2132, 0
    %2166 = vmatprep.subr.bf16.mxu0 0
    %2167 = vmatpush1.bf16.msra.mxu0 0
    %2168 = vmatprep.subr.bf16.mxu0 0
    %2169 = vmatpush1.bf16.msra.mxu0 0
    %2170 = vmatprep.subr.bf16.mxu0 0
    %2171 = vmatpush1.bf16.msra.mxu0 0
    %2172 = vmatprep.subr.bf16.mxu0 0
    %2173 = vmatpush1.bf16.msra.mxu0 0
    %2174 = vmatprep.subr.bf16.mxu0 0
    %2175 = vmatpush1.bf16.msra.mxu0 %v2158
    %2176 = vmatprep.subr.bf16.mxu0 0
    %2177 = vmatpush1.bf16.msra.mxu0 %v2157
    %2178 = vmatprep.subr.bf16.mxu0 0
    %2179 = vmatpush1.bf16.msra.mxu0 %v2156
    %2180 = vmatprep.subr.bf16.mxu0 0
    %2181 = vmatpush1.bf16.msra.mxu0 %v2155
    %2182 = vmatprep.subr.bf16.mxu0 0
    %2183 = vmatpush2.bf16.msra.mxu0 0
    %2184 = vmatprep.subr.bf16.mxu0 0
    %2185 = vmatpush2.bf16.msra.mxu0 0
    %2186 = vmatprep.subr.bf16.mxu0 0
    %2187 = vmatpush2.bf16.msra.mxu0 0
    %2188 = vmatprep.subr.bf16.mxu0 0
    %2189 = vmatpush2.bf16.msra.mxu0 0
    %2190 = vmatprep.subr.bf16.mxu0 0
    %2191 = vmatpush2.bf16.msra.mxu0 0
    %2192 = vmatprep.subr.bf16.mxu0 0
    %2193 = vmatpush2.bf16.msra.mxu0 0
    %2194 = vmatprep.subr.bf16.mxu0 0
    %2195 = vmatpush2.bf16.msra.mxu0 0
    %2196 = vmatprep.subr.bf16.mxu0 0
    %2197 = vmatpush2.bf16.msra.mxu0 0
    %2198 = vmatprep.mubr.bf16.mxu0 0
    %2199 = vmatmul.mubr.bf16.gmra.mxu0 %v2164
    %v2200 = vpop.f32.mrf.mxu0
    %v2201 = vadd.f32 %v2137, %v2200
    %v2202 = vpop.f32.mrf.mxu0
    %v2203 = vpop.f32.mrf.mxu0
    %v2204 = vadd.f32 %v2137, %v2203
    %v2205 = vpop.f32.mrf.mxu0
    %2206 = vdwg.mxu0
    %v2208 = vlaneseq
    %v2209 = vshrl.u32 %v2208, 7
    %v2210 = vsub.s32 0, %v2209
    %v2211 = vrot.slane %v2017, %v2210
    %v2221 = vunpack.c.l.b16 %v2008
    %v2222 = vunpack.c.l.b16 %v2009
    %v2223 = vunpack.c.l.b16 %v2010
    %v2224 = vunpack.c.l.b16 %v2011
    %v2225 = vunpack.c.l.b16 %v2012
    %v2226 = vunpack.c.l.b16 %v2013
    %v2227 = vunpack.c.l.b16 %v2014
    %v2228 = vunpack.c.l.b16 %v2015
    %v2229 = vpack.c.b16 %v2222, %v2221
    %v2230 = vpack.c.b16 %v2224, %v2223
    %v2231 = vpack.c.b16 %v2226, %v2225
    %v2232 = vpack.c.b16 %v2228, %v2227
    %2237 = vmatprep.subr.bf16.mxu0 0
    %2238 = vmatpush1.bf16.msra.mxu0 0
    %2239 = vmatprep.subr.bf16.mxu0 0
    %2240 = vmatpush1.bf16.msra.mxu0 0
    %2241 = vmatprep.subr.bf16.mxu0 0
    %2242 = vmatpush1.bf16.msra.mxu0 0
    %2243 = vmatprep.subr.bf16.mxu0 0
    %2244 = vmatpush1.bf16.msra.mxu0 0
    %2245 = vmatprep.subr.bf16.mxu0 0
    %2246 = vmatpush1.bf16.msra.mxu0 %v2232
    %2247 = vmatprep.subr.bf16.mxu0 0
    %2248 = vmatpush1.bf16.msra.mxu0 %v2231
    %2249 = vmatprep.subr.bf16.mxu0 0
    %2250 = vmatpush1.bf16.msra.mxu0 %v2230
    %2251 = vmatprep.subr.bf16.mxu0 0
    %2252 = vmatpush1.bf16.msra.mxu0 %v2229
    %2253 = vmatprep.subr.bf16.mxu0 0
    %2254 = vmatpush2.bf16.msra.mxu0 0
    %2255 = vmatprep.subr.bf16.mxu0 0
    %2256 = vmatpush2.bf16.msra.mxu0 0
    %2257 = vmatprep.subr.bf16.mxu0 0
    %2258 = vmatpush2.bf16.msra.mxu0 0
    %2259 = vmatprep.subr.bf16.mxu0 0
    %2260 = vmatpush2.bf16.msra.mxu0 0
    %2261 = vmatprep.subr.bf16.mxu0 0
    %2262 = vmatpush2.bf16.msra.mxu0 0
    %2263 = vmatprep.subr.bf16.mxu0 0
    %2264 = vmatpush2.bf16.msra.mxu0 0
    %2265 = vmatprep.subr.bf16.mxu0 0
    %2266 = vmatpush2.bf16.msra.mxu0 0
    %2267 = vmatprep.subr.bf16.mxu0 0
    %2268 = vmatpush2.bf16.msra.mxu0 0
    %2269 = vmatprep.mubr.bf16.mxu0 0
    %2270 = vmatmul.mubr.bf16.gmra.mxu0 %v2164
    %v2271 = vpop.f32.mrf.mxu0
    %v2272 = vadd.f32 %v2211, %v2271
    %v2273 = vpop.f32.mrf.mxu0
    %v2274 = vpop.f32.mrf.mxu0
    %v2275 = vadd.f32 %v2211, %v2274
    %v2276 = vpop.f32.mrf.mxu0
    %2277 = vdwg.mxu0
    %v2279 = vlaneseq
    %v2280 = vshrl.u32 %v2279, 7
    %v2281 = vsub.s32 0, %v2280
    %v2282 = vrot.slane %v2028, %v2281
    %v2292 = vunpack.c.l.b16 %v2019
    %v2293 = vunpack.c.l.b16 %v2020
    %v2294 = vunpack.c.l.b16 %v2021
    %v2295 = vunpack.c.l.b16 %v2022
    %v2296 = vunpack.c.l.b16 %v2023
    %v2297 = vunpack.c.l.b16 %v2024
    %v2298 = vunpack.c.l.b16 %v2025
    %v2299 = vunpack.c.l.b16 %v2026
    %v2300 = vpack.c.b16 %v2293, %v2292
    %v2301 = vpack.c.b16 %v2295, %v2294
    %v2302 = vpack.c.b16 %v2297, %v2296
    %v2303 = vpack.c.b16 %v2299, %v2298
    %2308 = vmatprep.subr.bf16.mxu0 0
    %2309 = vmatpush1.bf16.msra.mxu0 0
    %2310 = vmatprep.subr.bf16.mxu0 0
    %2311 = vmatpush1.bf16.msra.mxu0 0
    %2312 = vmatprep.subr.bf16.mxu0 0
    %2313 = vmatpush1.bf16.msra.mxu0 0
    %2314 = vmatprep.subr.bf16.mxu0 0
    %2315 = vmatpush1.bf16.msra.mxu0 0
    %2316 = vmatprep.subr.bf16.mxu0 0
    %2317 = vmatpush1.bf16.msra.mxu0 %v2303
    %2318 = vmatprep.subr.bf16.mxu0 0
    %2319 = vmatpush1.bf16.msra.mxu0 %v2302
    %2320 = vmatprep.subr.bf16.mxu0 0
    %2321 = vmatpush1.bf16.msra.mxu0 %v2301
    %2322 = vmatprep.subr.bf16.mxu0 0
    %2323 = vmatpush1.bf16.msra.mxu0 %v2300
    %2324 = vmatprep.subr.bf16.mxu0 0
    %2325 = vmatpush2.bf16.msra.mxu0 0
    %2326 = vmatprep.subr.bf16.mxu0 0
    %2327 = vmatpush2.bf16.msra.mxu0 0
    %2328 = vmatprep.subr.bf16.mxu0 0
    %2329 = vmatpush2.bf16.msra.mxu0 0
    %2330 = vmatprep.subr.bf16.mxu0 0
    %2331 = vmatpush2.bf16.msra.mxu0 0
    %2332 = vmatprep.subr.bf16.mxu0 0
    %2333 = vmatpush2.bf16.msra.mxu0 0
    %2334 = vmatprep.subr.bf16.mxu0 0
    %2335 = vmatpush2.bf16.msra.mxu0 0
    %2336 = vmatprep.subr.bf16.mxu0 0
    %2337 = vmatpush2.bf16.msra.mxu0 0
    %2338 = vmatprep.subr.bf16.mxu0 0
    %2339 = vmatpush2.bf16.msra.mxu0 0
    %2340 = vmatprep.mubr.bf16.mxu0 0
    %2341 = vmatmul.mubr.bf16.gmra.mxu0 %v2164
    %v2342 = vpop.f32.mrf.mxu0
    %v2343 = vadd.f32 %v2282, %v2342
    %v2344 = vpop.f32.mrf.mxu0
    %v2345 = vpop.f32.mrf.mxu0
    %v2346 = vadd.f32 %v2282, %v2345
    %v2347 = vpop.f32.mrf.mxu0
    %2348 = vdwg.mxu0
    %v2349 = vpack.c.bf16 %v2201, %v2201
    %v2350 = vpack.c.bf16 %v2204, %v2204
    %v2351 = vpack.c.bf16 %v2272, %v2272
    %v2352 = vpack.c.bf16 %v2275, %v2275
    %v2353 = vpack.c.bf16 %v2343, %v2343
    %v2354 = vpack.c.bf16 %v2346, %v2346
    %v2356 = vsel %vm554, %v2349, 0
    %v2359 = vsel %vm554, %v2351, 0
    %2361 = vmatprep.subr.bf16.mxu0 0
    %2362 = vmatpush1.bf16.xpose.msra.mxu0 0
    %2363 = vmatprep.subr.bf16.mxu0 0
    %2364 = vmatpush1.bf16.xpose.msra.mxu0 0
    %2365 = vmatprep.subr.bf16.mxu0 0
    %2366 = vmatpush1.bf16.xpose.msra.mxu0 0
    %2367 = vmatprep.subr.bf16.mxu0 0
    %2368 = vmatpush1.bf16.xpose.msra.mxu0 0
    %2369 = vmatprep.subr.bf16.mxu0 0
    %2370 = vmatpush1.bf16.xpose.msra.mxu0 0
    %2371 = vmatprep.subr.bf16.mxu0 0
    %2372 = vmatpush1.bf16.xpose.msra.mxu0 0
    %2373 = vmatprep.subr.bf16.mxu0 0
    %2374 = vmatpush1.bf16.xpose.msra.mxu0 0
    %2375 = vmatprep.subr.bf16.mxu0 0
    %2376 = vmatpush1.bf16.xpose.msra.mxu0 %v2359
    %2377 = vmatprep.subr.bf16.mxu0 0
    %2378 = vmatpush2.bf16.xpose.msra.mxu0 0
    %2379 = vmatprep.subr.bf16.mxu0 0
    %2380 = vmatpush2.bf16.xpose.msra.mxu0 0
    %2381 = vmatprep.subr.bf16.mxu0 0
    %2382 = vmatpush2.bf16.xpose.msra.mxu0 0
    %2383 = vmatprep.subr.bf16.mxu0 0
    %2384 = vmatpush2.bf16.xpose.msra.mxu0 0
    %2385 = vmatprep.subr.bf16.mxu0 0
    %2386 = vmatpush2.bf16.xpose.msra.mxu0 0
    %2387 = vmatprep.subr.bf16.mxu0 0
    %2388 = vmatpush2.bf16.xpose.msra.mxu0 0
    %2389 = vmatprep.subr.bf16.mxu0 0
    %2390 = vmatpush2.bf16.xpose.msra.mxu0 0
    %2391 = vmatprep.subr.bf16.mxu0 0
    %2392 = vmatpush2.bf16.xpose.msra.mxu0 0
    %2393 = vmatprep.mubr.bf16.mxu0 0
    %2394 = vmatmul.mubr.bf16.gmra.mxu0 %v2356
    %v2395 = vpop.f32.mrf.mxu0
    %v2396 = vadd.f32 0.0, %v2395
    %v2397 = vpop.f32.mrf.mxu0
    %v2398 = vpop.f32.mrf.mxu0
    %v2399 = vpop.f32.mrf.mxu0
    %2400 = vdwg.mxu0
    %v2402 = vsel %vm554, %v2350, 0
    %v2405 = vsel %vm554, %v2352, 0
    %2407 = vmatprep.subr.bf16.mxu0 0
    %2408 = vmatpush1.bf16.xpose.msra.mxu0 0
    %2409 = vmatprep.subr.bf16.mxu0 0
    %2410 = vmatpush1.bf16.xpose.msra.mxu0 0
    %2411 = vmatprep.subr.bf16.mxu0 0
    %2412 = vmatpush1.bf16.xpose.msra.mxu0 0
    %2413 = vmatprep.subr.bf16.mxu0 0
    %2414 = vmatpush1.bf16.xpose.msra.mxu0 0
    %2415 = vmatprep.subr.bf16.mxu0 0
    %2416 = vmatpush1.bf16.xpose.msra.mxu0 0
    %2417 = vmatprep.subr.bf16.mxu0 0
    %2418 = vmatpush1.bf16.xpose.msra.mxu0 0
    %2419 = vmatprep.subr.bf16.mxu0 0
    %2420 = vmatpush1.bf16.xpose.msra.mxu0 0
    %2421 = vmatprep.subr.bf16.mxu0 0
    %2422 = vmatpush1.bf16.xpose.msra.mxu0 %v2405
    %2423 = vmatprep.subr.bf16.mxu0 0
    %2424 = vmatpush2.bf16.xpose.msra.mxu0 0
    %2425 = vmatprep.subr.bf16.mxu0 0
    %2426 = vmatpush2.bf16.xpose.msra.mxu0 0
    %2427 = vmatprep.subr.bf16.mxu0 0
    %2428 = vmatpush2.bf16.xpose.msra.mxu0 0
    %2429 = vmatprep.subr.bf16.mxu0 0
    %2430 = vmatpush2.bf16.xpose.msra.mxu0 0
    %2431 = vmatprep.subr.bf16.mxu0 0
    %2432 = vmatpush2.bf16.xpose.msra.mxu0 0
    %2433 = vmatprep.subr.bf16.mxu0 0
    %2434 = vmatpush2.bf16.xpose.msra.mxu0 0
    %2435 = vmatprep.subr.bf16.mxu0 0
    %2436 = vmatpush2.bf16.xpose.msra.mxu0 0
    %2437 = vmatprep.subr.bf16.mxu0 0
    %2438 = vmatpush2.bf16.xpose.msra.mxu0 0
    %2439 = vmatprep.mubr.bf16.mxu0 0
    %2440 = vmatmul.mubr.bf16.gmra.mxu0 %v2402
    %v2441 = vpop.f32.mrf.mxu0
    %v2442 = vadd.f32 0.0, %v2441
    %v2443 = vpop.f32.mrf.mxu0
    %v2444 = vpop.f32.mrf.mxu0
    %v2445 = vpop.f32.mrf.mxu0
    %2446 = vdwg.mxu0
    %v2447 = vmul.f32 %v2396, 0.25
    %v2448 = vmul.f32 %v2442, 0.25
    %v2449 = vsel %vm650, %v2447, -1e+30
    %v2450 = vsel %vm650, %v2448, -1e+30
    %v2451 = vsel %vm653, %v2449, -inf
    %2452 = vmax.xlane.f32.xlu0 %v2451
    %v2453 = vpop.xlane.xlu0 %2452
    %v2454 = vsel %vm653, %v2450, -inf
    %2455 = vmax.xlane.f32.xlu0 %v2454
    %v2456 = vpop.xlane.xlu0 %2455
    %v2457 = vsub.f32 %v2449, %v2453
    %v2458 = vsub.f32 %v2450, %v2456
    %v2459 = vmul.f32 %v2457, 1.442695
    %v2460 = vpow.pop %v2459
    %v2461 = vmul.f32 %v2458, 1.442695
    %v2462 = vpow.pop %v2461
    %v2463 = vsel %vm653, %v2460, 0.0
    %2464 = vadd.xlane.f32.xlu0 %v2463
    %v2465 = vpop.xlane.xlu0 %2464
    %v2466 = vsel %vm653, %v2462, 0.0
    %2467 = vadd.xlane.f32.xlu0 %v2466
    %v2468 = vpop.xlane.xlu0 %2467
    %v2469 = vrcp.pop %v2465
    %v2470 = vrcp.pop %v2468
    %v2471 = vmul.f32 %v2460, %v2469
    %v2472 = vmul.f32 %v2462, %v2470
    %v2473 = vpack.c.bf16 %v2471, %v2471
    %v2474 = vpack.c.bf16 %v2472, %v2472
    %v2476 = vsel %vm653, %v2473, 0
    %v2479 = vsel %vm681, %v2353, 0
    %2481 = vmatprep.subr.bf16.mxu0 0
    %2482 = vmatpush1.bf16.msra.mxu0 0
    %2483 = vmatprep.subr.bf16.mxu0 0
    %2484 = vmatpush1.bf16.msra.mxu0 0
    %2485 = vmatprep.subr.bf16.mxu0 0
    %2486 = vmatpush1.bf16.msra.mxu0 0
    %2487 = vmatprep.subr.bf16.mxu0 0
    %2488 = vmatpush1.bf16.msra.mxu0 0
    %2489 = vmatprep.subr.bf16.mxu0 0
    %2490 = vmatpush1.bf16.msra.mxu0 0
    %2491 = vmatprep.subr.bf16.mxu0 0
    %2492 = vmatpush1.bf16.msra.mxu0 0
    %2493 = vmatprep.subr.bf16.mxu0 0
    %2494 = vmatpush1.bf16.msra.mxu0 0
    %2495 = vmatprep.subr.bf16.mxu0 0
    %2496 = vmatpush1.bf16.msra.mxu0 %v2479
    %2497 = vmatprep.subr.bf16.mxu0 0
    %2498 = vmatpush2.bf16.msra.mxu0 0
    %2499 = vmatprep.subr.bf16.mxu0 0
    %2500 = vmatpush2.bf16.msra.mxu0 0
    %2501 = vmatprep.subr.bf16.mxu0 0
    %2502 = vmatpush2.bf16.msra.mxu0 0
    %2503 = vmatprep.subr.bf16.mxu0 0
    %2504 = vmatpush2.bf16.msra.mxu0 0
    %2505 = vmatprep.subr.bf16.mxu0 0
    %2506 = vmatpush2.bf16.msra.mxu0 0
    %2507 = vmatprep.subr.bf16.mxu0 0
    %2508 = vmatpush2.bf16.msra.mxu0 0
    %2509 = vmatprep.subr.bf16.mxu0 0
    %2510 = vmatpush2.bf16.msra.mxu0 0
    %2511 = vmatprep.subr.bf16.mxu0 0
    %2512 = vmatpush2.bf16.msra.mxu0 0
    %2513 = vmatprep.mubr.bf16.mxu0 0
    %2514 = vmatmul.mubr.bf16.gmra.mxu0 %v2476
    %v2515 = vpop.f32.mrf.mxu0
    %v2516 = vadd.f32 0.0, %v2515
    %v2517 = vpop.f32.mrf.mxu0
    %v2518 = vpop.f32.mrf.mxu0
    %v2519 = vpop.f32.mrf.mxu0
    %2520 = vdwg.mxu0
    %v2522 = vsel %vm653, %v2474, 0
    %v2525 = vsel %vm681, %v2354, 0
    %2527 = vmatprep.subr.bf16.mxu0 0
    %2528 = vmatpush1.bf16.msra.mxu0 0
    %2529 = vmatprep.subr.bf16.mxu0 0
    %2530 = vmatpush1.bf16.msra.mxu0 0
    %2531 = vmatprep.subr.bf16.mxu0 0
    %2532 = vmatpush1.bf16.msra.mxu0 0
    %2533 = vmatprep.subr.bf16.mxu0 0
    %2534 = vmatpush1.bf16.msra.mxu0 0
    %2535 = vmatprep.subr.bf16.mxu0 0
    %2536 = vmatpush1.bf16.msra.mxu0 0
    %2537 = vmatprep.subr.bf16.mxu0 0
    %2538 = vmatpush1.bf16.msra.mxu0 0
    %2539 = vmatprep.subr.bf16.mxu0 0
    %2540 = vmatpush1.bf16.msra.mxu0 0
    %2541 = vmatprep.subr.bf16.mxu0 0
    %2542 = vmatpush1.bf16.msra.mxu0 %v2525
    %2543 = vmatprep.subr.bf16.mxu0 0
    %2544 = vmatpush2.bf16.msra.mxu0 0
    %2545 = vmatprep.subr.bf16.mxu0 0
    %2546 = vmatpush2.bf16.msra.mxu0 0
    %2547 = vmatprep.subr.bf16.mxu0 0
    %2548 = vmatpush2.bf16.msra.mxu0 0
    %2549 = vmatprep.subr.bf16.mxu0 0
    %2550 = vmatpush2.bf16.msra.mxu0 0
    %2551 = vmatprep.subr.bf16.mxu0 0
    %2552 = vmatpush2.bf16.msra.mxu0 0
    %2553 = vmatprep.subr.bf16.mxu0 0
    %2554 = vmatpush2.bf16.msra.mxu0 0
    %2555 = vmatprep.subr.bf16.mxu0 0
    %2556 = vmatpush2.bf16.msra.mxu0 0
    %2557 = vmatprep.subr.bf16.mxu0 0
    %2558 = vmatpush2.bf16.msra.mxu0 0
    %2559 = vmatprep.mubr.bf16.mxu0 0
    %2560 = vmatmul.mubr.bf16.gmra.mxu0 %v2522
    %v2561 = vpop.f32.mrf.mxu0
    %v2562 = vadd.f32 0.0, %v2561
    %v2563 = vpop.f32.mrf.mxu0
    %v2564 = vpop.f32.mrf.mxu0
    %v2565 = vpop.f32.mrf.mxu0
    %2566 = vdwg.mxu0
    %v2567 = vpack.c.bf16 %v2562, %v2516
    %2569 = vrot.lane.b32.xlu0 %v2349, 112
    %v2570 = vpop.permute.xlu0 %2569
    %2572 = vrot.lane.b32.xlu0 %v2351, 112
    %v2573 = vpop.permute.xlu0 %2572
    %v2575 = vsel %vm554, %v2570, 0
    %v2578 = vsel %vm554, %v2573, 0
    %2580 = vmatprep.subr.bf16.mxu0 0
    %2581 = vmatpush1.bf16.xpose.msra.mxu0 0
    %2582 = vmatprep.subr.bf16.mxu0 0
    %2583 = vmatpush1.bf16.xpose.msra.mxu0 0
    %2584 = vmatprep.subr.bf16.mxu0 0
    %2585 = vmatpush1.bf16.xpose.msra.mxu0 0
    %2586 = vmatprep.subr.bf16.mxu0 0
    %2587 = vmatpush1.bf16.xpose.msra.mxu0 0
    %2588 = vmatprep.subr.bf16.mxu0 0
    %2589 = vmatpush1.bf16.xpose.msra.mxu0 0
    %2590 = vmatprep.subr.bf16.mxu0 0
    %2591 = vmatpush1.bf16.xpose.msra.mxu0 0
    %2592 = vmatprep.subr.bf16.mxu0 0
    %2593 = vmatpush1.bf16.xpose.msra.mxu0 0
    %2594 = vmatprep.subr.bf16.mxu0 0
    %2595 = vmatpush1.bf16.xpose.msra.mxu0 %v2578
    %2596 = vmatprep.subr.bf16.mxu0 0
    %2597 = vmatpush2.bf16.xpose.msra.mxu0 0
    %2598 = vmatprep.subr.bf16.mxu0 0
    %2599 = vmatpush2.bf16.xpose.msra.mxu0 0
    %2600 = vmatprep.subr.bf16.mxu0 0
    %2601 = vmatpush2.bf16.xpose.msra.mxu0 0
    %2602 = vmatprep.subr.bf16.mxu0 0
    %2603 = vmatpush2.bf16.xpose.msra.mxu0 0
    %2604 = vmatprep.subr.bf16.mxu0 0
    %2605 = vmatpush2.bf16.xpose.msra.mxu0 0
    %2606 = vmatprep.subr.bf16.mxu0 0
    %2607 = vmatpush2.bf16.xpose.msra.mxu0 0
    %2608 = vmatprep.subr.bf16.mxu0 0
    %2609 = vmatpush2.bf16.xpose.msra.mxu0 0
    %2610 = vmatprep.subr.bf16.mxu0 0
    %2611 = vmatpush2.bf16.xpose.msra.mxu0 0
    %2612 = vmatprep.mubr.bf16.mxu0 0
    %2613 = vmatmul.mubr.bf16.gmra.mxu0 %v2575
    %v2614 = vpop.f32.mrf.mxu0
    %v2615 = vadd.f32 0.0, %v2614
    %v2616 = vpop.f32.mrf.mxu0
    %v2617 = vpop.f32.mrf.mxu0
    %v2618 = vpop.f32.mrf.mxu0
    %2619 = vdwg.mxu0
    %2621 = vrot.lane.b32.xlu0 %v2350, 112
    %v2622 = vpop.permute.xlu0 %2621
    %2624 = vrot.lane.b32.xlu0 %v2352, 112
    %v2625 = vpop.permute.xlu0 %2624
    %v2627 = vsel %vm554, %v2622, 0
    %v2630 = vsel %vm554, %v2625, 0
    %2632 = vmatprep.subr.bf16.mxu0 0
    %2633 = vmatpush1.bf16.xpose.msra.mxu0 0
    %2634 = vmatprep.subr.bf16.mxu0 0
    %2635 = vmatpush1.bf16.xpose.msra.mxu0 0
    %2636 = vmatprep.subr.bf16.mxu0 0
    %2637 = vmatpush1.bf16.xpose.msra.mxu0 0
    %2638 = vmatprep.subr.bf16.mxu0 0
    %2639 = vmatpush1.bf16.xpose.msra.mxu0 0
    %2640 = vmatprep.subr.bf16.mxu0 0
    %2641 = vmatpush1.bf16.xpose.msra.mxu0 0
    %2642 = vmatprep.subr.bf16.mxu0 0
    %2643 = vmatpush1.bf16.xpose.msra.mxu0 0
    %2644 = vmatprep.subr.bf16.mxu0 0
    %2645 = vmatpush1.bf16.xpose.msra.mxu0 0
    %2646 = vmatprep.subr.bf16.mxu0 0
    %2647 = vmatpush1.bf16.xpose.msra.mxu0 %v2630
    %2648 = vmatprep.subr.bf16.mxu0 0
    %2649 = vmatpush2.bf16.xpose.msra.mxu0 0
    %2650 = vmatprep.subr.bf16.mxu0 0
    %2651 = vmatpush2.bf16.xpose.msra.mxu0 0
    %2652 = vmatprep.subr.bf16.mxu0 0
    %2653 = vmatpush2.bf16.xpose.msra.mxu0 0
    %2654 = vmatprep.subr.bf16.mxu0 0
    %2655 = vmatpush2.bf16.xpose.msra.mxu0 0
    %2656 = vmatprep.subr.bf16.mxu0 0
    %2657 = vmatpush2.bf16.xpose.msra.mxu0 0
    %2658 = vmatprep.subr.bf16.mxu0 0
    %2659 = vmatpush2.bf16.xpose.msra.mxu0 0
    %2660 = vmatprep.subr.bf16.mxu0 0
    %2661 = vmatpush2.bf16.xpose.msra.mxu0 0
    %2662 = vmatprep.subr.bf16.mxu0 0
    %2663 = vmatpush2.bf16.xpose.msra.mxu0 0
    %2664 = vmatprep.mubr.bf16.mxu0 0
    %2665 = vmatmul.mubr.bf16.gmra.mxu0 %v2627
    %v2666 = vpop.f32.mrf.mxu0
    %v2667 = vadd.f32 0.0, %v2666
    %v2668 = vpop.f32.mrf.mxu0
    %v2669 = vpop.f32.mrf.mxu0
    %v2670 = vpop.f32.mrf.mxu0
    %2671 = vdwg.mxu0
    %v2672 = vmul.f32 %v2615, 0.25
    %v2673 = vmul.f32 %v2667, 0.25
    %v2674 = vsel %vm650, %v2672, -1e+30
    %v2675 = vsel %vm650, %v2673, -1e+30
    %v2676 = vsel %vm653, %v2674, -inf
    %2677 = vmax.xlane.f32.xlu0 %v2676
    %v2678 = vpop.xlane.xlu0 %2677
    %v2679 = vsel %vm653, %v2675, -inf
    %2680 = vmax.xlane.f32.xlu0 %v2679
    %v2681 = vpop.xlane.xlu0 %2680
    %v2682 = vsub.f32 %v2674, %v2678
    %v2683 = vsub.f32 %v2675, %v2681
    %v2684 = vmul.f32 %v2682, 1.442695
    %v2685 = vpow.pop %v2684
    %v2686 = vmul.f32 %v2683, 1.442695
    %v2687 = vpow.pop %v2686
    %v2688 = vsel %vm653, %v2685, 0.0
    %2689 = vadd.xlane.f32.xlu0 %v2688
    %v2690 = vpop.xlane.xlu0 %2689
    %v2691 = vsel %vm653, %v2687, 0.0
    %2692 = vadd.xlane.f32.xlu0 %v2691
    %v2693 = vpop.xlane.xlu0 %2692
    %v2694 = vrcp.pop %v2690
    %v2695 = vrcp.pop %v2693
    %v2696 = vmul.f32 %v2685, %v2694
    %v2697 = vmul.f32 %v2687, %v2695
    %v2698 = vpack.c.bf16 %v2696, %v2696
    %v2699 = vpack.c.bf16 %v2697, %v2697
    %2701 = vrot.lane.b32.xlu0 %v2353, 112
    %v2702 = vpop.permute.xlu0 %2701
    %v2704 = vsel %vm653, %v2698, 0
    %v2707 = vsel %vm681, %v2702, 0
    %2709 = vmatprep.subr.bf16.mxu0 0
    %2710 = vmatpush1.bf16.msra.mxu0 0
    %2711 = vmatprep.subr.bf16.mxu0 0
    %2712 = vmatpush1.bf16.msra.mxu0 0
    %2713 = vmatprep.subr.bf16.mxu0 0
    %2714 = vmatpush1.bf16.msra.mxu0 0
    %2715 = vmatprep.subr.bf16.mxu0 0
    %2716 = vmatpush1.bf16.msra.mxu0 0
    %2717 = vmatprep.subr.bf16.mxu0 0
    %2718 = vmatpush1.bf16.msra.mxu0 0
    %2719 = vmatprep.subr.bf16.mxu0 0
    %2720 = vmatpush1.bf16.msra.mxu0 0
    %2721 = vmatprep.subr.bf16.mxu0 0
    %2722 = vmatpush1.bf16.msra.mxu0 0
    %2723 = vmatprep.subr.bf16.mxu0 0
    %2724 = vmatpush1.bf16.msra.mxu0 %v2707
    %2725 = vmatprep.subr.bf16.mxu0 0
    %2726 = vmatpush2.bf16.msra.mxu0 0
    %2727 = vmatprep.subr.bf16.mxu0 0
    %2728 = vmatpush2.bf16.msra.mxu0 0
    %2729 = vmatprep.subr.bf16.mxu0 0
    %2730 = vmatpush2.bf16.msra.mxu0 0
    %2731 = vmatprep.subr.bf16.mxu0 0
    %2732 = vmatpush2.bf16.msra.mxu0 0
    %2733 = vmatprep.subr.bf16.mxu0 0
    %2734 = vmatpush2.bf16.msra.mxu0 0
    %2735 = vmatprep.subr.bf16.mxu0 0
    %2736 = vmatpush2.bf16.msra.mxu0 0
    %2737 = vmatprep.subr.bf16.mxu0 0
    %2738 = vmatpush2.bf16.msra.mxu0 0
    %2739 = vmatprep.subr.bf16.mxu0 0
    %2740 = vmatpush2.bf16.msra.mxu0 0
    %2741 = vmatprep.mubr.bf16.mxu0 0
    %2742 = vmatmul.mubr.bf16.gmra.mxu0 %v2704
    %v2743 = vpop.f32.mrf.mxu0
    %v2744 = vadd.f32 0.0, %v2743
    %v2745 = vpop.f32.mrf.mxu0
    %v2746 = vpop.f32.mrf.mxu0
    %v2747 = vpop.f32.mrf.mxu0
    %2748 = vdwg.mxu0
    %2750 = vrot.lane.b32.xlu0 %v2354, 112
    %v2751 = vpop.permute.xlu0 %2750
    %v2753 = vsel %vm653, %v2699, 0
    %v2756 = vsel %vm681, %v2751, 0
    %2758 = vmatprep.subr.bf16.mxu0 0
    %2759 = vmatpush1.bf16.msra.mxu0 0
    %2760 = vmatprep.subr.bf16.mxu0 0
    %2761 = vmatpush1.bf16.msra.mxu0 0
    %2762 = vmatprep.subr.bf16.mxu0 0
    %2763 = vmatpush1.bf16.msra.mxu0 0
    %2764 = vmatprep.subr.bf16.mxu0 0
    %2765 = vmatpush1.bf16.msra.mxu0 0
    %2766 = vmatprep.subr.bf16.mxu0 0
    %2767 = vmatpush1.bf16.msra.mxu0 0
    %2768 = vmatprep.subr.bf16.mxu0 0
    %2769 = vmatpush1.bf16.msra.mxu0 0
    %2770 = vmatprep.subr.bf16.mxu0 0
    %2771 = vmatpush1.bf16.msra.mxu0 0
    %2772 = vmatprep.subr.bf16.mxu0 0
    %2773 = vmatpush1.bf16.msra.mxu0 %v2756
    %2774 = vmatprep.subr.bf16.mxu0 0
    %2775 = vmatpush2.bf16.msra.mxu0 0
    %2776 = vmatprep.subr.bf16.mxu0 0
    %2777 = vmatpush2.bf16.msra.mxu0 0
    %2778 = vmatprep.subr.bf16.mxu0 0
    %2779 = vmatpush2.bf16.msra.mxu0 0
    %2780 = vmatprep.subr.bf16.mxu0 0
    %2781 = vmatpush2.bf16.msra.mxu0 0
    %2782 = vmatprep.subr.bf16.mxu0 0
    %2783 = vmatpush2.bf16.msra.mxu0 0
    %2784 = vmatprep.subr.bf16.mxu0 0
    %2785 = vmatpush2.bf16.msra.mxu0 0
    %2786 = vmatprep.subr.bf16.mxu0 0
    %2787 = vmatpush2.bf16.msra.mxu0 0
    %2788 = vmatprep.subr.bf16.mxu0 0
    %2789 = vmatpush2.bf16.msra.mxu0 0
    %2790 = vmatprep.mubr.bf16.mxu0 0
    %2791 = vmatmul.mubr.bf16.gmra.mxu0 %v2753
    %v2792 = vpop.f32.mrf.mxu0
    %v2793 = vadd.f32 0.0, %v2792
    %v2794 = vpop.f32.mrf.mxu0
    %v2795 = vpop.f32.mrf.mxu0
    %v2796 = vpop.f32.mrf.mxu0
    %2797 = vdwg.mxu0
    %v2798 = vpack.c.bf16 %v2793, %v2744
    %v2801 = vunpack.c.l.b16 %v2032
    %v2802 = vunpack.c.l.b16 %v2033
    %v2803 = vpack.c.b16 %v2802, %v2801
    %v2806 = vsel %vm554, %v2798, 0
    %2808 = vmatprep.subr.bf16.mxu0 0
    %2809 = vmatpush1.bf16.msra.mxu0 0
    %2810 = vmatprep.subr.bf16.mxu0 0
    %2811 = vmatpush1.bf16.msra.mxu0 0
    %2812 = vmatprep.subr.bf16.mxu0 0
    %2813 = vmatpush1.bf16.msra.mxu0 0
    %2814 = vmatprep.subr.bf16.mxu0 0
    %2815 = vmatpush1.bf16.msra.mxu0 0
    %2816 = vmatprep.subr.bf16.mxu0 0
    %2817 = vmatpush1.bf16.msra.mxu0 0
    %2818 = vmatprep.subr.bf16.mxu0 0
    %2819 = vmatpush1.bf16.msra.mxu0 0
    %2820 = vmatprep.subr.bf16.mxu0 0
    %2821 = vmatpush1.bf16.msra.mxu0 0
    %2822 = vmatprep.subr.bf16.mxu0 0
    %2823 = vmatpush1.bf16.msra.mxu0 %v2803
    %2824 = vmatprep.subr.bf16.mxu0 0
    %2825 = vmatpush2.bf16.msra.mxu0 0
    %2826 = vmatprep.subr.bf16.mxu0 0
    %2827 = vmatpush2.bf16.msra.mxu0 0
    %2828 = vmatprep.subr.bf16.mxu0 0
    %2829 = vmatpush2.bf16.msra.mxu0 0
    %2830 = vmatprep.subr.bf16.mxu0 0
    %2831 = vmatpush2.bf16.msra.mxu0 0
    %2832 = vmatprep.subr.bf16.mxu0 0
    %2833 = vmatpush2.bf16.msra.mxu0 0
    %2834 = vmatprep.subr.bf16.mxu0 0
    %2835 = vmatpush2.bf16.msra.mxu0 0
    %2836 = vmatprep.subr.bf16.mxu0 0
    %2837 = vmatpush2.bf16.msra.mxu0 0
    %2838 = vmatprep.subr.bf16.mxu0 0
    %2839 = vmatpush2.bf16.msra.mxu0 0
    %2840 = vmatprep.mubr.bf16.mxu0 0
    %2841 = vmatmul.mubr.bf16.gmra.mxu0 %v2806
    %v2842 = vpop.f32.mrf.mxu0
    %v2843 = vadd.f32 0.0, %v2842
    %v2844 = vpop.f32.mrf.mxu0
    %v2845 = vpop.f32.mrf.mxu0
    %v2846 = vadd.f32 0.0, %v2845
    %v2847 = vpop.f32.mrf.mxu0
    %2848 = vdwg.mxu0
    %v2851 = vunpack.c.l.b16 %v2030
    %v2852 = vunpack.c.l.b16 %v2031
    %v2853 = vpack.c.b16 %v2852, %v2851
    %v2856 = vsel %vm554, %v2567, 0
    %2858 = vmatprep.subr.bf16.mxu0 0
    %2859 = vmatpush1.bf16.msra.mxu0 0
    %2860 = vmatprep.subr.bf16.mxu0 0
    %2861 = vmatpush1.bf16.msra.mxu0 0
    %2862 = vmatprep.subr.bf16.mxu0 0
    %2863 = vmatpush1.bf16.msra.mxu0 0
    %2864 = vmatprep.subr.bf16.mxu0 0
    %2865 = vmatpush1.bf16.msra.mxu0 0
    %2866 = vmatprep.subr.bf16.mxu0 0
    %2867 = vmatpush1.bf16.msra.mxu0 0
    %2868 = vmatprep.subr.bf16.mxu0 0
    %2869 = vmatpush1.bf16.msra.mxu0 0
    %2870 = vmatprep.subr.bf16.mxu0 0
    %2871 = vmatpush1.bf16.msra.mxu0 0
    %2872 = vmatprep.subr.bf16.mxu0 0
    %2873 = vmatpush1.bf16.msra.mxu0 %v2853
    %2874 = vmatprep.subr.bf16.mxu0 0
    %2875 = vmatpush2.bf16.msra.mxu0 0
    %2876 = vmatprep.subr.bf16.mxu0 0
    %2877 = vmatpush2.bf16.msra.mxu0 0
    %2878 = vmatprep.subr.bf16.mxu0 0
    %2879 = vmatpush2.bf16.msra.mxu0 0
    %2880 = vmatprep.subr.bf16.mxu0 0
    %2881 = vmatpush2.bf16.msra.mxu0 0
    %2882 = vmatprep.subr.bf16.mxu0 0
    %2883 = vmatpush2.bf16.msra.mxu0 0
    %2884 = vmatprep.subr.bf16.mxu0 0
    %2885 = vmatpush2.bf16.msra.mxu0 0
    %2886 = vmatprep.subr.bf16.mxu0 0
    %2887 = vmatpush2.bf16.msra.mxu0 0
    %2888 = vmatprep.subr.bf16.mxu0 0
    %2889 = vmatpush2.bf16.msra.mxu0 0
    %2890 = vmatprep.mubr.bf16.mxu0 0
    %2891 = vmatmul.mubr.bf16.gmra.mxu0 %v2856
    %v2892 = vpop.f32.mrf.mxu0
    %v2893 = vadd.f32 %v2843, %v2892
    %v2894 = vpop.f32.mrf.mxu0
    %v2895 = vpop.f32.mrf.mxu0
    %v2896 = vadd.f32 %v2846, %v2895
    %v2897 = vpop.f32.mrf.mxu0
    %2898 = vdwg.mxu0
    %2899 = vrot.lane.b32.xlu0 %v2349, 96
    %v2900 = vpop.permute.xlu0 %2899
    %2901 = vrot.lane.b32.xlu0 %v2351, 96
    %v2902 = vpop.permute.xlu0 %2901
    %v2904 = vsel %vm554, %v2900, 0
    %v2907 = vsel %vm554, %v2902, 0
    %2909 = vmatprep.subr.bf16.mxu0 0
    %2910 = vmatpush1.bf16.xpose.msra.mxu0 0
    %2911 = vmatprep.subr.bf16.mxu0 0
    %2912 = vmatpush1.bf16.xpose.msra.mxu0 0
    %2913 = vmatprep.subr.bf16.mxu0 0
    %2914 = vmatpush1.bf16.xpose.msra.mxu0 0
    %2915 = vmatprep.subr.bf16.mxu0 0
    %2916 = vmatpush1.bf16.xpose.msra.mxu0 0
    %2917 = vmatprep.subr.bf16.mxu0 0
    %2918 = vmatpush1.bf16.xpose.msra.mxu0 0
    %2919 = vmatprep.subr.bf16.mxu0 0
    %2920 = vmatpush1.bf16.xpose.msra.mxu0 0
    %2921 = vmatprep.subr.bf16.mxu0 0
    %2922 = vmatpush1.bf16.xpose.msra.mxu0 0
    %2923 = vmatprep.subr.bf16.mxu0 0
    %2924 = vmatpush1.bf16.xpose.msra.mxu0 %v2907
    %2925 = vmatprep.subr.bf16.mxu0 0
    %2926 = vmatpush2.bf16.xpose.msra.mxu0 0
    %2927 = vmatprep.subr.bf16.mxu0 0
    %2928 = vmatpush2.bf16.xpose.msra.mxu0 0
    %2929 = vmatprep.subr.bf16.mxu0 0
    %2930 = vmatpush2.bf16.xpose.msra.mxu0 0
    %2931 = vmatprep.subr.bf16.mxu0 0
    %2932 = vmatpush2.bf16.xpose.msra.mxu0 0
    %2933 = vmatprep.subr.bf16.mxu0 0
    %2934 = vmatpush2.bf16.xpose.msra.mxu0 0
    %2935 = vmatprep.subr.bf16.mxu0 0
    %2936 = vmatpush2.bf16.xpose.msra.mxu0 0
    %2937 = vmatprep.subr.bf16.mxu0 0
    %2938 = vmatpush2.bf16.xpose.msra.mxu0 0
    %2939 = vmatprep.subr.bf16.mxu0 0
    %2940 = vmatpush2.bf16.xpose.msra.mxu0 0
    %2941 = vmatprep.mubr.bf16.mxu0 0
    %2942 = vmatmul.mubr.bf16.gmra.mxu0 %v2904
    %v2943 = vpop.f32.mrf.mxu0
    %v2944 = vadd.f32 0.0, %v2943
    %v2945 = vpop.f32.mrf.mxu0
    %v2946 = vpop.f32.mrf.mxu0
    %v2947 = vpop.f32.mrf.mxu0
    %2948 = vdwg.mxu0
    %2949 = vrot.lane.b32.xlu0 %v2350, 96
    %v2950 = vpop.permute.xlu0 %2949
    %2951 = vrot.lane.b32.xlu0 %v2352, 96
    %v2952 = vpop.permute.xlu0 %2951
    %v2954 = vsel %vm554, %v2950, 0
    %v2957 = vsel %vm554, %v2952, 0
    %2959 = vmatprep.subr.bf16.mxu0 0
    %2960 = vmatpush1.bf16.xpose.msra.mxu0 0
    %2961 = vmatprep.subr.bf16.mxu0 0
    %2962 = vmatpush1.bf16.xpose.msra.mxu0 0
    %2963 = vmatprep.subr.bf16.mxu0 0
    %2964 = vmatpush1.bf16.xpose.msra.mxu0 0
    %2965 = vmatprep.subr.bf16.mxu0 0
    %2966 = vmatpush1.bf16.xpose.msra.mxu0 0
    %2967 = vmatprep.subr.bf16.mxu0 0
    %2968 = vmatpush1.bf16.xpose.msra.mxu0 0
    %2969 = vmatprep.subr.bf16.mxu0 0
    %2970 = vmatpush1.bf16.xpose.msra.mxu0 0
    %2971 = vmatprep.subr.bf16.mxu0 0
    %2972 = vmatpush1.bf16.xpose.msra.mxu0 0
    %2973 = vmatprep.subr.bf16.mxu0 0
    %2974 = vmatpush1.bf16.xpose.msra.mxu0 %v2957
    %2975 = vmatprep.subr.bf16.mxu0 0
    %2976 = vmatpush2.bf16.xpose.msra.mxu0 0
    %2977 = vmatprep.subr.bf16.mxu0 0
    %2978 = vmatpush2.bf16.xpose.msra.mxu0 0
    %2979 = vmatprep.subr.bf16.mxu0 0
    %2980 = vmatpush2.bf16.xpose.msra.mxu0 0
    %2981 = vmatprep.subr.bf16.mxu0 0
    %2982 = vmatpush2.bf16.xpose.msra.mxu0 0
    %2983 = vmatprep.subr.bf16.mxu0 0
    %2984 = vmatpush2.bf16.xpose.msra.mxu0 0
    %2985 = vmatprep.subr.bf16.mxu0 0
    %2986 = vmatpush2.bf16.xpose.msra.mxu0 0
    %2987 = vmatprep.subr.bf16.mxu0 0
    %2988 = vmatpush2.bf16.xpose.msra.mxu0 0
    %2989 = vmatprep.subr.bf16.mxu0 0
    %2990 = vmatpush2.bf16.xpose.msra.mxu0 0
    %2991 = vmatprep.mubr.bf16.mxu0 0
    %2992 = vmatmul.mubr.bf16.gmra.mxu0 %v2954
    %v2993 = vpop.f32.mrf.mxu0
    %v2994 = vadd.f32 0.0, %v2993
    %v2995 = vpop.f32.mrf.mxu0
    %v2996 = vpop.f32.mrf.mxu0
    %v2997 = vpop.f32.mrf.mxu0
    %2998 = vdwg.mxu0
    %v2999 = vmul.f32 %v2944, 0.25
    %v3000 = vmul.f32 %v2994, 0.25
    %v3001 = vsel %vm650, %v2999, -1e+30
    %v3002 = vsel %vm650, %v3000, -1e+30
    %v3003 = vsel %vm653, %v3001, -inf
    %3004 = vmax.xlane.f32.xlu0 %v3003
    %v3005 = vpop.xlane.xlu0 %3004
    %v3006 = vsel %vm653, %v3002, -inf
    %3007 = vmax.xlane.f32.xlu0 %v3006
    %v3008 = vpop.xlane.xlu0 %3007
    %v3009 = vsub.f32 %v3001, %v3005
    %v3010 = vsub.f32 %v3002, %v3008
    %v3011 = vmul.f32 %v3009, 1.442695
    %v3012 = vpow.pop %v3011
    %v3013 = vmul.f32 %v3010, 1.442695
    %v3014 = vpow.pop %v3013
    %v3015 = vsel %vm653, %v3012, 0.0
    %3016 = vadd.xlane.f32.xlu0 %v3015
    %v3017 = vpop.xlane.xlu0 %3016
    %v3018 = vsel %vm653, %v3014, 0.0
    %3019 = vadd.xlane.f32.xlu0 %v3018
    %v3020 = vpop.xlane.xlu0 %3019
    %v3021 = vrcp.pop %v3017
    %v3022 = vrcp.pop %v3020
    %v3023 = vmul.f32 %v3012, %v3021
    %v3024 = vmul.f32 %v3014, %v3022
    %v3025 = vpack.c.bf16 %v3023, %v3023
    %v3026 = vpack.c.bf16 %v3024, %v3024
    %3027 = vrot.lane.b32.xlu0 %v2353, 96
    %v3028 = vpop.permute.xlu0 %3027
    %v3030 = vsel %vm653, %v3025, 0
    %v3033 = vsel %vm681, %v3028, 0
    %3035 = vmatprep.subr.bf16.mxu0 0
    %3036 = vmatpush1.bf16.msra.mxu0 0
    %3037 = vmatprep.subr.bf16.mxu0 0
    %3038 = vmatpush1.bf16.msra.mxu0 0
    %3039 = vmatprep.subr.bf16.mxu0 0
    %3040 = vmatpush1.bf16.msra.mxu0 0
    %3041 = vmatprep.subr.bf16.mxu0 0
    %3042 = vmatpush1.bf16.msra.mxu0 0
    %3043 = vmatprep.subr.bf16.mxu0 0
    %3044 = vmatpush1.bf16.msra.mxu0 0
    %3045 = vmatprep.subr.bf16.mxu0 0
    %3046 = vmatpush1.bf16.msra.mxu0 0
    %3047 = vmatprep.subr.bf16.mxu0 0
    %3048 = vmatpush1.bf16.msra.mxu0 0
    %3049 = vmatprep.subr.bf16.mxu0 0
    %3050 = vmatpush1.bf16.msra.mxu0 %v3033
    %3051 = vmatprep.subr.bf16.mxu0 0
    %3052 = vmatpush2.bf16.msra.mxu0 0
    %3053 = vmatprep.subr.bf16.mxu0 0
    %3054 = vmatpush2.bf16.msra.mxu0 0
    %3055 = vmatprep.subr.bf16.mxu0 0
    %3056 = vmatpush2.bf16.msra.mxu0 0
    %3057 = vmatprep.subr.bf16.mxu0 0
    %3058 = vmatpush2.bf16.msra.mxu0 0
    %3059 = vmatprep.subr.bf16.mxu0 0
    %3060 = vmatpush2.bf16.msra.mxu0 0
    %3061 = vmatprep.subr.bf16.mxu0 0
    %3062 = vmatpush2.bf16.msra.mxu0 0
    %3063 = vmatprep.subr.bf16.mxu0 0
    %3064 = vmatpush2.bf16.msra.mxu0 0
    %3065 = vmatprep.subr.bf16.mxu0 0
    %3066 = vmatpush2.bf16.msra.mxu0 0
    %3067 = vmatprep.mubr.bf16.mxu0 0
    %3068 = vmatmul.mubr.bf16.gmra.mxu0 %v3030
    %v3069 = vpop.f32.mrf.mxu0
    %v3070 = vadd.f32 0.0, %v3069
    %v3071 = vpop.f32.mrf.mxu0
    %v3072 = vpop.f32.mrf.mxu0
    %v3073 = vpop.f32.mrf.mxu0
    %3074 = vdwg.mxu0
    %3075 = vrot.lane.b32.xlu0 %v2354, 96
    %v3076 = vpop.permute.xlu0 %3075
    %v3078 = vsel %vm653, %v3026, 0
    %v3081 = vsel %vm681, %v3076, 0
    %3083 = vmatprep.subr.bf16.mxu0 0
    %3084 = vmatpush1.bf16.msra.mxu0 0
    %3085 = vmatprep.subr.bf16.mxu0 0
    %3086 = vmatpush1.bf16.msra.mxu0 0
    %3087 = vmatprep.subr.bf16.mxu0 0
    %3088 = vmatpush1.bf16.msra.mxu0 0
    %3089 = vmatprep.subr.bf16.mxu0 0
    %3090 = vmatpush1.bf16.msra.mxu0 0
    %3091 = vmatprep.subr.bf16.mxu0 0
    %3092 = vmatpush1.bf16.msra.mxu0 0
    %3093 = vmatprep.subr.bf16.mxu0 0
    %3094 = vmatpush1.bf16.msra.mxu0 0
    %3095 = vmatprep.subr.bf16.mxu0 0
    %3096 = vmatpush1.bf16.msra.mxu0 0
    %3097 = vmatprep.subr.bf16.mxu0 0
    %3098 = vmatpush1.bf16.msra.mxu0 %v3081
    %3099 = vmatprep.subr.bf16.mxu0 0
    %3100 = vmatpush2.bf16.msra.mxu0 0
    %3101 = vmatprep.subr.bf16.mxu0 0
    %3102 = vmatpush2.bf16.msra.mxu0 0
    %3103 = vmatprep.subr.bf16.mxu0 0
    %3104 = vmatpush2.bf16.msra.mxu0 0
    %3105 = vmatprep.subr.bf16.mxu0 0
    %3106 = vmatpush2.bf16.msra.mxu0 0
    %3107 = vmatprep.subr.bf16.mxu0 0
    %3108 = vmatpush2.bf16.msra.mxu0 0
    %3109 = vmatprep.subr.bf16.mxu0 0
    %3110 = vmatpush2.bf16.msra.mxu0 0
    %3111 = vmatprep.subr.bf16.mxu0 0
    %3112 = vmatpush2.bf16.msra.mxu0 0
    %3113 = vmatprep.subr.bf16.mxu0 0
    %3114 = vmatpush2.bf16.msra.mxu0 0
    %3115 = vmatprep.mubr.bf16.mxu0 0
    %3116 = vmatmul.mubr.bf16.gmra.mxu0 %v3078
    %v3117 = vpop.f32.mrf.mxu0
    %v3118 = vadd.f32 0.0, %v3117
    %v3119 = vpop.f32.mrf.mxu0
    %v3120 = vpop.f32.mrf.mxu0
    %v3121 = vpop.f32.mrf.mxu0
    %3122 = vdwg.mxu0
    %v3123 = vpack.c.bf16 %v3118, %v3070
    %v3126 = vunpack.c.l.b16 %v2034
    %v3127 = vunpack.c.l.b16 %v2035
    %v3128 = vpack.c.b16 %v3127, %v3126
    %v3131 = vsel %vm554, %v3123, 0
    %3133 = vmatprep.subr.bf16.mxu0 0
    %3134 = vmatpush1.bf16.msra.mxu0 0
    %3135 = vmatprep.subr.bf16.mxu0 0
    %3136 = vmatpush1.bf16.msra.mxu0 0
    %3137 = vmatprep.subr.bf16.mxu0 0
    %3138 = vmatpush1.bf16.msra.mxu0 0
    %3139 = vmatprep.subr.bf16.mxu0 0
    %3140 = vmatpush1.bf16.msra.mxu0 0
    %3141 = vmatprep.subr.bf16.mxu0 0
    %3142 = vmatpush1.bf16.msra.mxu0 0
    %3143 = vmatprep.subr.bf16.mxu0 0
    %3144 = vmatpush1.bf16.msra.mxu0 0
    %3145 = vmatprep.subr.bf16.mxu0 0
    %3146 = vmatpush1.bf16.msra.mxu0 0
    %3147 = vmatprep.subr.bf16.mxu0 0
    %3148 = vmatpush1.bf16.msra.mxu0 %v3128
    %3149 = vmatprep.subr.bf16.mxu0 0
    %3150 = vmatpush2.bf16.msra.mxu0 0
    %3151 = vmatprep.subr.bf16.mxu0 0
    %3152 = vmatpush2.bf16.msra.mxu0 0
    %3153 = vmatprep.subr.bf16.mxu0 0
    %3154 = vmatpush2.bf16.msra.mxu0 0
    %3155 = vmatprep.subr.bf16.mxu0 0
    %3156 = vmatpush2.bf16.msra.mxu0 0
    %3157 = vmatprep.subr.bf16.mxu0 0
    %3158 = vmatpush2.bf16.msra.mxu0 0
    %3159 = vmatprep.subr.bf16.mxu0 0
    %3160 = vmatpush2.bf16.msra.mxu0 0
    %3161 = vmatprep.subr.bf16.mxu0 0
    %3162 = vmatpush2.bf16.msra.mxu0 0
    %3163 = vmatprep.subr.bf16.mxu0 0
    %3164 = vmatpush2.bf16.msra.mxu0 0
    %3165 = vmatprep.mubr.bf16.mxu0 0
    %3166 = vmatmul.mubr.bf16.gmra.mxu0 %v3131
    %v3167 = vpop.f32.mrf.mxu0
    %v3168 = vadd.f32 0.0, %v3167
    %v3169 = vpop.f32.mrf.mxu0
    %v3170 = vpop.f32.mrf.mxu0
    %v3171 = vadd.f32 0.0, %v3170
    %v3172 = vpop.f32.mrf.mxu0
    %3173 = vdwg.mxu0
    %v3174 = vadd.f32 %v2893, %v3168
    %v3175 = vadd.f32 %v2896, %v3171
    %3176 = vrot.lane.b32.xlu0 %v2349, 80
    %v3177 = vpop.permute.xlu0 %3176
    %3178 = vrot.lane.b32.xlu0 %v2351, 80
    %v3179 = vpop.permute.xlu0 %3178
    %v3181 = vsel %vm554, %v3177, 0
    %v3184 = vsel %vm554, %v3179, 0
    %3186 = vmatprep.subr.bf16.mxu0 0
    %3187 = vmatpush1.bf16.xpose.msra.mxu0 0
    %3188 = vmatprep.subr.bf16.mxu0 0
    %3189 = vmatpush1.bf16.xpose.msra.mxu0 0
    %3190 = vmatprep.subr.bf16.mxu0 0
    %3191 = vmatpush1.bf16.xpose.msra.mxu0 0
    %3192 = vmatprep.subr.bf16.mxu0 0
    %3193 = vmatpush1.bf16.xpose.msra.mxu0 0
    %3194 = vmatprep.subr.bf16.mxu0 0
    %3195 = vmatpush1.bf16.xpose.msra.mxu0 0
    %3196 = vmatprep.subr.bf16.mxu0 0
    %3197 = vmatpush1.bf16.xpose.msra.mxu0 0
    %3198 = vmatprep.subr.bf16.mxu0 0
    %3199 = vmatpush1.bf16.xpose.msra.mxu0 0
    %3200 = vmatprep.subr.bf16.mxu0 0
    %3201 = vmatpush1.bf16.xpose.msra.mxu0 %v3184
    %3202 = vmatprep.subr.bf16.mxu0 0
    %3203 = vmatpush2.bf16.xpose.msra.mxu0 0
    %3204 = vmatprep.subr.bf16.mxu0 0
    %3205 = vmatpush2.bf16.xpose.msra.mxu0 0
    %3206 = vmatprep.subr.bf16.mxu0 0
    %3207 = vmatpush2.bf16.xpose.msra.mxu0 0
    %3208 = vmatprep.subr.bf16.mxu0 0
    %3209 = vmatpush2.bf16.xpose.msra.mxu0 0
    %3210 = vmatprep.subr.bf16.mxu0 0
    %3211 = vmatpush2.bf16.xpose.msra.mxu0 0
    %3212 = vmatprep.subr.bf16.mxu0 0
    %3213 = vmatpush2.bf16.xpose.msra.mxu0 0
    %3214 = vmatprep.subr.bf16.mxu0 0
    %3215 = vmatpush2.bf16.xpose.msra.mxu0 0
    %3216 = vmatprep.subr.bf16.mxu0 0
    %3217 = vmatpush2.bf16.xpose.msra.mxu0 0
    %3218 = vmatprep.mubr.bf16.mxu0 0
    %3219 = vmatmul.mubr.bf16.gmra.mxu0 %v3181
    %v3220 = vpop.f32.mrf.mxu0
    %v3221 = vadd.f32 0.0, %v3220
    %v3222 = vpop.f32.mrf.mxu0
    %v3223 = vpop.f32.mrf.mxu0
    %v3224 = vpop.f32.mrf.mxu0
    %3225 = vdwg.mxu0
    %3226 = vrot.lane.b32.xlu0 %v2350, 80
    %v3227 = vpop.permute.xlu0 %3226
    %3228 = vrot.lane.b32.xlu0 %v2352, 80
    %v3229 = vpop.permute.xlu0 %3228
    %v3231 = vsel %vm554, %v3227, 0
    %v3234 = vsel %vm554, %v3229, 0
    %3236 = vmatprep.subr.bf16.mxu0 0
    %3237 = vmatpush1.bf16.xpose.msra.mxu0 0
    %3238 = vmatprep.subr.bf16.mxu0 0
    %3239 = vmatpush1.bf16.xpose.msra.mxu0 0
    %3240 = vmatprep.subr.bf16.mxu0 0
    %3241 = vmatpush1.bf16.xpose.msra.mxu0 0
    %3242 = vmatprep.subr.bf16.mxu0 0
    %3243 = vmatpush1.bf16.xpose.msra.mxu0 0
    %3244 = vmatprep.subr.bf16.mxu0 0
    %3245 = vmatpush1.bf16.xpose.msra.mxu0 0
    %3246 = vmatprep.subr.bf16.mxu0 0
    %3247 = vmatpush1.bf16.xpose.msra.mxu0 0
    %3248 = vmatprep.subr.bf16.mxu0 0
    %3249 = vmatpush1.bf16.xpose.msra.mxu0 0
    %3250 = vmatprep.subr.bf16.mxu0 0
    %3251 = vmatpush1.bf16.xpose.msra.mxu0 %v3234
    %3252 = vmatprep.subr.bf16.mxu0 0
    %3253 = vmatpush2.bf16.xpose.msra.mxu0 0
    %3254 = vmatprep.subr.bf16.mxu0 0
    %3255 = vmatpush2.bf16.xpose.msra.mxu0 0
    %3256 = vmatprep.subr.bf16.mxu0 0
    %3257 = vmatpush2.bf16.xpose.msra.mxu0 0
    %3258 = vmatprep.subr.bf16.mxu0 0
    %3259 = vmatpush2.bf16.xpose.msra.mxu0 0
    %3260 = vmatprep.subr.bf16.mxu0 0
    %3261 = vmatpush2.bf16.xpose.msra.mxu0 0
    %3262 = vmatprep.subr.bf16.mxu0 0
    %3263 = vmatpush2.bf16.xpose.msra.mxu0 0
    %3264 = vmatprep.subr.bf16.mxu0 0
    %3265 = vmatpush2.bf16.xpose.msra.mxu0 0
    %3266 = vmatprep.subr.bf16.mxu0 0
    %3267 = vmatpush2.bf16.xpose.msra.mxu0 0
    %3268 = vmatprep.mubr.bf16.mxu0 0
    %3269 = vmatmul.mubr.bf16.gmra.mxu0 %v3231
    %v3270 = vpop.f32.mrf.mxu0
    %v3271 = vadd.f32 0.0, %v3270
    %v3272 = vpop.f32.mrf.mxu0
    %v3273 = vpop.f32.mrf.mxu0
    %v3274 = vpop.f32.mrf.mxu0
    %3275 = vdwg.mxu0
    %v3276 = vmul.f32 %v3221, 0.25
    %v3277 = vmul.f32 %v3271, 0.25
    %v3278 = vsel %vm650, %v3276, -1e+30
    %v3279 = vsel %vm650, %v3277, -1e+30
    %v3280 = vsel %vm653, %v3278, -inf
    %3281 = vmax.xlane.f32.xlu0 %v3280
    %v3282 = vpop.xlane.xlu0 %3281
    %v3283 = vsel %vm653, %v3279, -inf
    %3284 = vmax.xlane.f32.xlu0 %v3283
    %v3285 = vpop.xlane.xlu0 %3284
    %v3286 = vsub.f32 %v3278, %v3282
    %v3287 = vsub.f32 %v3279, %v3285
    %v3288 = vmul.f32 %v3286, 1.442695
    %v3289 = vpow.pop %v3288
    %v3290 = vmul.f32 %v3287, 1.442695
    %v3291 = vpow.pop %v3290
    %v3292 = vsel %vm653, %v3289, 0.0
    %3293 = vadd.xlane.f32.xlu0 %v3292
    %v3294 = vpop.xlane.xlu0 %3293
    %v3295 = vsel %vm653, %v3291, 0.0
    %3296 = vadd.xlane.f32.xlu0 %v3295
    %v3297 = vpop.xlane.xlu0 %3296
    %v3298 = vrcp.pop %v3294
    %v3299 = vrcp.pop %v3297
    %v3300 = vmul.f32 %v3289, %v3298
    %v3301 = vmul.f32 %v3291, %v3299
    %v3302 = vpack.c.bf16 %v3300, %v3300
    %v3303 = vpack.c.bf16 %v3301, %v3301
    %3304 = vrot.lane.b32.xlu0 %v2353, 80
    %v3305 = vpop.permute.xlu0 %3304
    %v3307 = vsel %vm653, %v3302, 0
    %v3310 = vsel %vm681, %v3305, 0
    %3312 = vmatprep.subr.bf16.mxu0 0
    %3313 = vmatpush1.bf16.msra.mxu0 0
    %3314 = vmatprep.subr.bf16.mxu0 0
    %3315 = vmatpush1.bf16.msra.mxu0 0
    %3316 = vmatprep.subr.bf16.mxu0 0
    %3317 = vmatpush1.bf16.msra.mxu0 0
    %3318 = vmatprep.subr.bf16.mxu0 0
    %3319 = vmatpush1.bf16.msra.mxu0 0
    %3320 = vmatprep.subr.bf16.mxu0 0
    %3321 = vmatpush1.bf16.msra.mxu0 0
    %3322 = vmatprep.subr.bf16.mxu0 0
    %3323 = vmatpush1.bf16.msra.mxu0 0
    %3324 = vmatprep.subr.bf16.mxu0 0
    %3325 = vmatpush1.bf16.msra.mxu0 0
    %3326 = vmatprep.subr.bf16.mxu0 0
    %3327 = vmatpush1.bf16.msra.mxu0 %v3310
    %3328 = vmatprep.subr.bf16.mxu0 0
    %3329 = vmatpush2.bf16.msra.mxu0 0
    %3330 = vmatprep.subr.bf16.mxu0 0
    %3331 = vmatpush2.bf16.msra.mxu0 0
    %3332 = vmatprep.subr.bf16.mxu0 0
    %3333 = vmatpush2.bf16.msra.mxu0 0
    %3334 = vmatprep.subr.bf16.mxu0 0
    %3335 = vmatpush2.bf16.msra.mxu0 0
    %3336 = vmatprep.subr.bf16.mxu0 0
    %3337 = vmatpush2.bf16.msra.mxu0 0
    %3338 = vmatprep.subr.bf16.mxu0 0
    %3339 = vmatpush2.bf16.msra.mxu0 0
    %3340 = vmatprep.subr.bf16.mxu0 0
    %3341 = vmatpush2.bf16.msra.mxu0 0
    %3342 = vmatprep.subr.bf16.mxu0 0
    %3343 = vmatpush2.bf16.msra.mxu0 0
    %3344 = vmatprep.mubr.bf16.mxu0 0
    %3345 = vmatmul.mubr.bf16.gmra.mxu0 %v3307
    %v3346 = vpop.f32.mrf.mxu0
    %v3347 = vadd.f32 0.0, %v3346
    %v3348 = vpop.f32.mrf.mxu0
    %v3349 = vpop.f32.mrf.mxu0
    %v3350 = vpop.f32.mrf.mxu0
    %3351 = vdwg.mxu0
    %3352 = vrot.lane.b32.xlu0 %v2354, 80
    %v3353 = vpop.permute.xlu0 %3352
    %v3355 = vsel %vm653, %v3303, 0
    %v3358 = vsel %vm681, %v3353, 0
    %3360 = vmatprep.subr.bf16.mxu0 0
    %3361 = vmatpush1.bf16.msra.mxu0 0
    %3362 = vmatprep.subr.bf16.mxu0 0
    %3363 = vmatpush1.bf16.msra.mxu0 0
    %3364 = vmatprep.subr.bf16.mxu0 0
    %3365 = vmatpush1.bf16.msra.mxu0 0
    %3366 = vmatprep.subr.bf16.mxu0 0
    %3367 = vmatpush1.bf16.msra.mxu0 0
    %3368 = vmatprep.subr.bf16.mxu0 0
    %3369 = vmatpush1.bf16.msra.mxu0 0
    %3370 = vmatprep.subr.bf16.mxu0 0
    %3371 = vmatpush1.bf16.msra.mxu0 0
    %3372 = vmatprep.subr.bf16.mxu0 0
    %3373 = vmatpush1.bf16.msra.mxu0 0
    %3374 = vmatprep.subr.bf16.mxu0 0
    %3375 = vmatpush1.bf16.msra.mxu0 %v3358
    %3376 = vmatprep.subr.bf16.mxu0 0
    %3377 = vmatpush2.bf16.msra.mxu0 0
    %3378 = vmatprep.subr.bf16.mxu0 0
    %3379 = vmatpush2.bf16.msra.mxu0 0
    %3380 = vmatprep.subr.bf16.mxu0 0
    %3381 = vmatpush2.bf16.msra.mxu0 0
    %3382 = vmatprep.subr.bf16.mxu0 0
    %3383 = vmatpush2.bf16.msra.mxu0 0
    %3384 = vmatprep.subr.bf16.mxu0 0
    %3385 = vmatpush2.bf16.msra.mxu0 0
    %3386 = vmatprep.subr.bf16.mxu0 0
    %3387 = vmatpush2.bf16.msra.mxu0 0
    %3388 = vmatprep.subr.bf16.mxu0 0
    %3389 = vmatpush2.bf16.msra.mxu0 0
    %3390 = vmatprep.subr.bf16.mxu0 0
    %3391 = vmatpush2.bf16.msra.mxu0 0
    %3392 = vmatprep.mubr.bf16.mxu0 0
    %3393 = vmatmul.mubr.bf16.gmra.mxu0 %v3355
    %v3394 = vpop.f32.mrf.mxu0
    %v3395 = vadd.f32 0.0, %v3394
    %v3396 = vpop.f32.mrf.mxu0
    %v3397 = vpop.f32.mrf.mxu0
    %v3398 = vpop.f32.mrf.mxu0
    %3399 = vdwg.mxu0
    %v3400 = vpack.c.bf16 %v3395, %v3347
    %v3403 = vunpack.c.l.b16 %v2036
    %v3404 = vunpack.c.l.b16 %v2037
    %v3405 = vpack.c.b16 %v3404, %v3403
    %v3408 = vsel %vm554, %v3400, 0
    %3410 = vmatprep.subr.bf16.mxu0 0
    %3411 = vmatpush1.bf16.msra.mxu0 0
    %3412 = vmatprep.subr.bf16.mxu0 0
    %3413 = vmatpush1.bf16.msra.mxu0 0
    %3414 = vmatprep.subr.bf16.mxu0 0
    %3415 = vmatpush1.bf16.msra.mxu0 0
    %3416 = vmatprep.subr.bf16.mxu0 0
    %3417 = vmatpush1.bf16.msra.mxu0 0
    %3418 = vmatprep.subr.bf16.mxu0 0
    %3419 = vmatpush1.bf16.msra.mxu0 0
    %3420 = vmatprep.subr.bf16.mxu0 0
    %3421 = vmatpush1.bf16.msra.mxu0 0
    %3422 = vmatprep.subr.bf16.mxu0 0
    %3423 = vmatpush1.bf16.msra.mxu0 0
    %3424 = vmatprep.subr.bf16.mxu0 0
    %3425 = vmatpush1.bf16.msra.mxu0 %v3405
    %3426 = vmatprep.subr.bf16.mxu0 0
    %3427 = vmatpush2.bf16.msra.mxu0 0
    %3428 = vmatprep.subr.bf16.mxu0 0
    %3429 = vmatpush2.bf16.msra.mxu0 0
    %3430 = vmatprep.subr.bf16.mxu0 0
    %3431 = vmatpush2.bf16.msra.mxu0 0
    %3432 = vmatprep.subr.bf16.mxu0 0
    %3433 = vmatpush2.bf16.msra.mxu0 0
    %3434 = vmatprep.subr.bf16.mxu0 0
    %3435 = vmatpush2.bf16.msra.mxu0 0
    %3436 = vmatprep.subr.bf16.mxu0 0
    %3437 = vmatpush2.bf16.msra.mxu0 0
    %3438 = vmatprep.subr.bf16.mxu0 0
    %3439 = vmatpush2.bf16.msra.mxu0 0
    %3440 = vmatprep.subr.bf16.mxu0 0
    %3441 = vmatpush2.bf16.msra.mxu0 0
    %3442 = vmatprep.mubr.bf16.mxu0 0
    %3443 = vmatmul.mubr.bf16.gmra.mxu0 %v3408
    %v3444 = vpop.f32.mrf.mxu0
    %v3445 = vadd.f32 0.0, %v3444
    %v3446 = vpop.f32.mrf.mxu0
    %v3447 = vpop.f32.mrf.mxu0
    %v3448 = vadd.f32 0.0, %v3447
    %v3449 = vpop.f32.mrf.mxu0
    %3450 = vdwg.mxu0
    %v3451 = vadd.f32 %v3174, %v3445
    %v3452 = vadd.f32 %v3175, %v3448
    %v3453 = vadd.f32 %v1990, %v3451
    %v3454 = vadd.f32 %v1991, %v3452
    %v3456 = vlaneseq
    %v3457 = vshrl.u32 %v3456, 7
    %v3458 = vsub.s32 0, %v3457
    %v3459 = vrot.slane %v2039, %v3458
    %v3461 = vadd.f32 %v3453, %v3459
    %v3462 = vadd.f32 %v3454, %v3459
    %v3463 = vsel %vm287, %v3461, 0.0
    %3464 = vadd.xlane.f32.xlu0 %v3463
    %v3465 = vpop.xlane.xlu0 %3464
    %v3466 = vsel %vm287, %v3462, 0.0
    %3467 = vadd.xlane.f32.xlu0 %v3466
    %v3468 = vpop.xlane.xlu0 %3467
    %v3469 = vmul.f32 %v3465, %v294
    %v3470 = vmul.f32 %v3468, %v294
    %v3471 = vsub.f32 %v3461, %v3469
    %v3472 = vsub.f32 %v3462, %v3470
    %v3473 = vmul.f32 %v3471, %v3471
    %v3474 = vmul.f32 %v3472, %v3472
    %v3475 = vsel %vm287, %v3473, 0.0
    %3476 = vadd.xlane.f32.xlu0 %v3475
    %v3477 = vpop.xlane.xlu0 %3476
    %v3478 = vsel %vm287, %v3474, 0.0
    %3479 = vadd.xlane.f32.xlu0 %v3478
    %v3480 = vpop.xlane.xlu0 %3479
    %v3481 = vmul.f32 %v3477, %v294
    %v3482 = vmul.f32 %v3480, %v294
    %v3483 = vadd.f32 %v3481, 1e-05
    %v3484 = vadd.f32 %v3482, 1e-05
    %v3485 = vrsqrt.pop %v3483
    %v3486 = vrsqrt.pop %v3484
    %v3487 = vmul.f32 %v3471, %v3485
    %v3488 = vmul.f32 %v3472, %v3486
    %v3490 = vlaneseq
    %v3491 = vshrl.u32 %v3490, 7
    %v3492 = vsub.s32 0, %v3491
    %v3493 = vrot.slane %v2041, %v3492
    %v3495 = vmul.f32 %v3487, %v3493
    %v3496 = vmul.f32 %v3488, %v3493
    %v3498 = vlaneseq
    %v3499 = vshrl.u32 %v3498, 7
    %v3500 = vsub.s32 0, %v3499
    %v3501 = vrot.slane %v2043, %v3500
    %v3503 = vadd.f32 %v3495, %v3501
    %v3504 = vadd.f32 %v3496, %v3501
    %v3505 = vpack.c.bf16 %v3504, %v3503
    %v3507 = vlaneseq
    %v3508 = vshrl.u32 %v3507, 7
    %v3509 = vsub.s32 0, %v3508
    %v3510 = vrot.slane %v2054, %v3509
    %v3511 = vlaneseq
    %v3512 = vshrl.u32 %v3511, 7
    %v3513 = vsub.s32 1, %v3512
    %v3514 = vrot.slane %v2054, %v3513
    %v3525 = vunpack.c.l.b16 %v2045
    %v3526 = vunpack.c.h.b16 %v2045
    %v3527 = vunpack.c.l.b16 %v2046
    %v3528 = vunpack.c.h.b16 %v2046
    %v3529 = vunpack.c.l.b16 %v2047
    %v3530 = vunpack.c.h.b16 %v2047
    %v3531 = vunpack.c.l.b16 %v2048
    %v3532 = vunpack.c.h.b16 %v2048
    %v3533 = vunpack.c.l.b16 %v2049
    %v3534 = vunpack.c.h.b16 %v2049
    %v3535 = vunpack.c.l.b16 %v2050
    %v3536 = vunpack.c.h.b16 %v2050
    %v3537 = vunpack.c.l.b16 %v2051
    %v3538 = vunpack.c.h.b16 %v2051
    %v3539 = vunpack.c.l.b16 %v2052
    %v3540 = vunpack.c.h.b16 %v2052
    %v3541 = vpack.c.b16 %v3527, %v3525
    %v3542 = vpack.c.b16 %v3528, %v3526
    %v3543 = vpack.c.b16 %v3531, %v3529
    %v3544 = vpack.c.b16 %v3532, %v3530
    %v3545 = vpack.c.b16 %v3535, %v3533
    %v3546 = vpack.c.b16 %v3536, %v3534
    %v3547 = vpack.c.b16 %v3539, %v3537
    %v3548 = vpack.c.b16 %v3540, %v3538
    %v3558 = vsel %vm287, %v3505, 0
    %3560 = vmatprep.subr.bf16.mxu0 0
    %3561 = vmatpush1.bf16.msra.mxu0 0
    %3562 = vmatprep.subr.bf16.mxu0 0
    %3563 = vmatpush1.bf16.msra.mxu0 0
    %3564 = vmatprep.subr.bf16.mxu0 0
    %3565 = vmatpush1.bf16.msra.mxu0 0
    %3566 = vmatprep.subr.bf16.mxu0 0
    %3567 = vmatpush1.bf16.msra.mxu0 0
    %3568 = vmatprep.subr.bf16.mxu0 %v3548
    %3569 = vmatpush1.bf16.msra.mxu0 %v3547
    %3570 = vmatprep.subr.bf16.mxu0 %v3546
    %3571 = vmatpush1.bf16.msra.mxu0 %v3545
    %3572 = vmatprep.subr.bf16.mxu0 %v3544
    %3573 = vmatpush1.bf16.msra.mxu0 %v3543
    %3574 = vmatprep.subr.bf16.mxu0 %v3542
    %3575 = vmatpush1.bf16.msra.mxu0 %v3541
    %3576 = vmatprep.subr.bf16.mxu0 0
    %3577 = vmatpush2.bf16.msra.mxu0 0
    %3578 = vmatprep.subr.bf16.mxu0 0
    %3579 = vmatpush2.bf16.msra.mxu0 0
    %3580 = vmatprep.subr.bf16.mxu0 0
    %3581 = vmatpush2.bf16.msra.mxu0 0
    %3582 = vmatprep.subr.bf16.mxu0 0
    %3583 = vmatpush2.bf16.msra.mxu0 0
    %3584 = vmatprep.subr.bf16.mxu0 0
    %3585 = vmatpush2.bf16.msra.mxu0 0
    %3586 = vmatprep.subr.bf16.mxu0 0
    %3587 = vmatpush2.bf16.msra.mxu0 0
    %3588 = vmatprep.subr.bf16.mxu0 0
    %3589 = vmatpush2.bf16.msra.mxu0 0
    %3590 = vmatprep.subr.bf16.mxu0 0
    %3591 = vmatpush2.bf16.msra.mxu0 0
    %3592 = vmatprep.mubr.bf16.mxu0 0
    %3593 = vmatmul.mubr.bf16.gmra.mxu0 %v3558
    %v3594 = vpop.f32.mrf.mxu0
    %v3595 = vadd.f32 %v3510, %v3594
    %v3596 = vpop.f32.mrf.mxu0
    %v3597 = vadd.f32 %v3514, %v3596
    %v3598 = vpop.f32.mrf.mxu0
    %v3599 = vadd.f32 %v3510, %v3598
    %v3600 = vpop.f32.mrf.mxu0
    %v3601 = vadd.f32 %v3514, %v3600
    %3602 = vdwg.mxu0
    %v3603 = vmul.f32 %v3595, 0.5
    %v3604 = vmul.f32 %v3597, 0.5
    %v3605 = vmul.f32 %v3599, 0.5
    %v3606 = vmul.f32 %v3601, 0.5
    %v3607 = vmul.f32 %v3595, 0.044715
    %v3608 = vmul.f32 %v3597, 0.044715
    %v3609 = vmul.f32 %v3599, 0.044715
    %v3610 = vmul.f32 %v3601, 0.044715
    %v3611 = vmul.f32 %v3607, %v3595
    %v3612 = vmul.f32 %v3608, %v3597
    %v3613 = vmul.f32 %v3609, %v3599
    %v3614 = vmul.f32 %v3610, %v3601
    %v3615 = vmul.f32 %v3611, %v3595
    %v3616 = vmul.f32 %v3612, %v3597
    %v3617 = vmul.f32 %v3613, %v3599
    %v3618 = vmul.f32 %v3614, %v3601
    %v3619 = vadd.f32 %v3595, %v3615
    %v3620 = vadd.f32 %v3597, %v3616
    %v3621 = vadd.f32 %v3599, %v3617
    %v3622 = vadd.f32 %v3601, %v3618
    %v3623 = vmul.f32 %v3619, 0.7978846
    %v3624 = vmul.f32 %v3620, 0.7978846
    %v3625 = vmul.f32 %v3621, 0.7978846
    %v3626 = vmul.f32 %v3622, 0.7978846
    %v3627 = vtanh.pop %v3623
    %v3628 = vtanh.pop %v3624
    %v3629 = vtanh.pop %v3625
    %v3630 = vtanh.pop %v3626
    %v3631 = vadd.f32 %v3627, 1.0
    %v3632 = vadd.f32 %v3628, 1.0
    %v3633 = vadd.f32 %v3629, 1.0
    %v3634 = vadd.f32 %v3630, 1.0
    %v3635 = vmul.f32 %v3603, %v3631
    %v3636 = vmul.f32 %v3604, %v3632
    %v3637 = vmul.f32 %v3605, %v3633
    %v3638 = vmul.f32 %v3606, %v3634
    %v3639 = vpack.c.bf16 %v3637, %v3635
    %v3640 = vpack.c.bf16 %v3638, %v3636
    %v3673 = vunpack.c.l.b16 %v2056
    %v3674 = vunpack.c.l.b16 %v2057
    %v3675 = vunpack.c.l.b16 %v2058
    %v3676 = vunpack.c.l.b16 %v2059
    %v3677 = vunpack.c.l.b16 %v2060
    %v3678 = vunpack.c.l.b16 %v2061
    %v3679 = vunpack.c.l.b16 %v2062
    %v3680 = vunpack.c.l.b16 %v2063
    %v3681 = vunpack.c.l.b16 %v2064
    %v3682 = vunpack.c.l.b16 %v2065
    %v3683 = vunpack.c.l.b16 %v2066
    %v3684 = vunpack.c.l.b16 %v2067
    %v3685 = vunpack.c.l.b16 %v2068
    %v3686 = vunpack.c.l.b16 %v2069
    %v3687 = vunpack.c.l.b16 %v2070
    %v3688 = vunpack.c.l.b16 %v2071
    %v3689 = vunpack.c.l.b16 %v2072
    %v3690 = vunpack.c.l.b16 %v2073
    %v3691 = vunpack.c.l.b16 %v2074
    %v3692 = vunpack.c.l.b16 %v2075
    %v3693 = vunpack.c.l.b16 %v2076
    %v3694 = vunpack.c.l.b16 %v2077
    %v3695 = vunpack.c.l.b16 %v2078
    %v3696 = vunpack.c.l.b16 %v2079
    %v3697 = vunpack.c.l.b16 %v2080
    %v3698 = vunpack.c.l.b16 %v2081
    %v3699 = vunpack.c.l.b16 %v2082
    %v3700 = vunpack.c.l.b16 %v2083
    %v3701 = vunpack.c.l.b16 %v2084
    %v3702 = vunpack.c.l.b16 %v2085
    %v3703 = vunpack.c.l.b16 %v2086
    %v3704 = vunpack.c.l.b16 %v2087
    %v3705 = vpack.c.b16 %v3674, %v3673
    %v3706 = vpack.c.b16 %v3676, %v3675
    %v3707 = vpack.c.b16 %v3678, %v3677
    %v3708 = vpack.c.b16 %v3680, %v3679
    %v3709 = vpack.c.b16 %v3682, %v3681
    %v3710 = vpack.c.b16 %v3684, %v3683
    %v3711 = vpack.c.b16 %v3686, %v3685
    %v3712 = vpack.c.b16 %v3688, %v3687
    %v3713 = vpack.c.b16 %v3690, %v3689
    %v3714 = vpack.c.b16 %v3692, %v3691
    %v3715 = vpack.c.b16 %v3694, %v3693
    %v3716 = vpack.c.b16 %v3696, %v3695
    %v3717 = vpack.c.b16 %v3698, %v3697
    %v3718 = vpack.c.b16 %v3700, %v3699
    %v3719 = vpack.c.b16 %v3702, %v3701
    %v3720 = vpack.c.b16 %v3704, %v3703
    %3737 = vmatprep.subr.bf16.mxu0 0
    %3738 = vmatpush1.bf16.msra.mxu0 %v3712
    %3739 = vmatprep.subr.bf16.mxu0 0
    %3740 = vmatpush1.bf16.msra.mxu0 %v3711
    %3741 = vmatprep.subr.bf16.mxu0 0
    %3742 = vmatpush1.bf16.msra.mxu0 %v3710
    %3743 = vmatprep.subr.bf16.mxu0 0
    %3744 = vmatpush1.bf16.msra.mxu0 %v3709
    %3745 = vmatprep.subr.bf16.mxu0 0
    %3746 = vmatpush1.bf16.msra.mxu0 %v3708
    %3747 = vmatprep.subr.bf16.mxu0 0
    %3748 = vmatpush1.bf16.msra.mxu0 %v3707
    %3749 = vmatprep.subr.bf16.mxu0 0
    %3750 = vmatpush1.bf16.msra.mxu0 %v3706
    %3751 = vmatprep.subr.bf16.mxu0 0
    %3752 = vmatpush1.bf16.msra.mxu0 %v3705
    %3753 = vmatprep.subr.bf16.mxu0 0
    %3754 = vmatpush2.bf16.msra.mxu0 %v3720
    %3755 = vmatprep.subr.bf16.mxu0 0
    %3756 = vmatpush2.bf16.msra.mxu0 %v3719
    %3757 = vmatprep.subr.bf16.mxu0 0
    %3758 = vmatpush2.bf16.msra.mxu0 %v3718
    %3759 = vmatprep.subr.bf16.mxu0 0
    %3760 = vmatpush2.bf16.msra.mxu0 %v3717
    %3761 = vmatprep.subr.bf16.mxu0 0
    %3762 = vmatpush2.bf16.msra.mxu0 %v3716
    %3763 = vmatprep.subr.bf16.mxu0 0
    %3764 = vmatpush2.bf16.msra.mxu0 %v3715
    %3765 = vmatprep.subr.bf16.mxu0 0
    %3766 = vmatpush2.bf16.msra.mxu0 %v3714
    %3767 = vmatprep.subr.bf16.mxu0 0
    %3768 = vmatpush2.bf16.msra.mxu0 %v3713
    %3769 = vmatprep.mubr.bf16.mxu0 %v3640
    %3770 = vmatmul.mubr.bf16.gmra.mxu0 %v3639
    %v3771 = vpop.f32.mrf.mxu0
    %v3772 = vadd.f32 0.0, %v3771
    %v3773 = vpop.f32.mrf.mxu0
    %v3774 = vpop.f32.mrf.mxu0
    %v3775 = vadd.f32 0.0, %v3774
    %v3776 = vpop.f32.mrf.mxu0
    %3777 = vdwg.mxu0
    %v3778 = vadd.f32 %v3461, %v3772
    %v3779 = vadd.f32 %v3462, %v3775
    %v3781 = vlaneseq
    %v3782 = vshrl.u32 %v3781, 7
    %v3783 = vsub.s32 0, %v3782
    %v3784 = vrot.slane %v2089, %v3783
    %v3786 = vadd.f32 %v3778, %v3784
    %v3787 = vadd.f32 %v3779, %v3784
    %v3788 = vld [vmem:[%s20] sm:$0x1]
    %v3789 = vld [vmem:[%s21] sm:$0x1]
    %v3790 = vsel %vm287, %v3786, 0.0
    %3791 = vadd.xlane.f32.xlu0 %v3790
    %v3792 = vpop.xlane.xlu0 %3791
    %v3793 = vsel %vm287, %v3787, 0.0
    %3794 = vadd.xlane.f32.xlu0 %v3793
    %v3795 = vpop.xlane.xlu0 %3794
    %v3796 = vmul.f32 %v3792, %v294
    %v3797 = vmul.f32 %v3795, %v294
    %v3798 = vsub.f32 %v3786, %v3796
    %v3799 = vsub.f32 %v3787, %v3797
    %v3800 = vmul.f32 %v3798, %v3798
    %v3801 = vmul.f32 %v3799, %v3799
    %v3802 = vsel %vm287, %v3800, 0.0
    %3803 = vadd.xlane.f32.xlu0 %v3802
    %v3804 = vpop.xlane.xlu0 %3803
    %v3805 = vsel %vm287, %v3801, 0.0
    %3806 = vadd.xlane.f32.xlu0 %v3805
    %v3807 = vpop.xlane.xlu0 %3806
    %v3808 = vmul.f32 %v3804, %v294
    %v3809 = vmul.f32 %v3807, %v294
    %v3810 = vadd.f32 %v3808, 1e-05
    %v3811 = vadd.f32 %v3809, 1e-05
    %v3812 = vrsqrt.pop %v3810
    %v3813 = vrsqrt.pop %v3811
    %v3814 = vmul.f32 %v3798, %v3812
    %v3815 = vmul.f32 %v3799, %v3813
    %v3817 = vlaneseq
    %v3818 = vshrl.u32 %v3817, 7
    %v3819 = vsub.s32 0, %v3818
    %v3820 = vrot.slane %v3788, %v3819
    %v3822 = vmul.f32 %v3814, %v3820
    %v3823 = vmul.f32 %v3815, %v3820
    %v3825 = vlaneseq
    %v3826 = vshrl.u32 %v3825, 7
    %v3827 = vsub.s32 0, %v3826
    %v3828 = vrot.slane %v3789, %v3827
    %v3830 = vadd.f32 %v3822, %v3828
    %v3831 = vadd.f32 %v3823, %v3828
    %v3832 = vpack.c.bf16 %v3831, %v3830
    %v3833 = vld [vmem:[%s3] sm:$0xff]
    %v3834 = vld [vmem:[%s3 + $0x8] sm:$0xff]
    %v3835 = vld [vmem:[%s3 + $0x10] sm:$0xff]
    %v3836 = vld [vmem:[%s3 + $0x18] sm:$0xff]
    %v3837 = vld [vmem:[%s3 + $0x20] sm:$0xff]
    %v3838 = vld [vmem:[%s3 + $0x28] sm:$0xff]
    %v3839 = vld [vmem:[%s3 + $0x30] sm:$0xff]
    %v3840 = vld [vmem:[%s3 + $0x38] sm:$0xff]
    %v3849 = vunpack.c.l.b16 %v3833
    %v3850 = vunpack.c.h.b16 %v3833
    %v3851 = vunpack.c.l.b16 %v3834
    %v3852 = vunpack.c.h.b16 %v3834
    %v3853 = vunpack.c.l.b16 %v3835
    %v3854 = vunpack.c.h.b16 %v3835
    %v3855 = vunpack.c.l.b16 %v3836
    %v3856 = vunpack.c.h.b16 %v3836
    %v3857 = vunpack.c.l.b16 %v3837
    %v3858 = vunpack.c.h.b16 %v3837
    %v3859 = vunpack.c.l.b16 %v3838
    %v3860 = vunpack.c.h.b16 %v3838
    %v3861 = vunpack.c.l.b16 %v3839
    %v3862 = vunpack.c.h.b16 %v3839
    %v3863 = vunpack.c.l.b16 %v3840
    %v3864 = vunpack.c.h.b16 %v3840
    %v3865 = vpack.c.b16 %v3851, %v3849
    %v3866 = vpack.c.b16 %v3852, %v3850
    %v3867 = vpack.c.b16 %v3855, %v3853
    %v3868 = vpack.c.b16 %v3856, %v3854
    %v3869 = vpack.c.b16 %v3859, %v3857
    %v3870 = vpack.c.b16 %v3860, %v3858
    %v3871 = vpack.c.b16 %v3863, %v3861
    %v3872 = vpack.c.b16 %v3864, %v3862
    %v3882 = vsel %vm287, %v3832, 0
    %3884 = vmatprep.subr.bf16.mxu0 0
    %3885 = vmatpush1.bf16.msra.mxu0 0
    %3886 = vmatprep.subr.bf16.mxu0 0
    %3887 = vmatpush1.bf16.msra.mxu0 0
    %3888 = vmatprep.subr.bf16.mxu0 0
    %3889 = vmatpush1.bf16.msra.mxu0 0
    %3890 = vmatprep.subr.bf16.mxu0 0
    %3891 = vmatpush1.bf16.msra.mxu0 0
    %3892 = vmatprep.subr.bf16.mxu0 %v3872
    %3893 = vmatpush1.bf16.msra.mxu0 %v3871
    %3894 = vmatprep.subr.bf16.mxu0 %v3870
    %3895 = vmatpush1.bf16.msra.mxu0 %v3869
    %3896 = vmatprep.subr.bf16.mxu0 %v3868
    %3897 = vmatpush1.bf16.msra.mxu0 %v3867
    %3898 = vmatprep.subr.bf16.mxu0 %v3866
    %3899 = vmatpush1.bf16.msra.mxu0 %v3865
    %3900 = vmatprep.subr.bf16.mxu0 0
    %3901 = vmatpush2.bf16.msra.mxu0 0
    %3902 = vmatprep.subr.bf16.mxu0 0
    %3903 = vmatpush2.bf16.msra.mxu0 0
    %3904 = vmatprep.subr.bf16.mxu0 0
    %3905 = vmatpush2.bf16.msra.mxu0 0
    %3906 = vmatprep.subr.bf16.mxu0 0
    %3907 = vmatpush2.bf16.msra.mxu0 0
    %3908 = vmatprep.subr.bf16.mxu0 0
    %3909 = vmatpush2.bf16.msra.mxu0 0
    %3910 = vmatprep.subr.bf16.mxu0 0
    %3911 = vmatpush2.bf16.msra.mxu0 0
    %3912 = vmatprep.subr.bf16.mxu0 0
    %3913 = vmatpush2.bf16.msra.mxu0 0
    %3914 = vmatprep.subr.bf16.mxu0 0
    %3915 = vmatpush2.bf16.msra.mxu0 0
    %3916 = vmatprep.mubr.bf16.mxu0 0
    %3917 = vmatmul.mubr.bf16.gmra.mxu0 %v3882
    %v3918 = vpop.f32.mrf.mxu0
    %v3919 = vadd.f32 0.0, %v3918
    %v3920 = vpop.f32.mrf.mxu0
    %v3921 = vadd.f32 0.0, %v3920
    %v3922 = vpop.f32.mrf.mxu0
    %v3923 = vadd.f32 0.0, %v3922
    %v3924 = vpop.f32.mrf.mxu0
    %v3925 = vadd.f32 0.0, %v3924
    %3926 = vdwg.mxu0
    %3927 = vst [vmem:[#allocation2] sm:$0xff] %v3919
    %3928 = vst [vmem:[#allocation2 + $0x8] sm:$0xff] %v3921
    %3929 = vst [vmem:[#allocation2 + $0x10] sm:$0xff] %v3923
    %3930 = vst [vmem:[#allocation2 + $0x18] sm:$0xff] %v3925
    // Predicated region
    $region90: #{tpu_custom_call.1} parent=1 // pred_check
      _
    $region91: #{tpu_custom_call.1} parent=1 // pred_check_branch
      %3932 = sbr.rel (0) target = $region93
    $region92: #{tpu_custom_call.1} parent=1 // pred_region
      %s3934 = ssub.s32 512, 512
      %3935 = vsyncadd [#allocation3], %s3934
      %s3936 = sshll.u32 [#allocation2], 4
      %s3937 = int_to_ptr.vmem [resolvable:$true] %s3936
      %3942 = dma.vmem_to_hbm [thread:$0]  %s3937, 512, %s22, [#allocation3], 256, 256, 16
    $region93: #{tpu_custom_call.1} parent=1 // pred_fallthru
      _
    // Predicated region
    $region94: #{tpu_custom_call.1} parent=1 // pred_check
      _
    $region95: #{tpu_custom_call.1} parent=1 // pred_check_branch
      %3944 = sbr.rel (0) target = $region97
    $region96: #{tpu_custom_call.1} parent=1 // pred_region
      %3945 = dma.done [#allocation3], 512
    $region97: #{tpu_custom_call.1} parent=1 // pred_fallthru
      _
    %3946 = vsyncpa [#allocation3], 1

</llo_original>
